<compile_context>
chip_gen: v6e
topology: v6e:2x2x1
jax: 0.10.0
libtpu: 0.0.40
codegen_flags: <defaults>
</compile_context>

<pallas_src>
import jax
import jax.numpy as jnp
from jax import lax
from jax.experimental import pallas as pl
from jax.experimental.pallas import tpu as pltpu


def _lstm_decoder_kernel(x_ref, w_ih_ref, w_hh_ref, b_ref, wp_ref, bp_ref,
                         h0_ref, c0_ref,
                         logits_ref, h_out_ref, c_out_ref,
                         gx_s, hseq_s, h_s, c_s):
    """Whole-sequence LSTM + projection in one kernel invocation.

    x_ref:     (T*Bp, D_in)   time-major flattened, batch-padded input
    w_ih_ref:  (D_in, 4*Hp)   gate-padded, transposed input weights
    w_hh_ref:  (Hp,   4*Hp)   gate-padded, transposed recurrent weights
    b_ref:     (1,    4*Hp)   combined (b_ih + b_hh), gate-padded
    wp_ref:    (Hp, Vp), bp_ref: (1, Vp)   lane-padded projection
    h0/c0:     (Bp, Hp)       zero-padded initial state
    outputs:   logits (T*Bp, Vp), h_n (Bp, Hp), c_n (Bp, Hp)
    scratch:   gx_s (T*Bp, 4*Hp), hseq_s (T*Bp, Hp), h_s/c_s (Bp, Hp)
    """
    TB = x_ref.shape[0]
    Bp, Hp = h0_ref.shape
    T = TB // Bp

    # ---- Stage 1: input projection for all T timesteps in ONE MXU matmul ----
    gx_s[...] = (jnp.dot(x_ref[...], w_ih_ref[...],
                         preferred_element_type=jnp.float32) + b_ref[...])

    # ---- Stage 2: sequential recurrence (only h @ W_hh^T per step) ----------
    h_s[...] = h0_ref[...]
    c_s[...] = c0_ref[...]

    def step(t, carry):
        off = pl.multiple_of(t * Bp, Bp)       # Bp is a multiple of 8 sublanes
        gates = gx_s[pl.ds(off, Bp), :] + jnp.dot(
            h_s[...], w_hh_ref[...], preferred_element_type=jnp.float32)
        # Hp is a multiple of 128, so each gate slice is lane-group aligned.
        i_g = jax.nn.sigmoid(gates[:, 0 * Hp:1 * Hp])
        f_g = jax.nn.sigmoid(gates[:, 1 * Hp:2 * Hp])
        g_g = jnp.tanh(gates[:, 2 * Hp:3 * Hp])
        o_g = jax.nn.sigmoid(gates[:, 3 * Hp:4 * Hp])
        c_new = f_g * c_s[...] + i_g * g_g
        h_new = o_g * jnp.tanh(c_new)
        c_s[...] = c_new
        h_s[...] = h_new
        hseq_s[pl.ds(off, Bp), :] = h_new
        return carry

    lax.fori_loop(0, T, step, 0, unroll=True)

    # ---- Final state: written exactly once ----------------------------------
    h_out_ref[...] = h_s[...].astype(h_out_ref.dtype)
    c_out_ref[...] = c_s[...].astype(c_out_ref.dtype)

    # ---- Stage 3: output projection for all timesteps in ONE matmul ---------
    # Vp is a multiple of 128 -> lane-dense, unmasked stores.
    logits_ref[...] = (jnp.dot(hseq_s[...], wp_ref[...],
                               preferred_element_type=jnp.float32)
                       + bp_ref[...]).astype(logits_ref.dtype)


@jax.jit
def lstm_decoder_forward(x_btd, params, hidden=None):
    """Mirrors LSTMDecoder.forward(input, hidden).

    x_btd:  (B, T, input_size + hidden_size) float32  (batch_first)
    hidden: None or (h0, c0), each (1, B, H)
    returns (logits (B, T, V), (h_n (1, B, H), c_n (1, B, H)))
    """
    w_ih, w_hh, b_ih, b_hh, w_proj, b_proj = (
        params["w_ih"], params["w_hh"], params["b_ih"], params["b_hh"],
        params["w_proj"], params["b_proj"])

    B, T, D_in = x_btd.shape
    H = w_hh.shape[1]                      # w_hh: (4H, H) PyTorch layout
    V = w_proj.shape[0]                    # w_proj: (V, H)
    Hp = ((H + 127) // 128) * 128          # hidden -> lane-group multiple
    Vp = ((V + 127) // 128) * 128          # vocab  -> lane-group multiple
    Bp = ((B + 7) // 8) * 8                # batch  -> sublane multiple
    pad_h, pad_v, pad_b = Hp - H, Vp - V, Bp - B

    # --- weight prep: transpose to (K, N) layout, split per gate, pad H -> Hp
    w_ih_t = jnp.transpose(w_ih.reshape(4, H, D_in), (2, 0, 1))      # (D_in, 4, H)
    w_ih_t = jnp.pad(w_ih_t, ((0, 0), (0, 0), (0, pad_h)))
    w_ih_t = w_ih_t.reshape(D_in, 4 * Hp).astype(jnp.float32)

    w_hh_t = jnp.transpose(w_hh.reshape(4, H, H), (2, 0, 1))         # (H, 4, H)
    w_hh_t = jnp.pad(w_hh_t, ((0, pad_h), (0, 0), (0, pad_h)))
    w_hh_t = w_hh_t.reshape(Hp, 4 * Hp).astype(jnp.float32)

    # Combined gate bias, zero-padded so padded gate lanes stay inert.
    b_gates = jnp.pad((b_ih + b_hh).reshape(4, H), ((0, 0), (0, pad_h)))
    b_gates = b_gates.reshape(1, 4 * Hp).astype(jnp.float32)

    # Projection: (Hp, Vp); padded h lanes are 0, padded vocab lanes sliced off.
    w_proj_t = jnp.pad(jnp.transpose(w_proj),
                       ((0, pad_h), (0, pad_v))).astype(jnp.float32)
    b_proj_r = jnp.pad(b_proj, (0, pad_v)).reshape(1, Vp).astype(jnp.float32)

    if hidden is None:
        h0p = jnp.zeros((Bp, Hp), jnp.float32)
        c0p = jnp.zeros((Bp, Hp), jnp.float32)
    else:
        h0p = jnp.pad(hidden[0].reshape(B, H).astype(jnp.float32),
                      ((0, pad_b), (0, pad_h)))
        c0p = jnp.pad(hidden[1].reshape(B, H).astype(jnp.float32),
                      ((0, pad_b), (0, pad_h)))

    # time-major, batch-padded, flattened: rows [t*Bp:(t+1)*Bp] are timestep t
    x_tbd = jnp.transpose(x_btd, (1, 0, 2)).astype(jnp.float32)       # (T, B, D)
    x_tbd = jnp.pad(x_tbd, ((0, 0), (0, pad_b), (0, 0)))
    x_flat = x_tbd.reshape(T * Bp, D_in)

    vmem_spec = pl.BlockSpec(memory_space=pltpu.MemorySpace.VMEM)

    logits_flat, h_np, c_np = pl.pallas_call(
        _lstm_decoder_kernel,
        out_shape=(
            jax.ShapeDtypeStruct((T * Bp, Vp), jnp.float32),
            jax.ShapeDtypeStruct((Bp, Hp), jnp.float32),
            jax.ShapeDtypeStruct((Bp, Hp), jnp.float32),
        ),
        in_specs=[vmem_spec] * 8,
        out_specs=(vmem_spec, vmem_spec, vmem_spec),
        scratch_shapes=[
            pltpu.VMEM((T * Bp, 4 * Hp), jnp.float32),   # gates_x, all timesteps
            pltpu.VMEM((T * Bp, Hp), jnp.float32),       # h_t, all timesteps
            pltpu.VMEM((Bp, Hp), jnp.float32),           # h state
            pltpu.VMEM((Bp, Hp), jnp.float32),           # c state
        ],
    )(x_flat, w_ih_t, w_hh_t, b_gates, w_proj_t, b_proj_r, h0p, c0p)

    logits_btv = jnp.transpose(
        logits_flat.reshape(T, Bp, Vp)[:, :B, :V], (1, 0, 2))
    h_n = h_np[:B, :H][None, :, :]
    c_n = c_np[:B, :H][None, :, :]
    return logits_btv, (h_n, c_n)


def _reference_forward(x_btd, params, hidden=None):
    """Pure-JAX reference matching torch.nn.LSTM + Linear semantics."""
    w_ih, w_hh, b_ih, b_hh, w_proj, b_proj = (
        params["w_ih"], params["w_hh"], params["b_ih"], params["b_hh"],
        params["w_proj"], params["b_proj"])
    B, T, _ = x_btd.shape
    H = w_hh.shape[1]
    if hidden is None:
        h = jnp.zeros((B, H), jnp.float32)
        c = jnp.zeros((B, H), jnp.float32)
    else:
        h = hidden[0].reshape(B, H)
        c = hidden[1].reshape(B, H)

    def step(carry, x_t):
        h, c = carry
        gates = x_t @ w_ih.T + b_ih + h @ w_hh.T + b_hh
        i_g, f_g, g_g, o_g = jnp.split(gates, 4, axis=-1)
        i_g, f_g, o_g = jax.nn.sigmoid(i_g), jax.nn.sigmoid(f_g), jax.nn.sigmoid(o_g)
        g_g = jnp.tanh(g_g)
        c = f_g * c + i_g * g_g
        h = o_g * jnp.tanh(c)
        return (h, c), h

    (h, c), hs = jax.lax.scan(step, (h, c), jnp.transpose(x_btd, (1, 0, 2)))
    out = jnp.transpose(hs, (1, 0, 2)) @ w_proj.T + b_proj
    return out, (h[None], c[None])


if __name__ == "__main__":
    # Small shapes consistent with the module's forward:
    #   lstm input dim = input_size + hidden_size
    B, T = 8, 8
    INPUT_SIZE, HIDDEN_SIZE, VOCAB = 32, 32, 64
    D_IN = INPUT_SIZE + HIDDEN_SIZE

    key = jax.random.PRNGKey(0)
    ks = jax.random.split(key, 9)
    scale = 1.0 / jnp.sqrt(HIDDEN_SIZE)
    params = {
        "w_ih":   jax.random.uniform(ks[0], (4 * HIDDEN_SIZE, D_IN), jnp.float32, -scale, scale),
        "w_hh":   jax.random.uniform(ks[1], (4 * HIDDEN_SIZE, HIDDEN_SIZE), jnp.float32, -scale, scale),
        "b_ih":   jax.random.uniform(ks[2], (4 * HIDDEN_SIZE,), jnp.float32, -scale, scale),
        "b_hh":   jax.random.uniform(ks[3], (4 * HIDDEN_SIZE,), jnp.float32, -scale, scale),
        "w_proj": jax.random.uniform(ks[4], (VOCAB, HIDDEN_SIZE), jnp.float32, -scale, scale),
        "b_proj": jax.random.uniform(ks[5], (VOCAB,), jnp.float32, -scale, scale),
    }

    x = jax.random.normal(ks[6], (B, T, D_IN), jnp.float32)
    h0 = jax.random.normal(ks[7], (1, B, HIDDEN_SIZE), jnp.float32) * 0.1
    c0 = jax.random.normal(ks[8], (1, B, HIDDEN_SIZE), jnp.float32) * 0.1

    # hidden provided
    out, (h_n, c_n) = lstm_decoder_forward(x, params, (h0, c0))
    out = jax.block_until_ready(out)
    ref_out, (ref_h, ref_c) = _reference_forward(x, params, (h0, c0))
    assert jnp.allclose(out, ref_out, atol=1e-3, rtol=1e-3)
    assert jnp.allclose(h_n, ref_h, atol=1e-3, rtol=1e-3)
    assert jnp.allclose(c_n, ref_c, atol=1e-3, rtol=1e-3)

    # hidden is None (PyTorch defaults to zero state)
    out0, (h0n, c0n) = lstm_decoder_forward(x, params, None)
    out0 = jax.block_until_ready(out0)
    ref_out0, (ref_h0, ref_c0) = _reference_forward(x, params, None)
    assert jnp.allclose(out0, ref_out0, atol=1e-3, rtol=1e-3)
    assert jnp.allclose(h0n, ref_h0, atol=1e-3, rtol=1e-3)
    assert jnp.allclose(c0n, ref_c0, atol=1e-3, rtol=1e-3)

    print("KERNEL_OK")
</pallas_src>

<mosaic_0001>
module attributes {stable_mosaic.version = 11 : i64} {
  func.func @_lstm_decoder_kernel(%arg0: memref<64x64xf32, #tpu.memory_space<vmem>>, %arg1: memref<64x512xf32, #tpu.memory_space<vmem>>, %arg2: memref<128x512xf32, #tpu.memory_space<vmem>>, %arg3: memref<1x512xf32, #tpu.memory_space<vmem>>, %arg4: memref<128x128xf32, #tpu.memory_space<vmem>>, %arg5: memref<1x128xf32, #tpu.memory_space<vmem>>, %arg6: memref<8x128xf32, #tpu.memory_space<vmem>>, %arg7: memref<8x128xf32, #tpu.memory_space<vmem>>, %arg8: memref<64x128xf32, #tpu.memory_space<vmem>>, %arg9: memref<8x128xf32, #tpu.memory_space<vmem>>, %arg10: memref<8x128xf32, #tpu.memory_space<vmem>>, %arg11: memref<64x512xf32, #tpu.memory_space<vmem>>, %arg12: memref<64x128xf32, #tpu.memory_space<vmem>>, %arg13: memref<8x128xf32, #tpu.memory_space<vmem>>, %arg14: memref<8x128xf32, #tpu.memory_space<vmem>>) attributes {dimension_semantics = [], scalar_prefetch = 0 : i64, scratch_operands = 4 : i64, tpu.core_type = #tpu.core_type<tc>} {
    %c0 = arith.constant 0 : index
    %c0_0 = arith.constant 0 : index
    %0 = vector.load %arg0[%c0, %c0_0] : memref<64x64xf32, #tpu.memory_space<vmem>>, vector<64x64xf32>
    %c0_1 = arith.constant 0 : index
    %c0_2 = arith.constant 0 : index
    %1 = vector.load %arg1[%c0_1, %c0_2] : memref<64x512xf32, #tpu.memory_space<vmem>>, vector<64x512xf32>
    %cst = arith.constant dense<0.000000e+00> : vector<64x512xf32>
    %2 = tpu.matmul %0, %1, %cst {dimension_numbers = #tpu.dot_dimension_numbers<[1], [0], [0], [1], [0, 0, 1, 1], [], []>} : vector<64x64xf32>, vector<64x512xf32>, vector<64x512xf32> -> vector<64x512xf32>
    %c0_3 = arith.constant 0 : index
    %c0_4 = arith.constant 0 : index
    %3 = vector.load %arg3[%c0_3, %c0_4] : memref<1x512xf32, #tpu.memory_space<vmem>>, vector<1x512xf32>
    %4 = vector.broadcast %3 : vector<1x512xf32> to vector<64x512xf32>
    %5 = arith.addf %2, %4 : vector<64x512xf32>
    %c0_5 = arith.constant 0 : index
    %c0_6 = arith.constant 0 : index
    %6 = vector.load %arg11[%c0_5, %c0_6] : memref<64x512xf32, #tpu.memory_space<vmem>>, vector<64x512xf32>
    tpu.vector_store %arg11[%c0_5, %c0_6], %5 {strides = array<i32>} : memref<64x512xf32, #tpu.memory_space<vmem>>, vector<64x512xf32>,
    %c0_7 = arith.constant 0 : index
    %c0_8 = arith.constant 0 : index
    %7 = vector.load %arg6[%c0_7, %c0_8] : memref<8x128xf32, #tpu.memory_space<vmem>>, vector<8x128xf32>
    %c0_9 = arith.constant 0 : index
    %c0_10 = arith.constant 0 : index
    %8 = vector.load %arg13[%c0_9, %c0_10] : memref<8x128xf32, #tpu.memory_space<vmem>>, vector<8x128xf32>
    tpu.vector_store %arg13[%c0_9, %c0_10], %7 {strides = array<i32>} : memref<8x128xf32, #tpu.memory_space<vmem>>, vector<8x128xf32>,
    %c0_11 = arith.constant 0 : index
    %c0_12 = arith.constant 0 : index
    %9 = vector.load %arg7[%c0_11, %c0_12] : memref<8x128xf32, #tpu.memory_space<vmem>>, vector<8x128xf32>
    %c0_13 = arith.constant 0 : index
    %c0_14 = arith.constant 0 : index
    %10 = vector.load %arg14[%c0_13, %c0_14] : memref<8x128xf32, #tpu.memory_space<vmem>>, vector<8x128xf32>
    tpu.vector_store %arg14[%c0_13, %c0_14], %9 {strides = array<i32>} : memref<8x128xf32, #tpu.memory_space<vmem>>, vector<8x128xf32>,
    %c0_i32 = arith.constant 0 : i32
    %c8_i32 = arith.constant 8 : i32
    %11 = arith.muli %c0_i32, %c8_i32 : i32
    %12 = tpu.assume_multiple %11, 8 : i32
    %13 = arith.index_cast %12 : i32 to index
    %c0_15 = arith.constant 0 : index
    %14 = vector.load %arg11[%13, %c0_15] : memref<64x512xf32, #tpu.memory_space<vmem>>, vector<8x512xf32>
    %c0_16 = arith.constant 0 : index
    %c0_17 = arith.constant 0 : index
    %15 = vector.load %arg13[%c0_16, %c0_17] : memref<8x128xf32, #tpu.memory_space<vmem>>, vector<8x128xf32>
    %c0_18 = arith.constant 0 : index
    %c0_19 = arith.constant 0 : index
    %16 = vector.load %arg2[%c0_18, %c0_19] : memref<128x512xf32, #tpu.memory_space<vmem>>, vector<128x512xf32>
    %cst_20 = arith.constant dense<0.000000e+00> : vector<8x512xf32>
    %17 = tpu.matmul %15, %16, %cst_20 {dimension_numbers = #tpu.dot_dimension_numbers<[1], [0], [0], [1], [0, 0, 1, 1], [], []>} : vector<8x128xf32>, vector<128x512xf32>, vector<8x512xf32> -> vector<8x512xf32>
    %18 = arith.addf %14, %17 : vector<8x512xf32>
    %19 = vector.extract_strided_slice %18 {offsets = [0, 0], sizes = [8, 128], strides = [1, 1]} : vector<8x512xf32> to vector<8x128xf32>
    %20 = arith.negf %19 : vector<8x128xf32>
    %21 = math.exp %20 : vector<8x128xf32>
    %cst_21 = arith.constant 1.000000e+00 : f32
    %22 = vector.broadcast %cst_21 : f32 to vector<8x128xf32>
    %23 = arith.addf %22, %21 : vector<8x128xf32>
    %24 = arith.divf %22, %23 : vector<8x128xf32>
    %25 = vector.extract_strided_slice %18 {offsets = [0, 128], sizes = [8, 128], strides = [1, 1]} : vector<8x512xf32> to vector<8x128xf32>
    %26 = arith.negf %25 : vector<8x128xf32>
    %27 = math.exp %26 : vector<8x128xf32>
    %cst_22 = arith.constant 1.000000e+00 : f32
    %28 = vector.broadcast %cst_22 : f32 to vector<8x128xf32>
    %29 = arith.addf %28, %27 : vector<8x128xf32>
    %30 = arith.divf %28, %29 : vector<8x128xf32>
    %31 = vector.extract_strided_slice %18 {offsets = [0, 256], sizes = [8, 128], strides = [1, 1]} : vector<8x512xf32> to vector<8x128xf32>
    %32 = math.tanh %31 : vector<8x128xf32>
    %33 = vector.extract_strided_slice %18 {offsets = [0, 384], sizes = [8, 128], strides = [1, 1]} : vector<8x512xf32> to vector<8x128xf32>
    %34 = arith.negf %33 : vector<8x128xf32>
    %35 = math.exp %34 : vector<8x128xf32>
    %cst_23 = arith.constant 1.000000e+00 : f32
    %36 = vector.broadcast %cst_23 : f32 to vector<8x128xf32>
    %37 = arith.addf %36, %35 : vector<8x128xf32>
    %38 = arith.divf %36, %37 : vector<8x128xf32>
    %c0_24 = arith.constant 0 : index
    %c0_25 = arith.constant 0 : index
    %39 = vector.load %arg14[%c0_24, %c0_25] : memref<8x128xf32, #tpu.memory_space<vmem>>, vector<8x128xf32>
    %40 = arith.mulf %30, %39 : vector<8x128xf32>
    %41 = arith.mulf %24, %32 : vector<8x128xf32>
    %42 = arith.addf %40, %41 : vector<8x128xf32>
    %43 = math.tanh %42 : vector<8x128xf32>
    %44 = arith.mulf %38, %43 : vector<8x128xf32>
    %c0_26 = arith.constant 0 : index
    %c0_27 = arith.constant 0 : index
    %45 = vector.load %arg14[%c0_26, %c0_27] : memref<8x128xf32, #tpu.memory_space<vmem>>, vector<8x128xf32>
    tpu.vector_store %arg14[%c0_26, %c0_27], %42 {strides = array<i32>} : memref<8x128xf32, #tpu.memory_space<vmem>>, vector<8x128xf32>,
    %c0_28 = arith.constant 0 : index
    %c0_29 = arith.constant 0 : index
    %46 = vector.load %arg13[%c0_28, %c0_29] : memref<8x128xf32, #tpu.memory_space<vmem>>, vector<8x128xf32>
    tpu.vector_store %arg13[%c0_28, %c0_29], %44 {strides = array<i32>} : memref<8x128xf32, #tpu.memory_space<vmem>>, vector<8x128xf32>,
    %47 = arith.index_cast %12 : i32 to index
    %c0_30 = arith.constant 0 : index
    %48 = vector.load %arg12[%47, %c0_30] : memref<64x128xf32, #tpu.memory_space<vmem>>, vector<8x128xf32>
    tpu.vector_store %arg12[%47, %c0_30], %44 {strides = array<i32>} : memref<64x128xf32, #tpu.memory_space<vmem>>, vector<8x128xf32>,
    %c1_i32 = arith.constant 1 : i32
    %c8_i32_31 = arith.constant 8 : i32
    %49 = arith.muli %c1_i32, %c8_i32_31 : i32
    %50 = tpu.assume_multiple %49, 8 : i32
    %51 = arith.index_cast %50 : i32 to index
    %c0_32 = arith.constant 0 : index
    %52 = vector.load %arg11[%51, %c0_32] : memref<64x512xf32, #tpu.memory_space<vmem>>, vector<8x512xf32>
    %c0_33 = arith.constant 0 : index
    %c0_34 = arith.constant 0 : index
    %53 = vector.load %arg13[%c0_33, %c0_34] : memref<8x128xf32, #tpu.memory_space<vmem>>, vector<8x128xf32>
    %c0_35 = arith.constant 0 : index
    %c0_36 = arith.constant 0 : index
    %54 = vector.load %arg2[%c0_35, %c0_36] : memref<128x512xf32, #tpu.memory_space<vmem>>, vector<128x512xf32>
    %cst_37 = arith.constant dense<0.000000e+00> : vector<8x512xf32>
    %55 = tpu.matmul %53, %54, %cst_37 {dimension_numbers = #tpu.dot_dimension_numbers<[1], [0], [0], [1], [0, 0, 1, 1], [], []>} : vector<8x128xf32>, vector<128x512xf32>, vector<8x512xf32> -> vector<8x512xf32>
    %56 = arith.addf %52, %55 : vector<8x512xf32>
    %57 = vector.extract_strided_slice %56 {offsets = [0, 0], sizes = [8, 128], strides = [1, 1]} : vector<8x512xf32> to vector<8x128xf32>
    %58 = arith.negf %57 : vector<8x128xf32>
    %59 = math.exp %58 : vector<8x128xf32>
    %cst_38 = arith.constant 1.000000e+00 : f32
    %60 = vector.broadcast %cst_38 : f32 to vector<8x128xf32>
    %61 = arith.addf %60, %59 : vector<8x128xf32>
    %62 = arith.divf %60, %61 : vector<8x128xf32>
    %63 = vector.extract_strided_slice %56 {offsets = [0, 128], sizes = [8, 128], strides = [1, 1]} : vector<8x512xf32> to vector<8x128xf32>
    %64 = arith.negf %63 : vector<8x128xf32>
    %65 = math.exp %64 : vector<8x128xf32>
    %cst_39 = arith.constant 1.000000e+00 : f32
    %66 = vector.broadcast %cst_39 : f32 to vector<8x128xf32>
    %67 = arith.addf %66, %65 : vector<8x128xf32>
    %68 = arith.divf %66, %67 : vector<8x128xf32>
    %69 = vector.extract_strided_slice %56 {offsets = [0, 256], sizes = [8, 128], strides = [1, 1]} : vector<8x512xf32> to vector<8x128xf32>
    %70 = math.tanh %69 : vector<8x128xf32>
    %71 = vector.extract_strided_slice %56 {offsets = [0, 384], sizes = [8, 128], strides = [1, 1]} : vector<8x512xf32> to vector<8x128xf32>
    %72 = arith.negf %71 : vector<8x128xf32>
    %73 = math.exp %72 : vector<8x128xf32>
    %cst_40 = arith.constant 1.000000e+00 : f32
    %74 = vector.broadcast %cst_40 : f32 to vector<8x128xf32>
    %75 = arith.addf %74, %73 : vector<8x128xf32>
    %76 = arith.divf %74, %75 : vector<8x128xf32>
    %c0_41 = arith.constant 0 : index
    %c0_42 = arith.constant 0 : index
    %77 = vector.load %arg14[%c0_41, %c0_42] : memref<8x128xf32, #tpu.memory_space<vmem>>, vector<8x128xf32>
    %78 = arith.mulf %68, %77 : vector<8x128xf32>
    %79 = arith.mulf %62, %70 : vector<8x128xf32>
    %80 = arith.addf %78, %79 : vector<8x128xf32>
    %81 = math.tanh %80 : vector<8x128xf32>
    %82 = arith.mulf %76, %81 : vector<8x128xf32>
    %c0_43 = arith.constant 0 : index
    %c0_44 = arith.constant 0 : index
    %83 = vector.load %arg14[%c0_43, %c0_44] : memref<8x128xf32, #tpu.memory_space<vmem>>, vector<8x128xf32>
    tpu.vector_store %arg14[%c0_43, %c0_44], %80 {strides = array<i32>} : memref<8x128xf32, #tpu.memory_space<vmem>>, vector<8x128xf32>,
    %c0_45 = arith.constant 0 : index
    %c0_46 = arith.constant 0 : index
    %84 = vector.load %arg13[%c0_45, %c0_46] : memref<8x128xf32, #tpu.memory_space<vmem>>, vector<8x128xf32>
    tpu.vector_store %arg13[%c0_45, %c0_46], %82 {strides = array<i32>} : memref<8x128xf32, #tpu.memory_space<vmem>>, vector<8x128xf32>,
    %85 = arith.index_cast %50 : i32 to index
    %c0_47 = arith.constant 0 : index
    %86 = vector.load %arg12[%85, %c0_47] : memref<64x128xf32, #tpu.memory_space<vmem>>, vector<8x128xf32>
    tpu.vector_store %arg12[%85, %c0_47], %82 {strides = array<i32>} : memref<64x128xf32, #tpu.memory_space<vmem>>, vector<8x128xf32>,
    %c2_i32 = arith.constant 2 : i32
    %c8_i32_48 = arith.constant 8 : i32
    %87 = arith.muli %c2_i32, %c8_i32_48 : i32
    %88 = tpu.assume_multiple %87, 8 : i32
    %89 = arith.index_cast %88 : i32 to index
    %c0_49 = arith.constant 0 : index
    %90 = vector.load %arg11[%89, %c0_49] : memref<64x512xf32, #tpu.memory_space<vmem>>, vector<8x512xf32>
    %c0_50 = arith.constant 0 : index
    %c0_51 = arith.constant 0 : index
    %91 = vector.load %arg13[%c0_50, %c0_51] : memref<8x128xf32, #tpu.memory_space<vmem>>, vector<8x128xf32>
    %c0_52 = arith.constant 0 : index
    %c0_53 = arith.constant 0 : index
    %92 = vector.load %arg2[%c0_52, %c0_53] : memref<128x512xf32, #tpu.memory_space<vmem>>, vector<128x512xf32>
    %cst_54 = arith.constant dense<0.000000e+00> : vector<8x512xf32>
    %93 = tpu.matmul %91, %92, %cst_54 {dimension_numbers = #tpu.dot_dimension_numbers<[1], [0], [0], [1], [0, 0, 1, 1], [], []>} : vector<8x128xf32>, vector<128x512xf32>, vector<8x512xf32> -> vector<8x512xf32>
    %94 = arith.addf %90, %93 : vector<8x512xf32>
    %95 = vector.extract_strided_slice %94 {offsets = [0, 0], sizes = [8, 128], strides = [1, 1]} : vector<8x512xf32> to vector<8x128xf32>
    %96 = arith.negf %95 : vector<8x128xf32>
    %97 = math.exp %96 : vector<8x128xf32>
    %cst_55 = arith.constant 1.000000e+00 : f32
    %98 = vector.broadcast %cst_55 : f32 to vector<8x128xf32>
    %99 = arith.addf %98, %97 : vector<8x128xf32>
    %100 = arith.divf %98, %99 : vector<8x128xf32>
    %101 = vector.extract_strided_slice %94 {offsets = [0, 128], sizes = [8, 128], strides = [1, 1]} : vector<8x512xf32> to vector<8x128xf32>
    %102 = arith.negf %101 : vector<8x128xf32>
    %103 = math.exp %102 : vector<8x128xf32>
    %cst_56 = arith.constant 1.000000e+00 : f32
    %104 = vector.broadcast %cst_56 : f32 to vector<8x128xf32>
    %105 = arith.addf %104, %103 : vector<8x128xf32>
    %106 = arith.divf %104, %105 : vector<8x128xf32>
    %107 = vector.extract_strided_slice %94 {offsets = [0, 256], sizes = [8, 128], strides = [1, 1]} : vector<8x512xf32> to vector<8x128xf32>
    %108 = math.tanh %107 : vector<8x128xf32>
    %109 = vector.extract_strided_slice %94 {offsets = [0, 384], sizes = [8, 128], strides = [1, 1]} : vector<8x512xf32> to vector<8x128xf32>
    %110 = arith.negf %109 : vector<8x128xf32>
    %111 = math.exp %110 : vector<8x128xf32>
    %cst_57 = arith.constant 1.000000e+00 : f32
    %112 = vector.broadcast %cst_57 : f32 to vector<8x128xf32>
    %113 = arith.addf %112, %111 : vector<8x128xf32>
    %114 = arith.divf %112, %113 : vector<8x128xf32>
    %c0_58 = arith.constant 0 : index
    %c0_59 = arith.constant 0 : index
    %115 = vector.load %arg14[%c0_58, %c0_59] : memref<8x128xf32, #tpu.memory_space<vmem>>, vector<8x128xf32>
    %116 = arith.mulf %106, %115 : vector<8x128xf32>
    %117 = arith.mulf %100, %108 : vector<8x128xf32>
    %118 = arith.addf %116, %117 : vector<8x128xf32>
    %119 = math.tanh %118 : vector<8x128xf32>
    %120 = arith.mulf %114, %119 : vector<8x128xf32>
    %c0_60 = arith.constant 0 : index
    %c0_61 = arith.constant 0 : index
    %121 = vector.load %arg14[%c0_60, %c0_61] : memref<8x128xf32, #tpu.memory_space<vmem>>, vector<8x128xf32>
    tpu.vector_store %arg14[%c0_60, %c0_61], %118 {strides = array<i32>} : memref<8x128xf32, #tpu.memory_space<vmem>>, vector<8x128xf32>,
    %c0_62 = arith.constant 0 : index
    %c0_63 = arith.constant 0 : index
    %122 = vector.load %arg13[%c0_62, %c0_63] : memref<8x128xf32, #tpu.memory_space<vmem>>, vector<8x128xf32>
    tpu.vector_store %arg13[%c0_62, %c0_63], %120 {strides = array<i32>} : memref<8x128xf32, #tpu.memory_space<vmem>>, vector<8x128xf32>,
    %123 = arith.index_cast %88 : i32 to index
    %c0_64 = arith.constant 0 : index
    %124 = vector.load %arg12[%123, %c0_64] : memref<64x128xf32, #tpu.memory_space<vmem>>, vector<8x128xf32>
    tpu.vector_store %arg12[%123, %c0_64], %120 {strides = array<i32>} : memref<64x128xf32, #tpu.memory_space<vmem>>, vector<8x128xf32>,
    %c3_i32 = arith.constant 3 : i32
    %c8_i32_65 = arith.constant 8 : i32
    %125 = arith.muli %c3_i32, %c8_i32_65 : i32
    %126 = tpu.assume_multiple %125, 8 : i32
    %127 = arith.index_cast %126 : i32 to index
    %c0_66 = arith.constant 0 : index
    %128 = vector.load %arg11[%127, %c0_66] : memref<64x512xf32, #tpu.memory_space<vmem>>, vector<8x512xf32>
    %c0_67 = arith.constant 0 : index
    %c0_68 = arith.constant 0 : index
    %129 = vector.load %arg13[%c0_67, %c0_68] : memref<8x128xf32, #tpu.memory_space<vmem>>, vector<8x128xf32>
    %c0_69 = arith.constant 0 : index
    %c0_70 = arith.constant 0 : index
    %130 = vector.load %arg2[%c0_69, %c0_70] : memref<128x512xf32, #tpu.memory_space<vmem>>, vector<128x512xf32>
    %cst_71 = arith.constant dense<0.000000e+00> : vector<8x512xf32>
    %131 = tpu.matmul %129, %130, %cst_71 {dimension_numbers = #tpu.dot_dimension_numbers<[1], [0], [0], [1], [0, 0, 1, 1], [], []>} : vector<8x128xf32>, vector<128x512xf32>, vector<8x512xf32> -> vector<8x512xf32>
    %132 = arith.addf %128, %131 : vector<8x512xf32>
    %133 = vector.extract_strided_slice %132 {offsets = [0, 0], sizes = [8, 128], strides = [1, 1]} : vector<8x512xf32> to vector<8x128xf32>
    %134 = arith.negf %133 : vector<8x128xf32>
    %135 = math.exp %134 : vector<8x128xf32>
    %cst_72 = arith.constant 1.000000e+00 : f32
    %136 = vector.broadcast %cst_72 : f32 to vector<8x128xf32>
    %137 = arith.addf %136, %135 : vector<8x128xf32>
    %138 = arith.divf %136, %137 : vector<8x128xf32>
    %139 = vector.extract_strided_slice %132 {offsets = [0, 128], sizes = [8, 128], strides = [1, 1]} : vector<8x512xf32> to vector<8x128xf32>
    %140 = arith.negf %139 : vector<8x128xf32>
    %141 = math.exp %140 : vector<8x128xf32>
    %cst_73 = arith.constant 1.000000e+00 : f32
    %142 = vector.broadcast %cst_73 : f32 to vector<8x128xf32>
    %143 = arith.addf %142, %141 : vector<8x128xf32>
    %144 = arith.divf %142, %143 : vector<8x128xf32>
    %145 = vector.extract_strided_slice %132 {offsets = [0, 256], sizes = [8, 128], strides = [1, 1]} : vector<8x512xf32> to vector<8x128xf32>
    %146 = math.tanh %145 : vector<8x128xf32>
    %147 = vector.extract_strided_slice %132 {offsets = [0, 384], sizes = [8, 128], strides = [1, 1]} : vector<8x512xf32> to vector<8x128xf32>
    %148 = arith.negf %147 : vector<8x128xf32>
    %149 = math.exp %148 : vector<8x128xf32>
    %cst_74 = arith.constant 1.000000e+00 : f32
    %150 = vector.broadcast %cst_74 : f32 to vector<8x128xf32>
    %151 = arith.addf %150, %149 : vector<8x128xf32>
    %152 = arith.divf %150, %151 : vector<8x128xf32>
    %c0_75 = arith.constant 0 : index
    %c0_76 = arith.constant 0 : index
    %153 = vector.load %arg14[%c0_75, %c0_76] : memref<8x128xf32, #tpu.memory_space<vmem>>, vector<8x128xf32>
    %154 = arith.mulf %144, %153 : vector<8x128xf32>
    %155 = arith.mulf %138, %146 : vector<8x128xf32>
    %156 = arith.addf %154, %155 : vector<8x128xf32>
    %157 = math.tanh %156 : vector<8x128xf32>
    %158 = arith.mulf %152, %157 : vector<8x128xf32>
    %c0_77 = arith.constant 0 : index
    %c0_78 = arith.constant 0 : index
    %159 = vector.load %arg14[%c0_77, %c0_78] : memref<8x128xf32, #tpu.memory_space<vmem>>, vector<8x128xf32>
    tpu.vector_store %arg14[%c0_77, %c0_78], %156 {strides = array<i32>} : memref<8x128xf32, #tpu.memory_space<vmem>>, vector<8x128xf32>,
    %c0_79 = arith.constant 0 : index
    %c0_80 = arith.constant 0 : index
    %160 = vector.load %arg13[%c0_79, %c0_80] : memref<8x128xf32, #tpu.memory_space<vmem>>, vector<8x128xf32>
    tpu.vector_store %arg13[%c0_79, %c0_80], %158 {strides = array<i32>} : memref<8x128xf32, #tpu.memory_space<vmem>>, vector<8x128xf32>,
    %161 = arith.index_cast %126 : i32 to index
    %c0_81 = arith.constant 0 : index
    %162 = vector.load %arg12[%161, %c0_81] : memref<64x128xf32, #tpu.memory_space<vmem>>, vector<8x128xf32>
    tpu.vector_store %arg12[%161, %c0_81], %158 {strides = array<i32>} : memref<64x128xf32, #tpu.memory_space<vmem>>, vector<8x128xf32>,
    %c4_i32 = arith.constant 4 : i32
    %c8_i32_82 = arith.constant 8 : i32
    %163 = arith.muli %c4_i32, %c8_i32_82 : i32
    %164 = tpu.assume_multiple %163, 8 : i32
    %165 = arith.index_cast %164 : i32 to index
    %c0_83 = arith.constant 0 : index
    %166 = vector.load %arg11[%165, %c0_83] : memref<64x512xf32, #tpu.memory_space<vmem>>, vector<8x512xf32>
    %c0_84 = arith.constant 0 : index
    %c0_85 = arith.constant 0 : index
    %167 = vector.load %arg13[%c0_84, %c0_85] : memref<8x128xf32, #tpu.memory_space<vmem>>, vector<8x128xf32>
    %c0_86 = arith.constant 0 : index
    %c0_87 = arith.constant 0 : index
    %168 = vector.load %arg2[%c0_86, %c0_87] : memref<128x512xf32, #tpu.memory_space<vmem>>, vector<128x512xf32>
    %cst_88 = arith.constant dense<0.000000e+00> : vector<8x512xf32>
    %169 = tpu.matmul %167, %168, %cst_88 {dimension_numbers = #tpu.dot_dimension_numbers<[1], [0], [0], [1], [0, 0, 1, 1], [], []>} : vector<8x128xf32>, vector<128x512xf32>, vector<8x512xf32> -> vector<8x512xf32>
    %170 = arith.addf %166, %169 : vector<8x512xf32>
    %171 = vector.extract_strided_slice %170 {offsets = [0, 0], sizes = [8, 128], strides = [1, 1]} : vector<8x512xf32> to vector<8x128xf32>
    %172 = arith.negf %171 : vector<8x128xf32>
    %173 = math.exp %172 : vector<8x128xf32>
    %cst_89 = arith.constant 1.000000e+00 : f32
    %174 = vector.broadcast %cst_89 : f32 to vector<8x128xf32>
    %175 = arith.addf %174, %173 : vector<8x128xf32>
    %176 = arith.divf %174, %175 : vector<8x128xf32>
    %177 = vector.extract_strided_slice %170 {offsets = [0, 128], sizes = [8, 128], strides = [1, 1]} : vector<8x512xf32> to vector<8x128xf32>
    %178 = arith.negf %177 : vector<8x128xf32>
    %179 = math.exp %178 : vector<8x128xf32>
    %cst_90 = arith.constant 1.000000e+00 : f32
    %180 = vector.broadcast %cst_90 : f32 to vector<8x128xf32>
    %181 = arith.addf %180, %179 : vector<8x128xf32>
    %182 = arith.divf %180, %181 : vector<8x128xf32>
    %183 = vector.extract_strided_slice %170 {offsets = [0, 256], sizes = [8, 128], strides = [1, 1]} : vector<8x512xf32> to vector<8x128xf32>
    %184 = math.tanh %183 : vector<8x128xf32>
    %185 = vector.extract_strided_slice %170 {offsets = [0, 384], sizes = [8, 128], strides = [1, 1]} : vector<8x512xf32> to vector<8x128xf32>
    %186 = arith.negf %185 : vector<8x128xf32>
    %187 = math.exp %186 : vector<8x128xf32>
    %cst_91 = arith.constant 1.000000e+00 : f32
    %188 = vector.broadcast %cst_91 : f32 to vector<8x128xf32>
    %189 = arith.addf %188, %187 : vector<8x128xf32>
    %190 = arith.divf %188, %189 : vector<8x128xf32>
    %c0_92 = arith.constant 0 : index
    %c0_93 = arith.constant 0 : index
    %191 = vector.load %arg14[%c0_92, %c0_93] : memref<8x128xf32, #tpu.memory_space<vmem>>, vector<8x128xf32>
    %192 = arith.mulf %182, %191 : vector<8x128xf32>
    %193 = arith.mulf %176, %184 : vector<8x128xf32>
    %194 = arith.addf %192, %193 : vector<8x128xf32>
    %195 = math.tanh %194 : vector<8x128xf32>
    %196 = arith.mulf %190, %195 : vector<8x128xf32>
    %c0_94 = arith.constant 0 : index
    %c0_95 = arith.constant 0 : index
    %197 = vector.load %arg14[%c0_94, %c0_95] : memref<8x128xf32, #tpu.memory_space<vmem>>, vector<8x128xf32>
    tpu.vector_store %arg14[%c0_94, %c0_95], %194 {strides = array<i32>} : memref<8x128xf32, #tpu.memory_space<vmem>>, vector<8x128xf32>,
    %c0_96 = arith.constant 0 : index
    %c0_97 = arith.constant 0 : index
    %198 = vector.load %arg13[%c0_96, %c0_97] : memref<8x128xf32, #tpu.memory_space<vmem>>, vector<8x128xf32>
    tpu.vector_store %arg13[%c0_96, %c0_97], %196 {strides = array<i32>} : memref<8x128xf32, #tpu.memory_space<vmem>>, vector<8x128xf32>,
    %199 = arith.index_cast %164 : i32 to index
    %c0_98 = arith.constant 0 : index
    %200 = vector.load %arg12[%199, %c0_98] : memref<64x128xf32, #tpu.memory_space<vmem>>, vector<8x128xf32>
    tpu.vector_store %arg12[%199, %c0_98], %196 {strides = array<i32>} : memref<64x128xf32, #tpu.memory_space<vmem>>, vector<8x128xf32>,
    %c5_i32 = arith.constant 5 : i32
    %c8_i32_99 = arith.constant 8 : i32
    %201 = arith.muli %c5_i32, %c8_i32_99 : i32
    %202 = tpu.assume_multiple %201, 8 : i32
    %203 = arith.index_cast %202 : i32 to index
    %c0_100 = arith.constant 0 : index
    %204 = vector.load %arg11[%203, %c0_100] : memref<64x512xf32, #tpu.memory_space<vmem>>, vector<8x512xf32>
    %c0_101 = arith.constant 0 : index
    %c0_102 = arith.constant 0 : index
    %205 = vector.load %arg13[%c0_101, %c0_102] : memref<8x128xf32, #tpu.memory_space<vmem>>, vector<8x128xf32>
    %c0_103 = arith.constant 0 : index
    %c0_104 = arith.constant 0 : index
    %206 = vector.load %arg2[%c0_103, %c0_104] : memref<128x512xf32, #tpu.memory_space<vmem>>, vector<128x512xf32>
    %cst_105 = arith.constant dense<0.000000e+00> : vector<8x512xf32>
    %207 = tpu.matmul %205, %206, %cst_105 {dimension_numbers = #tpu.dot_dimension_numbers<[1], [0], [0], [1], [0, 0, 1, 1], [], []>} : vector<8x128xf32>, vector<128x512xf32>, vector<8x512xf32> -> vector<8x512xf32>
    %208 = arith.addf %204, %207 : vector<8x512xf32>
    %209 = vector.extract_strided_slice %208 {offsets = [0, 0], sizes = [8, 128], strides = [1, 1]} : vector<8x512xf32> to vector<8x128xf32>
    %210 = arith.negf %209 : vector<8x128xf32>
    %211 = math.exp %210 : vector<8x128xf32>
    %cst_106 = arith.constant 1.000000e+00 : f32
    %212 = vector.broadcast %cst_106 : f32 to vector<8x128xf32>
    %213 = arith.addf %212, %211 : vector<8x128xf32>
    %214 = arith.divf %212, %213 : vector<8x128xf32>
    %215 = vector.extract_strided_slice %208 {offsets = [0, 128], sizes = [8, 128], strides = [1, 1]} : vector<8x512xf32> to vector<8x128xf32>
    %216 = arith.negf %215 : vector<8x128xf32>
    %217 = math.exp %216 : vector<8x128xf32>
    %cst_107 = arith.constant 1.000000e+00 : f32
    %218 = vector.broadcast %cst_107 : f32 to vector<8x128xf32>
    %219 = arith.addf %218, %217 : vector<8x128xf32>
    %220 = arith.divf %218, %219 : vector<8x128xf32>
    %221 = vector.extract_strided_slice %208 {offsets = [0, 256], sizes = [8, 128], strides = [1, 1]} : vector<8x512xf32> to vector<8x128xf32>
    %222 = math.tanh %221 : vector<8x128xf32>
    %223 = vector.extract_strided_slice %208 {offsets = [0, 384], sizes = [8, 128], strides = [1, 1]} : vector<8x512xf32> to vector<8x128xf32>
    %224 = arith.negf %223 : vector<8x128xf32>
    %225 = math.exp %224 : vector<8x128xf32>
    %cst_108 = arith.constant 1.000000e+00 : f32
    %226 = vector.broadcast %cst_108 : f32 to vector<8x128xf32>
    %227 = arith.addf %226, %225 : vector<8x128xf32>
    %228 = arith.divf %226, %227 : vector<8x128xf32>
    %c0_109 = arith.constant 0 : index
    %c0_110 = arith.constant 0 : index
    %229 = vector.load %arg14[%c0_109, %c0_110] : memref<8x128xf32, #tpu.memory_space<vmem>>, vector<8x128xf32>
    %230 = arith.mulf %220, %229 : vector<8x128xf32>
    %231 = arith.mulf %214, %222 : vector<8x128xf32>
    %232 = arith.addf %230, %231 : vector<8x128xf32>
    %233 = math.tanh %232 : vector<8x128xf32>
    %234 = arith.mulf %228, %233 : vector<8x128xf32>
    %c0_111 = arith.constant 0 : index
    %c0_112 = arith.constant 0 : index
    %235 = vector.load %arg14[%c0_111, %c0_112] : memref<8x128xf32, #tpu.memory_space<vmem>>, vector<8x128xf32>
    tpu.vector_store %arg14[%c0_111, %c0_112], %232 {strides = array<i32>} : memref<8x128xf32, #tpu.memory_space<vmem>>, vector<8x128xf32>,
    %c0_113 = arith.constant 0 : index
    %c0_114 = arith.constant 0 : index
    %236 = vector.load %arg13[%c0_113, %c0_114] : memref<8x128xf32, #tpu.memory_space<vmem>>, vector<8x128xf32>
    tpu.vector_store %arg13[%c0_113, %c0_114], %234 {strides = array<i32>} : memref<8x128xf32, #tpu.memory_space<vmem>>, vector<8x128xf32>,
    %237 = arith.index_cast %202 : i32 to index
    %c0_115 = arith.constant 0 : index
    %238 = vector.load %arg12[%237, %c0_115] : memref<64x128xf32, #tpu.memory_space<vmem>>, vector<8x128xf32>
    tpu.vector_store %arg12[%237, %c0_115], %234 {strides = array<i32>} : memref<64x128xf32, #tpu.memory_space<vmem>>, vector<8x128xf32>,
    %c6_i32 = arith.constant 6 : i32
    %c8_i32_116 = arith.constant 8 : i32
    %239 = arith.muli %c6_i32, %c8_i32_116 : i32
    %240 = tpu.assume_multiple %239, 8 : i32
    %241 = arith.index_cast %240 : i32 to index
    %c0_117 = arith.constant 0 : index
    %242 = vector.load %arg11[%241, %c0_117] : memref<64x512xf32, #tpu.memory_space<vmem>>, vector<8x512xf32>
    %c0_118 = arith.constant 0 : index
    %c0_119 = arith.constant 0 : index
    %243 = vector.load %arg13[%c0_118, %c0_119] : memref<8x128xf32, #tpu.memory_space<vmem>>, vector<8x128xf32>
    %c0_120 = arith.constant 0 : index
    %c0_121 = arith.constant 0 : index
    %244 = vector.load %arg2[%c0_120, %c0_121] : memref<128x512xf32, #tpu.memory_space<vmem>>, vector<128x512xf32>
    %cst_122 = arith.constant dense<0.000000e+00> : vector<8x512xf32>
    %245 = tpu.matmul %243, %244, %cst_122 {dimension_numbers = #tpu.dot_dimension_numbers<[1], [0], [0], [1], [0, 0, 1, 1], [], []>} : vector<8x128xf32>, vector<128x512xf32>, vector<8x512xf32> -> vector<8x512xf32>
    %246 = arith.addf %242, %245 : vector<8x512xf32>
    %247 = vector.extract_strided_slice %246 {offsets = [0, 0], sizes = [8, 128], strides = [1, 1]} : vector<8x512xf32> to vector<8x128xf32>
    %248 = arith.negf %247 : vector<8x128xf32>
    %249 = math.exp %248 : vector<8x128xf32>
    %cst_123 = arith.constant 1.000000e+00 : f32
    %250 = vector.broadcast %cst_123 : f32 to vector<8x128xf32>
    %251 = arith.addf %250, %249 : vector<8x128xf32>
    %252 = arith.divf %250, %251 : vector<8x128xf32>
    %253 = vector.extract_strided_slice %246 {offsets = [0, 128], sizes = [8, 128], strides = [1, 1]} : vector<8x512xf32> to vector<8x128xf32>
    %254 = arith.negf %253 : vector<8x128xf32>
    %255 = math.exp %254 : vector<8x128xf32>
    %cst_124 = arith.constant 1.000000e+00 : f32
    %256 = vector.broadcast %cst_124 : f32 to vector<8x128xf32>
    %257 = arith.addf %256, %255 : vector<8x128xf32>
    %258 = arith.divf %256, %257 : vector<8x128xf32>
    %259 = vector.extract_strided_slice %246 {offsets = [0, 256], sizes = [8, 128], strides = [1, 1]} : vector<8x512xf32> to vector<8x128xf32>
    %260 = math.tanh %259 : vector<8x128xf32>
    %261 = vector.extract_strided_slice %246 {offsets = [0, 384], sizes = [8, 128], strides = [1, 1]} : vector<8x512xf32> to vector<8x128xf32>
    %262 = arith.negf %261 : vector<8x128xf32>
    %263 = math.exp %262 : vector<8x128xf32>
    %cst_125 = arith.constant 1.000000e+00 : f32
    %264 = vector.broadcast %cst_125 : f32 to vector<8x128xf32>
    %265 = arith.addf %264, %263 : vector<8x128xf32>
    %266 = arith.divf %264, %265 : vector<8x128xf32>
    %c0_126 = arith.constant 0 : index
    %c0_127 = arith.constant 0 : index
    %267 = vector.load %arg14[%c0_126, %c0_127] : memref<8x128xf32, #tpu.memory_space<vmem>>, vector<8x128xf32>
    %268 = arith.mulf %258, %267 : vector<8x128xf32>
    %269 = arith.mulf %252, %260 : vector<8x128xf32>
    %270 = arith.addf %268, %269 : vector<8x128xf32>
    %271 = math.tanh %270 : vector<8x128xf32>
    %272 = arith.mulf %266, %271 : vector<8x128xf32>
    %c0_128 = arith.constant 0 : index
    %c0_129 = arith.constant 0 : index
    %273 = vector.load %arg14[%c0_128, %c0_129] : memref<8x128xf32, #tpu.memory_space<vmem>>, vector<8x128xf32>
    tpu.vector_store %arg14[%c0_128, %c0_129], %270 {strides = array<i32>} : memref<8x128xf32, #tpu.memory_space<vmem>>, vector<8x128xf32>,
    %c0_130 = arith.constant 0 : index
    %c0_131 = arith.constant 0 : index
    %274 = vector.load %arg13[%c0_130, %c0_131] : memref<8x128xf32, #tpu.memory_space<vmem>>, vector<8x128xf32>
    tpu.vector_store %arg13[%c0_130, %c0_131], %272 {strides = array<i32>} : memref<8x128xf32, #tpu.memory_space<vmem>>, vector<8x128xf32>,
    %275 = arith.index_cast %240 : i32 to index
    %c0_132 = arith.constant 0 : index
    %276 = vector.load %arg12[%275, %c0_132] : memref<64x128xf32, #tpu.memory_space<vmem>>, vector<8x128xf32>
    tpu.vector_store %arg12[%275, %c0_132], %272 {strides = array<i32>} : memref<64x128xf32, #tpu.memory_space<vmem>>, vector<8x128xf32>,
    %c7_i32 = arith.constant 7 : i32
    %c8_i32_133 = arith.constant 8 : i32
    %277 = arith.muli %c7_i32, %c8_i32_133 : i32
    %278 = tpu.assume_multiple %277, 8 : i32
    %279 = arith.index_cast %278 : i32 to index
    %c0_134 = arith.constant 0 : index
    %280 = vector.load %arg11[%279, %c0_134] : memref<64x512xf32, #tpu.memory_space<vmem>>, vector<8x512xf32>
    %c0_135 = arith.constant 0 : index
    %c0_136 = arith.constant 0 : index
    %281 = vector.load %arg13[%c0_135, %c0_136] : memref<8x128xf32, #tpu.memory_space<vmem>>, vector<8x128xf32>
    %c0_137 = arith.constant 0 : index
    %c0_138 = arith.constant 0 : index
    %282 = vector.load %arg2[%c0_137, %c0_138] : memref<128x512xf32, #tpu.memory_space<vmem>>, vector<128x512xf32>
    %cst_139 = arith.constant dense<0.000000e+00> : vector<8x512xf32>
    %283 = tpu.matmul %281, %282, %cst_139 {dimension_numbers = #tpu.dot_dimension_numbers<[1], [0], [0], [1], [0, 0, 1, 1], [], []>} : vector<8x128xf32>, vector<128x512xf32>, vector<8x512xf32> -> vector<8x512xf32>
    %284 = arith.addf %280, %283 : vector<8x512xf32>
    %285 = vector.extract_strided_slice %284 {offsets = [0, 0], sizes = [8, 128], strides = [1, 1]} : vector<8x512xf32> to vector<8x128xf32>
    %286 = arith.negf %285 : vector<8x128xf32>
    %287 = math.exp %286 : vector<8x128xf32>
    %cst_140 = arith.constant 1.000000e+00 : f32
    %288 = vector.broadcast %cst_140 : f32 to vector<8x128xf32>
    %289 = arith.addf %288, %287 : vector<8x128xf32>
    %290 = arith.divf %288, %289 : vector<8x128xf32>
    %291 = vector.extract_strided_slice %284 {offsets = [0, 128], sizes = [8, 128], strides = [1, 1]} : vector<8x512xf32> to vector<8x128xf32>
    %292 = arith.negf %291 : vector<8x128xf32>
    %293 = math.exp %292 : vector<8x128xf32>
    %cst_141 = arith.constant 1.000000e+00 : f32
    %294 = vector.broadcast %cst_141 : f32 to vector<8x128xf32>
    %295 = arith.addf %294, %293 : vector<8x128xf32>
    %296 = arith.divf %294, %295 : vector<8x128xf32>
    %297 = vector.extract_strided_slice %284 {offsets = [0, 256], sizes = [8, 128], strides = [1, 1]} : vector<8x512xf32> to vector<8x128xf32>
    %298 = math.tanh %297 : vector<8x128xf32>
    %299 = vector.extract_strided_slice %284 {offsets = [0, 384], sizes = [8, 128], strides = [1, 1]} : vector<8x512xf32> to vector<8x128xf32>
    %300 = arith.negf %299 : vector<8x128xf32>
    %301 = math.exp %300 : vector<8x128xf32>
    %cst_142 = arith.constant 1.000000e+00 : f32
    %302 = vector.broadcast %cst_142 : f32 to vector<8x128xf32>
    %303 = arith.addf %302, %301 : vector<8x128xf32>
    %304 = arith.divf %302, %303 : vector<8x128xf32>
    %c0_143 = arith.constant 0 : index
    %c0_144 = arith.constant 0 : index
    %305 = vector.load %arg14[%c0_143, %c0_144] : memref<8x128xf32, #tpu.memory_space<vmem>>, vector<8x128xf32>
    %306 = arith.mulf %296, %305 : vector<8x128xf32>
    %307 = arith.mulf %290, %298 : vector<8x128xf32>
    %308 = arith.addf %306, %307 : vector<8x128xf32>
    %309 = math.tanh %308 : vector<8x128xf32>
    %310 = arith.mulf %304, %309 : vector<8x128xf32>
    %c0_145 = arith.constant 0 : index
    %c0_146 = arith.constant 0 : index
    %311 = vector.load %arg14[%c0_145, %c0_146] : memref<8x128xf32, #tpu.memory_space<vmem>>, vector<8x128xf32>
    tpu.vector_store %arg14[%c0_145, %c0_146], %308 {strides = array<i32>} : memref<8x128xf32, #tpu.memory_space<vmem>>, vector<8x128xf32>,
    %c0_147 = arith.constant 0 : index
    %c0_148 = arith.constant 0 : index
    %312 = vector.load %arg13[%c0_147, %c0_148] : memref<8x128xf32, #tpu.memory_space<vmem>>, vector<8x128xf32>
    tpu.vector_store %arg13[%c0_147, %c0_148], %310 {strides = array<i32>} : memref<8x128xf32, #tpu.memory_space<vmem>>, vector<8x128xf32>,
    %313 = arith.index_cast %278 : i32 to index
    %c0_149 = arith.constant 0 : index
    %314 = vector.load %arg12[%313, %c0_149] : memref<64x128xf32, #tpu.memory_space<vmem>>, vector<8x128xf32>
    tpu.vector_store %arg12[%313, %c0_149], %310 {strides = array<i32>} : memref<64x128xf32, #tpu.memory_space<vmem>>, vector<8x128xf32>,
    %c8_i32_150 = arith.constant 8 : i32
    %c0_151 = arith.constant 0 : index
    %c0_152 = arith.constant 0 : index
    %315 = vector.load %arg13[%c0_151, %c0_152] : memref<8x128xf32, #tpu.memory_space<vmem>>, vector<8x128xf32>
    %c0_153 = arith.constant 0 : index
    %c0_154 = arith.constant 0 : index
    %316 = vector.load %arg9[%c0_153, %c0_154] : memref<8x128xf32, #tpu.memory_space<vmem>>, vector<8x128xf32>
    tpu.vector_store %arg9[%c0_153, %c0_154], %315 {strides = array<i32>} : memref<8x128xf32, #tpu.memory_space<vmem>>, vector<8x128xf32>,
    %c0_155 = arith.constant 0 : index
    %c0_156 = arith.constant 0 : index
    %317 = vector.load %arg14[%c0_155, %c0_156] : memref<8x128xf32, #tpu.memory_space<vmem>>, vector<8x128xf32>
    %c0_157 = arith.constant 0 : index
    %c0_158 = arith.constant 0 : index
    %318 = vector.load %arg10[%c0_157, %c0_158] : memref<8x128xf32, #tpu.memory_space<vmem>>, vector<8x128xf32>
    tpu.vector_store %arg10[%c0_157, %c0_158], %317 {strides = array<i32>} : memref<8x128xf32, #tpu.memory_space<vmem>>, vector<8x128xf32>,
    %c0_159 = arith.constant 0 : index
    %c0_160 = arith.constant 0 : index
    %319 = vector.load %arg12[%c0_159, %c0_160] : memref<64x128xf32, #tpu.memory_space<vmem>>, vector<64x128xf32>
    %c0_161 = arith.constant 0 : index
    %c0_162 = arith.constant 0 : index
    %320 = vector.load %arg4[%c0_161, %c0_162] : memref<128x128xf32, #tpu.memory_space<vmem>>, vector<128x128xf32>
    %cst_163 = arith.constant dense<0.000000e+00> : vector<64x128xf32>
    %321 = tpu.matmul %319, %320, %cst_163 {dimension_numbers = #tpu.dot_dimension_numbers<[1], [0], [0], [1], [0, 0, 1, 1], [], []>} : vector<64x128xf32>, vector<128x128xf32>, vector<64x128xf32> -> vector<64x128xf32>
    %c0_164 = arith.constant 0 : index
    %c0_165 = arith.constant 0 : index
    %322 = vector.load %arg5[%c0_164, %c0_165] : memref<1x128xf32, #tpu.memory_space<vmem>>, vector<1x128xf32>
    %323 = vector.broadcast %322 : vector<1x128xf32> to vector<64x128xf32>
    %324 = arith.addf %321, %323 : vector<64x128xf32>
    %c0_166 = arith.constant 0 : index
    %c0_167 = arith.constant 0 : index
    %325 = vector.load %arg8[%c0_166, %c0_167] : memref<64x128xf32, #tpu.memory_space<vmem>>, vector<64x128xf32>
    tpu.vector_store %arg8[%c0_166, %c0_167], %324 {strides = array<i32>} : memref<64x128xf32, #tpu.memory_space<vmem>>, vector<64x128xf32>,
    return
  }
}

</mosaic_0001>

<llo_original>
// kernel: lstm_decoder_forward.1
$region0: #{lstm_decoder_forward.1}
  #allocation0 [shape = 'u32[]', space=smem, size = 0x4, offset = 0x4, fixed_abs, tag = 'smem constant byte address 0x4 - core index']
  #allocation1 [shape = 'u32[144,128]{1,0:T(1,128)}', space=vmem, size = 0x12000, scoped, tag = 'internal scratch']
  #allocation2 [shape = 'f32[64,512]{1,0:T(8,128)}', space=vmem, size = 0x20000, scoped, tag = 'scratch operand']
  #allocation3 [shape = 'f32[64,128]{1,0:T(8,128)}', space=vmem, size = 0x8000, scoped, tag = 'scratch operand']
  #allocation4 [shape = 'f32[8,128]{1,0:T(8,128)}', space=vmem, size = 0x1000, scoped, tag = 'scratch operand']
  #allocation5 [shape = 'f32[8,128]{1,0:T(8,128)}', space=vmem, size = 0x1000, scoped, tag = 'scratch operand']
  %s0 = inlined_call_operand.vmem [shape: f32[64,64], index: 0, kind: input, shape index: {}]
  %s1 = inlined_call_operand.vmem [shape: f32[64,512], index: 1, kind: input, shape index: {}]
  %s2 = inlined_call_operand.vmem [shape: f32[128,512], index: 2, kind: input, shape index: {}]
  %s3 = inlined_call_operand.vmem [shape: f32[1,512], index: 3, kind: input, shape index: {}]
  %s4 = inlined_call_operand.vmem [shape: f32[128,128], index: 4, kind: input, shape index: {}]
  %s5 = inlined_call_operand.vmem [shape: f32[1,128], index: 5, kind: input, shape index: {}]
  %s6 = inlined_call_operand.vmem [shape: f32[8,128], index: 6, kind: input, shape index: {}]
  %s7 = inlined_call_operand.vmem [shape: f32[8,128], index: 7, kind: input, shape index: {}]
  %s8 = inlined_call_operand.vmem [shape: f32[64,128], index: 8, kind: output, shape index: {0}]
  %s9 = inlined_call_operand.vmem [shape: f32[8,128], index: 9, kind: output, shape index: {1}]
  %s10 = inlined_call_operand.vmem [shape: f32[8,128], index: 10, kind: output, shape index: {2}]
  %11 = xla_tuple %s8, %s9, %s10
  %s12 = sld [smem:[#allocation0]]
  $region58: #{lstm_decoder_forward.1} parent=0
    _
  %s14 = ssub.s32 1, %s12
  %s15 = scalar_select 0, %s14, %s12
  // Predicated region
  $region2: #{lstm_decoder_forward.1} parent=0 // pred_check
    _
  $region3: #{lstm_decoder_forward.1} parent=0 // pred_check_branch
    %17 = sbr.rel (0) target = $region5
  $region4: #{lstm_decoder_forward.1} parent=0 // pred_region
    _
  $region5: #{lstm_decoder_forward.1} parent=0 // pred_fallthru
    _
  // Predicated region
  $region6: #{lstm_decoder_forward.1} parent=0 // pred_check
    _
  $region7: #{lstm_decoder_forward.1} parent=0 // pred_check_branch
    %19 = sbr.rel (0) target = $region9
  $region8: #{lstm_decoder_forward.1} parent=0 // pred_region
    _
  $region9: #{lstm_decoder_forward.1} parent=0 // pred_fallthru
    _
  // Predicated region
  $region10: #{lstm_decoder_forward.1} parent=0 // pred_check
    _
  $region11: #{lstm_decoder_forward.1} parent=0 // pred_check_branch
    %21 = sbr.rel (0) target = $region13
  $region12: #{lstm_decoder_forward.1} parent=0 // pred_region
    _
  $region13: #{lstm_decoder_forward.1} parent=0 // pred_fallthru
    _
  // Predicated region
  $region14: #{lstm_decoder_forward.1} parent=0 // pred_check
    _
  $region15: #{lstm_decoder_forward.1} parent=0 // pred_check_branch
    %23 = sbr.rel (0) target = $region17
  $region16: #{lstm_decoder_forward.1} parent=0 // pred_region
    _
  $region17: #{lstm_decoder_forward.1} parent=0 // pred_fallthru
    _
  // Predicated region
  $region18: #{lstm_decoder_forward.1} parent=0 // pred_check
    _
  $region19: #{lstm_decoder_forward.1} parent=0 // pred_check_branch
    %25 = sbr.rel (0) target = $region21
  $region20: #{lstm_decoder_forward.1} parent=0 // pred_region
    _
  $region21: #{lstm_decoder_forward.1} parent=0 // pred_fallthru
    _
  // Predicated region
  $region22: #{lstm_decoder_forward.1} parent=0 // pred_check
    _
  $region23: #{lstm_decoder_forward.1} parent=0 // pred_check_branch
    %27 = sbr.rel (0) target = $region25
  $region24: #{lstm_decoder_forward.1} parent=0 // pred_region
    _
  $region25: #{lstm_decoder_forward.1} parent=0 // pred_fallthru
    _
  // Predicated region
  $region26: #{lstm_decoder_forward.1} parent=0 // pred_check
    _
  $region27: #{lstm_decoder_forward.1} parent=0 // pred_check_branch
    %29 = sbr.rel (0) target = $region29
  $region28: #{lstm_decoder_forward.1} parent=0 // pred_region
    _
  $region29: #{lstm_decoder_forward.1} parent=0 // pred_fallthru
    _
  // Predicated region
  $region30: #{lstm_decoder_forward.1} parent=0 // pred_check
    _
  $region31: #{lstm_decoder_forward.1} parent=0 // pred_check_branch
    %31 = sbr.rel (0) target = $region33
  $region32: #{lstm_decoder_forward.1} parent=0 // pred_region
    _
  $region33: #{lstm_decoder_forward.1} parent=0 // pred_fallthru
    _
  %v32 = vld [vmem:[%s0] sm:$0xff]
  %v33 = vld [vmem:[%s0 + $0x8] sm:$0xff]
  %v34 = vld [vmem:[%s0 + $0x10] sm:$0xff]
  %v35 = vld [vmem:[%s0 + $0x18] sm:$0xff]
  %v36 = vld [vmem:[%s0 + $0x20] sm:$0xff]
  %v37 = vld [vmem:[%s0 + $0x28] sm:$0xff]
  %v38 = vld [vmem:[%s0 + $0x30] sm:$0xff]
  %v39 = vld [vmem:[%s0 + $0x38] sm:$0xff]
  %v40 = vld [vmem:[%s1] sm:$0xff]
  %v41 = vld [vmem:[%s1 + $0x8] sm:$0xff]
  %v42 = vld [vmem:[%s1 + $0x10] sm:$0xff]
  %v43 = vld [vmem:[%s1 + $0x18] sm:$0xff]
  %v44 = vld [vmem:[%s1 + $0x20] sm:$0xff]
  %v45 = vld [vmem:[%s1 + $0x28] sm:$0xff]
  %v46 = vld [vmem:[%s1 + $0x30] sm:$0xff]
  %v47 = vld [vmem:[%s1 + $0x38] sm:$0xff]
  %v48 = vld [vmem:[%s1 + $0x40] sm:$0xff]
  %v49 = vld [vmem:[%s1 + $0x48] sm:$0xff]
  %v50 = vld [vmem:[%s1 + $0x50] sm:$0xff]
  %v51 = vld [vmem:[%s1 + $0x58] sm:$0xff]
  %v52 = vld [vmem:[%s1 + $0x60] sm:$0xff]
  %v53 = vld [vmem:[%s1 + $0x68] sm:$0xff]
  %v54 = vld [vmem:[%s1 + $0x70] sm:$0xff]
  %v55 = vld [vmem:[%s1 + $0x78] sm:$0xff]
  %v56 = vld [vmem:[%s1 + $0x80] sm:$0xff]
  %v57 = vld [vmem:[%s1 + $0x88] sm:$0xff]
  %v58 = vld [vmem:[%s1 + $0x90] sm:$0xff]
  %v59 = vld [vmem:[%s1 + $0x98] sm:$0xff]
  %v60 = vld [vmem:[%s1 + $0xa0] sm:$0xff]
  %v61 = vld [vmem:[%s1 + $0xa8] sm:$0xff]
  %v62 = vld [vmem:[%s1 + $0xb0] sm:$0xff]
  %v63 = vld [vmem:[%s1 + $0xb8] sm:$0xff]
  %v64 = vld [vmem:[%s1 + $0xc0] sm:$0xff]
  %v65 = vld [vmem:[%s1 + $0xc8] sm:$0xff]
  %v66 = vld [vmem:[%s1 + $0xd0] sm:$0xff]
  %v67 = vld [vmem:[%s1 + $0xd8] sm:$0xff]
  %v68 = vld [vmem:[%s1 + $0xe0] sm:$0xff]
  %v69 = vld [vmem:[%s1 + $0xe8] sm:$0xff]
  %v70 = vld [vmem:[%s1 + $0xf0] sm:$0xff]
  %v71 = vld [vmem:[%s1 + $0xf8] sm:$0xff]
  %v72 = vld [vmem:[%s3] sm:$0xf]
  %v74 = vlaneseq
  %v75 = vshrl.u32 %v74, 7
  %v76 = vsub.s32 0, %v75
  %v77 = vrot.slane %v72, %v76
  %v78 = vlaneseq
  %v79 = vshrl.u32 %v78, 7
  %v80 = vsub.s32 1, %v79
  %v81 = vrot.slane %v72, %v80
  %v82 = vlaneseq
  %v83 = vshrl.u32 %v82, 7
  %v84 = vsub.s32 2, %v83
  %v85 = vrot.slane %v72, %v84
  %v86 = vlaneseq
  %v87 = vshrl.u32 %v86, 7
  %v88 = vsub.s32 3, %v87
  %v89 = vrot.slane %v72, %v88
  %vm94 = vcmask 523264
  %v96 = vsel %vm94, %v32, 0
  %v99 = vsel %vm94, %v33, 0
  %v102 = vsel %vm94, %v34, 0
  %v105 = vsel %vm94, %v35, 0
  %v108 = vsel %vm94, %v36, 0
  %v111 = vsel %vm94, %v37, 0
  %v114 = vsel %vm94, %v38, 0
  %v117 = vsel %vm94, %v39, 0
  %119 = vmatprep.subr.mxu0 0.0
  %120 = vmatpush1.msra.mxu0 0.0
  %121 = vmatprep.subr.mxu0 0.0
  %122 = vmatpush1.msra.mxu0 0.0
  %123 = vmatprep.subr.mxu0 0.0
  %124 = vmatpush1.msra.mxu0 0.0
  %125 = vmatprep.subr.mxu0 0.0
  %126 = vmatpush1.msra.mxu0 0.0
  %127 = vmatprep.subr.mxu0 0.0
  %128 = vmatpush1.msra.mxu0 0.0
  %129 = vmatprep.subr.mxu0 0.0
  %130 = vmatpush1.msra.mxu0 0.0
  %131 = vmatprep.subr.mxu0 0.0
  %132 = vmatpush1.msra.mxu0 0.0
  %133 = vmatprep.subr.mxu0 0.0
  %134 = vmatpush1.msra.mxu0 0.0
  %135 = vmatprep.subr.mxu0 %v69
  %136 = vmatpush1.msra.mxu0 %v68
  %137 = vmatprep.subr.mxu0 %v65
  %138 = vmatpush1.msra.mxu0 %v64
  %139 = vmatprep.subr.mxu0 %v61
  %140 = vmatpush1.msra.mxu0 %v60
  %141 = vmatprep.subr.mxu0 %v57
  %142 = vmatpush1.msra.mxu0 %v56
  %143 = vmatprep.subr.mxu0 %v53
  %144 = vmatpush1.msra.mxu0 %v52
  %145 = vmatprep.subr.mxu0 %v49
  %146 = vmatpush1.msra.mxu0 %v48
  %147 = vmatprep.subr.mxu0 %v45
  %148 = vmatpush1.msra.mxu0 %v44
  %149 = vmatprep.subr.mxu0 %v41
  %150 = vmatpush1.msra.mxu0 %v40
  %151 = vmatprep.subr.mxu0 0.0
  %152 = vmatpush2.msra.mxu0 0.0
  %153 = vmatprep.subr.mxu0 0.0
  %154 = vmatpush2.msra.mxu0 0.0
  %155 = vmatprep.subr.mxu0 0.0
  %156 = vmatpush2.msra.mxu0 0.0
  %157 = vmatprep.subr.mxu0 0.0
  %158 = vmatpush2.msra.mxu0 0.0
  %159 = vmatprep.subr.mxu0 0.0
  %160 = vmatpush2.msra.mxu0 0.0
  %161 = vmatprep.subr.mxu0 0.0
  %162 = vmatpush2.msra.mxu0 0.0
  %163 = vmatprep.subr.mxu0 0.0
  %164 = vmatpush2.msra.mxu0 0.0
  %165 = vmatprep.subr.mxu0 0.0
  %166 = vmatpush2.msra.mxu0 0.0
  %167 = vmatprep.subr.mxu0 0.0
  %168 = vmatpush2.msra.mxu0 0.0
  %169 = vmatprep.subr.mxu0 0.0
  %170 = vmatpush2.msra.mxu0 0.0
  %171 = vmatprep.subr.mxu0 0.0
  %172 = vmatpush2.msra.mxu0 0.0
  %173 = vmatprep.subr.mxu0 0.0
  %174 = vmatpush2.msra.mxu0 0.0
  %175 = vmatprep.subr.mxu0 0.0
  %176 = vmatpush2.msra.mxu0 0.0
  %177 = vmatprep.subr.mxu0 0.0
  %178 = vmatpush2.msra.mxu0 0.0
  %179 = vmatprep.subr.mxu0 0.0
  %180 = vmatpush2.msra.mxu0 0.0
  %181 = vmatprep.subr.mxu0 0.0
  %182 = vmatpush2.msra.mxu0 0.0
  %183 = vmatprep.mubr.f32.mxu0 0.0
  %184 = vmatmul.mubr.f32.gmra.mxu0 %v96
  %v185 = vpop.f32.mrf.mxu0
  %v186 = vadd.f32 %v77, %v185
  %v187 = vpop.f32.mrf.mxu0
  %v188 = vadd.f32 %v81, %v187
  %189 = vmatprep.mubr.f32.mxu0 0.0
  %190 = vmatmul.mubr.f32.gmra.mxu0 %v99
  %v191 = vpop.f32.mrf.mxu0
  %v192 = vadd.f32 %v77, %v191
  %v193 = vpop.f32.mrf.mxu0
  %v194 = vadd.f32 %v81, %v193
  %195 = vmatprep.mubr.f32.mxu0 0.0
  %196 = vmatmul.mubr.f32.gmra.mxu0 %v102
  %v197 = vpop.f32.mrf.mxu0
  %v198 = vadd.f32 %v77, %v197
  %v199 = vpop.f32.mrf.mxu0
  %v200 = vadd.f32 %v81, %v199
  %201 = vmatprep.mubr.f32.mxu0 0.0
  %202 = vmatmul.mubr.f32.gmra.mxu0 %v105
  %v203 = vpop.f32.mrf.mxu0
  %v204 = vadd.f32 %v77, %v203
  %v205 = vpop.f32.mrf.mxu0
  %v206 = vadd.f32 %v81, %v205
  %207 = vmatprep.mubr.f32.mxu0 0.0
  %208 = vmatmul.mubr.f32.gmra.mxu0 %v108
  %v209 = vpop.f32.mrf.mxu0
  %v210 = vadd.f32 %v77, %v209
  %v211 = vpop.f32.mrf.mxu0
  %v212 = vadd.f32 %v81, %v211
  %213 = vmatprep.mubr.f32.mxu0 0.0
  %214 = vmatmul.mubr.f32.gmra.mxu0 %v111
  %v215 = vpop.f32.mrf.mxu0
  %v216 = vadd.f32 %v77, %v215
  %v217 = vpop.f32.mrf.mxu0
  %v218 = vadd.f32 %v81, %v217
  %219 = vmatprep.mubr.f32.mxu0 0.0
  %220 = vmatmul.mubr.f32.gmra.mxu0 %v114
  %v221 = vpop.f32.mrf.mxu0
  %v222 = vadd.f32 %v77, %v221
  %v223 = vpop.f32.mrf.mxu0
  %v224 = vadd.f32 %v81, %v223
  %225 = vmatprep.mubr.f32.mxu0 0.0
  %226 = vmatmul.mubr.f32.gmra.mxu0 %v117
  %v227 = vpop.f32.mrf.mxu0
  %v228 = vadd.f32 %v77, %v227
  %v229 = vpop.f32.mrf.mxu0
  %v230 = vadd.f32 %v81, %v229
  %231 = vdwg.mxu0
  %232 = vmatprep.subr.mxu0 0.0
  %233 = vmatpush1.msra.mxu0 0.0
  %234 = vmatprep.subr.mxu0 0.0
  %235 = vmatpush1.msra.mxu0 0.0
  %236 = vmatprep.subr.mxu0 0.0
  %237 = vmatpush1.msra.mxu0 0.0
  %238 = vmatprep.subr.mxu0 0.0
  %239 = vmatpush1.msra.mxu0 0.0
  %240 = vmatprep.subr.mxu0 0.0
  %241 = vmatpush1.msra.mxu0 0.0
  %242 = vmatprep.subr.mxu0 0.0
  %243 = vmatpush1.msra.mxu0 0.0
  %244 = vmatprep.subr.mxu0 0.0
  %245 = vmatpush1.msra.mxu0 0.0
  %246 = vmatprep.subr.mxu0 0.0
  %247 = vmatpush1.msra.mxu0 0.0
  %248 = vmatprep.subr.mxu0 %v71
  %249 = vmatpush1.msra.mxu0 %v70
  %250 = vmatprep.subr.mxu0 %v67
  %251 = vmatpush1.msra.mxu0 %v66
  %252 = vmatprep.subr.mxu0 %v63
  %253 = vmatpush1.msra.mxu0 %v62
  %254 = vmatprep.subr.mxu0 %v59
  %255 = vmatpush1.msra.mxu0 %v58
  %256 = vmatprep.subr.mxu0 %v55
  %257 = vmatpush1.msra.mxu0 %v54
  %258 = vmatprep.subr.mxu0 %v51
  %259 = vmatpush1.msra.mxu0 %v50
  %260 = vmatprep.subr.mxu0 %v47
  %261 = vmatpush1.msra.mxu0 %v46
  %262 = vmatprep.subr.mxu0 %v43
  %263 = vmatpush1.msra.mxu0 %v42
  %264 = vmatprep.subr.mxu0 0.0
  %265 = vmatpush2.msra.mxu0 0.0
  %266 = vmatprep.subr.mxu0 0.0
  %267 = vmatpush2.msra.mxu0 0.0
  %268 = vmatprep.subr.mxu0 0.0
  %269 = vmatpush2.msra.mxu0 0.0
  %270 = vmatprep.subr.mxu0 0.0
  %271 = vmatpush2.msra.mxu0 0.0
  %272 = vmatprep.subr.mxu0 0.0
  %273 = vmatpush2.msra.mxu0 0.0
  %274 = vmatprep.subr.mxu0 0.0
  %275 = vmatpush2.msra.mxu0 0.0
  %276 = vmatprep.subr.mxu0 0.0
  %277 = vmatpush2.msra.mxu0 0.0
  %278 = vmatprep.subr.mxu0 0.0
  %279 = vmatpush2.msra.mxu0 0.0
  %280 = vmatprep.subr.mxu0 0.0
  %281 = vmatpush2.msra.mxu0 0.0
  %282 = vmatprep.subr.mxu0 0.0
  %283 = vmatpush2.msra.mxu0 0.0
  %284 = vmatprep.subr.mxu0 0.0
  %285 = vmatpush2.msra.mxu0 0.0
  %286 = vmatprep.subr.mxu0 0.0
  %287 = vmatpush2.msra.mxu0 0.0
  %288 = vmatprep.subr.mxu0 0.0
  %289 = vmatpush2.msra.mxu0 0.0
  %290 = vmatprep.subr.mxu0 0.0
  %291 = vmatpush2.msra.mxu0 0.0
  %292 = vmatprep.subr.mxu0 0.0
  %293 = vmatpush2.msra.mxu0 0.0
  %294 = vmatprep.subr.mxu0 0.0
  %295 = vmatpush2.msra.mxu0 0.0
  %296 = vmatprep.mubr.f32.mxu0 0.0
  %297 = vmatmul.mubr.f32.gmra.mxu0 %v96
  %v298 = vpop.f32.mrf.mxu0
  %v299 = vadd.f32 %v85, %v298
  %v300 = vpop.f32.mrf.mxu0
  %v301 = vadd.f32 %v89, %v300
  %302 = vmatprep.mubr.f32.mxu0 0.0
  %303 = vmatmul.mubr.f32.gmra.mxu0 %v99
  %v304 = vpop.f32.mrf.mxu0
  %v305 = vadd.f32 %v85, %v304
  %v306 = vpop.f32.mrf.mxu0
  %v307 = vadd.f32 %v89, %v306
  %308 = vmatprep.mubr.f32.mxu0 0.0
  %309 = vmatmul.mubr.f32.gmra.mxu0 %v102
  %v310 = vpop.f32.mrf.mxu0
  %v311 = vadd.f32 %v85, %v310
  %v312 = vpop.f32.mrf.mxu0
  %v313 = vadd.f32 %v89, %v312
  %314 = vmatprep.mubr.f32.mxu0 0.0
  %315 = vmatmul.mubr.f32.gmra.mxu0 %v105
  %v316 = vpop.f32.mrf.mxu0
  %v317 = vadd.f32 %v85, %v316
  %v318 = vpop.f32.mrf.mxu0
  %v319 = vadd.f32 %v89, %v318
  %320 = vmatprep.mubr.f32.mxu0 0.0
  %321 = vmatmul.mubr.f32.gmra.mxu0 %v108
  %v322 = vpop.f32.mrf.mxu0
  %v323 = vadd.f32 %v85, %v322
  %v324 = vpop.f32.mrf.mxu0
  %v325 = vadd.f32 %v89, %v324
  %326 = vmatprep.mubr.f32.mxu0 0.0
  %327 = vmatmul.mubr.f32.gmra.mxu0 %v111
  %v328 = vpop.f32.mrf.mxu0
  %v329 = vadd.f32 %v85, %v328
  %v330 = vpop.f32.mrf.mxu0
  %v331 = vadd.f32 %v89, %v330
  %332 = vmatprep.mubr.f32.mxu0 0.0
  %333 = vmatmul.mubr.f32.gmra.mxu0 %v114
  %v334 = vpop.f32.mrf.mxu0
  %v335 = vadd.f32 %v85, %v334
  %v336 = vpop.f32.mrf.mxu0
  %v337 = vadd.f32 %v89, %v336
  %338 = vmatprep.mubr.f32.mxu0 0.0
  %339 = vmatmul.mubr.f32.gmra.mxu0 %v117
  %v340 = vpop.f32.mrf.mxu0
  %v341 = vadd.f32 %v85, %v340
  %v342 = vpop.f32.mrf.mxu0
  %v343 = vadd.f32 %v89, %v342
  %344 = vdwg.mxu0
  %345 = vst [vmem:[#allocation2] sm:$0xff] %v186
  %346 = vst [vmem:[#allocation2 + $0x8] sm:$0xff] %v188
  %347 = vst [vmem:[#allocation2 + $0x10] sm:$0xff] %v299
  %348 = vst [vmem:[#allocation2 + $0x18] sm:$0xff] %v301
  %349 = vst [vmem:[#allocation2 + $0x20] sm:$0xff] %v192
  %350 = vst [vmem:[#allocation2 + $0x28] sm:$0xff] %v194
  %351 = vst [vmem:[#allocation2 + $0x30] sm:$0xff] %v305
  %352 = vst [vmem:[#allocation2 + $0x38] sm:$0xff] %v307
  %353 = vst [vmem:[#allocation2 + $0x40] sm:$0xff] %v198
  %354 = vst [vmem:[#allocation2 + $0x48] sm:$0xff] %v200
  %355 = vst [vmem:[#allocation2 + $0x50] sm:$0xff] %v311
  %356 = vst [vmem:[#allocation2 + $0x58] sm:$0xff] %v313
  %357 = vst [vmem:[#allocation2 + $0x60] sm:$0xff] %v204
  %358 = vst [vmem:[#allocation2 + $0x68] sm:$0xff] %v206
  %359 = vst [vmem:[#allocation2 + $0x70] sm:$0xff] %v317
  %360 = vst [vmem:[#allocation2 + $0x78] sm:$0xff] %v319
  %361 = vst [vmem:[#allocation2 + $0x80] sm:$0xff] %v210
  %362 = vst [vmem:[#allocation2 + $0x88] sm:$0xff] %v212
  %363 = vst [vmem:[#allocation2 + $0x90] sm:$0xff] %v323
  %364 = vst [vmem:[#allocation2 + $0x98] sm:$0xff] %v325
  %365 = vst [vmem:[#allocation2 + $0xa0] sm:$0xff] %v216
  %366 = vst [vmem:[#allocation2 + $0xa8] sm:$0xff] %v218
  %367 = vst [vmem:[#allocation2 + $0xb0] sm:$0xff] %v329
  %368 = vst [vmem:[#allocation2 + $0xb8] sm:$0xff] %v331
  %369 = vst [vmem:[#allocation2 + $0xc0] sm:$0xff] %v222
  %370 = vst [vmem:[#allocation2 + $0xc8] sm:$0xff] %v224
  %371 = vst [vmem:[#allocation2 + $0xd0] sm:$0xff] %v335
  %372 = vst [vmem:[#allocation2 + $0xd8] sm:$0xff] %v337
  %373 = vst [vmem:[#allocation2 + $0xe0] sm:$0xff] %v228
  %374 = vst [vmem:[#allocation2 + $0xe8] sm:$0xff] %v230
  %375 = vst [vmem:[#allocation2 + $0xf0] sm:$0xff] %v341
  %376 = vst [vmem:[#allocation2 + $0xf8] sm:$0xff] %v343
  %v377 = vld [vmem:[%s6] sm:$0xff]
  %378 = vst [vmem:[#allocation4] sm:$0xff] %v377
  %v379 = vld [vmem:[%s7] sm:$0xff]
  %380 = vst [vmem:[#allocation5] sm:$0xff] %v379
  %s381 = smul.u32 0, 4
  %s382 = smul.addr %s381, 8
  %s383 = scalar_lea.vmem [#allocation2], %s382
  %v384 = vld [vmem:[%s383] sm:$0xff]
  %v385 = vld [vmem:[%s383 + $0x8] sm:$0xff]
  %v386 = vld [vmem:[%s383 + $0x10] sm:$0xff]
  %v387 = vld [vmem:[%s383 + $0x18] sm:$0xff]
  %v388 = vld [vmem:[#allocation4] sm:$0xff]
  %v389 = vld [vmem:[%s2] sm:$0xff]
  %v390 = vld [vmem:[%s2 + $0x8] sm:$0xff]
  %v391 = vld [vmem:[%s2 + $0x10] sm:$0xff]
  %v392 = vld [vmem:[%s2 + $0x18] sm:$0xff]
  %v393 = vld [vmem:[%s2 + $0x20] sm:$0xff]
  %v394 = vld [vmem:[%s2 + $0x28] sm:$0xff]
  %v395 = vld [vmem:[%s2 + $0x30] sm:$0xff]
  %v396 = vld [vmem:[%s2 + $0x38] sm:$0xff]
  %v397 = vld [vmem:[%s2 + $0x40] sm:$0xff]
  %v398 = vld [vmem:[%s2 + $0x48] sm:$0xff]
  %v399 = vld [vmem:[%s2 + $0x50] sm:$0xff]
  %v400 = vld [vmem:[%s2 + $0x58] sm:$0xff]
  %v401 = vld [vmem:[%s2 + $0x60] sm:$0xff]
  %v402 = vld [vmem:[%s2 + $0x68] sm:$0xff]
  %v403 = vld [vmem:[%s2 + $0x70] sm:$0xff]
  %v404 = vld [vmem:[%s2 + $0x78] sm:$0xff]
  %v405 = vld [vmem:[%s2 + $0x80] sm:$0xff]
  %v406 = vld [vmem:[%s2 + $0x88] sm:$0xff]
  %v407 = vld [vmem:[%s2 + $0x90] sm:$0xff]
  %v408 = vld [vmem:[%s2 + $0x98] sm:$0xff]
  %v409 = vld [vmem:[%s2 + $0xa0] sm:$0xff]
  %v410 = vld [vmem:[%s2 + $0xa8] sm:$0xff]
  %v411 = vld [vmem:[%s2 + $0xb0] sm:$0xff]
  %v412 = vld [vmem:[%s2 + $0xb8] sm:$0xff]
  %v413 = vld [vmem:[%s2 + $0xc0] sm:$0xff]
  %v414 = vld [vmem:[%s2 + $0xc8] sm:$0xff]
  %v415 = vld [vmem:[%s2 + $0xd0] sm:$0xff]
  %v416 = vld [vmem:[%s2 + $0xd8] sm:$0xff]
  %v417 = vld [vmem:[%s2 + $0xe0] sm:$0xff]
  %v418 = vld [vmem:[%s2 + $0xe8] sm:$0xff]
  %v419 = vld [vmem:[%s2 + $0xf0] sm:$0xff]
  %v420 = vld [vmem:[%s2 + $0xf8] sm:$0xff]
  %v421 = vld [vmem:[%s2 + $0x100] sm:$0xff]
  %v422 = vld [vmem:[%s2 + $0x108] sm:$0xff]
  %v423 = vld [vmem:[%s2 + $0x110] sm:$0xff]
  %v424 = vld [vmem:[%s2 + $0x118] sm:$0xff]
  %v425 = vld [vmem:[%s2 + $0x120] sm:$0xff]
  %v426 = vld [vmem:[%s2 + $0x128] sm:$0xff]
  %v427 = vld [vmem:[%s2 + $0x130] sm:$0xff]
  %v428 = vld [vmem:[%s2 + $0x138] sm:$0xff]
  %v429 = vld [vmem:[%s2 + $0x140] sm:$0xff]
  %v430 = vld [vmem:[%s2 + $0x148] sm:$0xff]
  %v431 = vld [vmem:[%s2 + $0x150] sm:$0xff]
  %v432 = vld [vmem:[%s2 + $0x158] sm:$0xff]
  %v433 = vld [vmem:[%s2 + $0x160] sm:$0xff]
  %v434 = vld [vmem:[%s2 + $0x168] sm:$0xff]
  %v435 = vld [vmem:[%s2 + $0x170] sm:$0xff]
  %v436 = vld [vmem:[%s2 + $0x178] sm:$0xff]
  %v437 = vld [vmem:[%s2 + $0x180] sm:$0xff]
  %v438 = vld [vmem:[%s2 + $0x188] sm:$0xff]
  %v439 = vld [vmem:[%s2 + $0x190] sm:$0xff]
  %v440 = vld [vmem:[%s2 + $0x198] sm:$0xff]
  %v441 = vld [vmem:[%s2 + $0x1a0] sm:$0xff]
  %v442 = vld [vmem:[%s2 + $0x1a8] sm:$0xff]
  %v443 = vld [vmem:[%s2 + $0x1b0] sm:$0xff]
  %v444 = vld [vmem:[%s2 + $0x1b8] sm:$0xff]
  %v445 = vld [vmem:[%s2 + $0x1c0] sm:$0xff]
  %v446 = vld [vmem:[%s2 + $0x1c8] sm:$0xff]
  %v447 = vld [vmem:[%s2 + $0x1d0] sm:$0xff]
  %v448 = vld [vmem:[%s2 + $0x1d8] sm:$0xff]
  %v449 = vld [vmem:[%s2 + $0x1e0] sm:$0xff]
  %v450 = vld [vmem:[%s2 + $0x1e8] sm:$0xff]
  %v451 = vld [vmem:[%s2 + $0x1f0] sm:$0xff]
  %v452 = vld [vmem:[%s2 + $0x1f8] sm:$0xff]
  %453 = vmatprep.subr.mxu0 %v450
  %454 = vmatpush1.msra.mxu0 %v449
  %455 = vmatprep.subr.mxu0 %v446
  %456 = vmatpush1.msra.mxu0 %v445
  %457 = vmatprep.subr.mxu0 %v442
  %458 = vmatpush1.msra.mxu0 %v441
  %459 = vmatprep.subr.mxu0 %v438
  %460 = vmatpush1.msra.mxu0 %v437
  %461 = vmatprep.subr.mxu0 %v434
  %462 = vmatpush1.msra.mxu0 %v433
  %463 = vmatprep.subr.mxu0 %v430
  %464 = vmatpush1.msra.mxu0 %v429
  %465 = vmatprep.subr.mxu0 %v426
  %466 = vmatpush1.msra.mxu0 %v425
  %467 = vmatprep.subr.mxu0 %v422
  %468 = vmatpush1.msra.mxu0 %v421
  %469 = vmatprep.subr.mxu0 %v418
  %470 = vmatpush1.msra.mxu0 %v417
  %471 = vmatprep.subr.mxu0 %v414
  %472 = vmatpush1.msra.mxu0 %v413
  %473 = vmatprep.subr.mxu0 %v410
  %474 = vmatpush1.msra.mxu0 %v409
  %475 = vmatprep.subr.mxu0 %v406
  %476 = vmatpush1.msra.mxu0 %v405
  %477 = vmatprep.subr.mxu0 %v402
  %478 = vmatpush1.msra.mxu0 %v401
  %479 = vmatprep.subr.mxu0 %v398
  %480 = vmatpush1.msra.mxu0 %v397
  %481 = vmatprep.subr.mxu0 %v394
  %482 = vmatpush1.msra.mxu0 %v393
  %483 = vmatprep.subr.mxu0 %v390
  %484 = vmatpush1.msra.mxu0 %v389
  %485 = vmatprep.subr.mxu0 0.0
  %486 = vmatpush2.msra.mxu0 0.0
  %487 = vmatprep.subr.mxu0 0.0
  %488 = vmatpush2.msra.mxu0 0.0
  %489 = vmatprep.subr.mxu0 0.0
  %490 = vmatpush2.msra.mxu0 0.0
  %491 = vmatprep.subr.mxu0 0.0
  %492 = vmatpush2.msra.mxu0 0.0
  %493 = vmatprep.subr.mxu0 0.0
  %494 = vmatpush2.msra.mxu0 0.0
  %495 = vmatprep.subr.mxu0 0.0
  %496 = vmatpush2.msra.mxu0 0.0
  %497 = vmatprep.subr.mxu0 0.0
  %498 = vmatpush2.msra.mxu0 0.0
  %499 = vmatprep.subr.mxu0 0.0
  %500 = vmatpush2.msra.mxu0 0.0
  %501 = vmatprep.subr.mxu0 0.0
  %502 = vmatpush2.msra.mxu0 0.0
  %503 = vmatprep.subr.mxu0 0.0
  %504 = vmatpush2.msra.mxu0 0.0
  %505 = vmatprep.subr.mxu0 0.0
  %506 = vmatpush2.msra.mxu0 0.0
  %507 = vmatprep.subr.mxu0 0.0
  %508 = vmatpush2.msra.mxu0 0.0
  %509 = vmatprep.subr.mxu0 0.0
  %510 = vmatpush2.msra.mxu0 0.0
  %511 = vmatprep.subr.mxu0 0.0
  %512 = vmatpush2.msra.mxu0 0.0
  %513 = vmatprep.subr.mxu0 0.0
  %514 = vmatpush2.msra.mxu0 0.0
  %515 = vmatprep.subr.mxu0 0.0
  %516 = vmatpush2.msra.mxu0 0.0
  %517 = vmatprep.mubr.f32.mxu0 0.0
  %518 = vmatmul.mubr.f32.gmra.mxu0 %v388
  %v519 = vpop.f32.mrf.mxu0
  %v520 = vadd.f32 0.0, %v519
  %v521 = vpop.f32.mrf.mxu0
  %v522 = vadd.f32 0.0, %v521
  %523 = vdwg.mxu0
  %524 = vmatprep.subr.mxu0 %v452
  %525 = vmatpush1.msra.mxu0 %v451
  %526 = vmatprep.subr.mxu0 %v448
  %527 = vmatpush1.msra.mxu0 %v447
  %528 = vmatprep.subr.mxu0 %v444
  %529 = vmatpush1.msra.mxu0 %v443
  %530 = vmatprep.subr.mxu0 %v440
  %531 = vmatpush1.msra.mxu0 %v439
  %532 = vmatprep.subr.mxu0 %v436
  %533 = vmatpush1.msra.mxu0 %v435
  %534 = vmatprep.subr.mxu0 %v432
  %535 = vmatpush1.msra.mxu0 %v431
  %536 = vmatprep.subr.mxu0 %v428
  %537 = vmatpush1.msra.mxu0 %v427
  %538 = vmatprep.subr.mxu0 %v424
  %539 = vmatpush1.msra.mxu0 %v423
  %540 = vmatprep.subr.mxu0 %v420
  %541 = vmatpush1.msra.mxu0 %v419
  %542 = vmatprep.subr.mxu0 %v416
  %543 = vmatpush1.msra.mxu0 %v415
  %544 = vmatprep.subr.mxu0 %v412
  %545 = vmatpush1.msra.mxu0 %v411
  %546 = vmatprep.subr.mxu0 %v408
  %547 = vmatpush1.msra.mxu0 %v407
  %548 = vmatprep.subr.mxu0 %v404
  %549 = vmatpush1.msra.mxu0 %v403
  %550 = vmatprep.subr.mxu0 %v400
  %551 = vmatpush1.msra.mxu0 %v399
  %552 = vmatprep.subr.mxu0 %v396
  %553 = vmatpush1.msra.mxu0 %v395
  %554 = vmatprep.subr.mxu0 %v392
  %555 = vmatpush1.msra.mxu0 %v391
  %556 = vmatprep.subr.mxu0 0.0
  %557 = vmatpush2.msra.mxu0 0.0
  %558 = vmatprep.subr.mxu0 0.0
  %559 = vmatpush2.msra.mxu0 0.0
  %560 = vmatprep.subr.mxu0 0.0
  %561 = vmatpush2.msra.mxu0 0.0
  %562 = vmatprep.subr.mxu0 0.0
  %563 = vmatpush2.msra.mxu0 0.0
  %564 = vmatprep.subr.mxu0 0.0
  %565 = vmatpush2.msra.mxu0 0.0
  %566 = vmatprep.subr.mxu0 0.0
  %567 = vmatpush2.msra.mxu0 0.0
  %568 = vmatprep.subr.mxu0 0.0
  %569 = vmatpush2.msra.mxu0 0.0
  %570 = vmatprep.subr.mxu0 0.0
  %571 = vmatpush2.msra.mxu0 0.0
  %572 = vmatprep.subr.mxu0 0.0
  %573 = vmatpush2.msra.mxu0 0.0
  %574 = vmatprep.subr.mxu0 0.0
  %575 = vmatpush2.msra.mxu0 0.0
  %576 = vmatprep.subr.mxu0 0.0
  %577 = vmatpush2.msra.mxu0 0.0
  %578 = vmatprep.subr.mxu0 0.0
  %579 = vmatpush2.msra.mxu0 0.0
  %580 = vmatprep.subr.mxu0 0.0
  %581 = vmatpush2.msra.mxu0 0.0
  %582 = vmatprep.subr.mxu0 0.0
  %583 = vmatpush2.msra.mxu0 0.0
  %584 = vmatprep.subr.mxu0 0.0
  %585 = vmatpush2.msra.mxu0 0.0
  %586 = vmatprep.subr.mxu0 0.0
  %587 = vmatpush2.msra.mxu0 0.0
  %588 = vmatprep.mubr.f32.mxu0 0.0
  %589 = vmatmul.mubr.f32.gmra.mxu0 %v388
  %v590 = vpop.f32.mrf.mxu0
  %v591 = vadd.f32 0.0, %v590
  %v592 = vpop.f32.mrf.mxu0
  %v593 = vadd.f32 0.0, %v592
  %594 = vdwg.mxu0
  %v595 = vadd.f32 %v384, %v520
  %v596 = vadd.f32 %v385, %v522
  %v597 = vadd.f32 %v386, %v591
  %v598 = vadd.f32 %v387, %v593
  %v599 = vxor.u32 %v595, 2147483648
  %v600 = vmul.f32 %v599, 1.442695
  %v601 = vpow.pop %v600
  %v602 = vadd.f32 %v601, 1.0
  %v603 = vrcp.pop %v602
  %v604 = vmul.f32 1.0, %v603
  %v605 = vxor.u32 %v596, 2147483648
  %v606 = vmul.f32 %v605, 1.442695
  %v607 = vpow.pop %v606
  %v608 = vadd.f32 %v607, 1.0
  %v609 = vrcp.pop %v608
  %v610 = vmul.f32 1.0, %v609
  %v611 = vtanh.pop %v597
  %v612 = vxor.u32 %v598, 2147483648
  %v613 = vmul.f32 %v612, 1.442695
  %v614 = vpow.pop %v613
  %v615 = vadd.f32 %v614, 1.0
  %v616 = vrcp.pop %v615
  %v617 = vmul.f32 1.0, %v616
  %v618 = vld [vmem:[#allocation5] sm:$0xff]
  %v619 = vmul.f32 %v610, %v618
  %v620 = vmul.f32 %v604, %v611
  %v621 = vadd.f32 %v619, %v620
  %v622 = vtanh.pop %v621
  %v623 = vmul.f32 %v617, %v622
  %624 = vst [vmem:[#allocation5] sm:$0xff] %v621
  %625 = vst [vmem:[#allocation4] sm:$0xff] %v623
  %626 = vst [vmem:[#allocation3] sm:$0xff] %v623
  %s627 = smul.u32 1, 4
  %s628 = smul.addr %s627, 8
  %s629 = scalar_lea.vmem [#allocation2], %s628
  %v630 = vld [vmem:[%s629] sm:$0xff]
  %v631 = vld [vmem:[%s629 + $0x8] sm:$0xff]
  %v632 = vld [vmem:[%s629 + $0x10] sm:$0xff]
  %v633 = vld [vmem:[%s629 + $0x18] sm:$0xff]
  %v634 = vld [vmem:[#allocation4] sm:$0xff]
  %v635 = vld [vmem:[%s2] sm:$0xff]
  %v636 = vld [vmem:[%s2 + $0x8] sm:$0xff]
  %v637 = vld [vmem:[%s2 + $0x10] sm:$0xff]
  %v638 = vld [vmem:[%s2 + $0x18] sm:$0xff]
  %v639 = vld [vmem:[%s2 + $0x20] sm:$0xff]
  %v640 = vld [vmem:[%s2 + $0x28] sm:$0xff]
  %v641 = vld [vmem:[%s2 + $0x30] sm:$0xff]
  %v642 = vld [vmem:[%s2 + $0x38] sm:$0xff]
  %v643 = vld [vmem:[%s2 + $0x40] sm:$0xff]
  %v644 = vld [vmem:[%s2 + $0x48] sm:$0xff]
  %v645 = vld [vmem:[%s2 + $0x50] sm:$0xff]
  %v646 = vld [vmem:[%s2 + $0x58] sm:$0xff]
  %v647 = vld [vmem:[%s2 + $0x60] sm:$0xff]
  %v648 = vld [vmem:[%s2 + $0x68] sm:$0xff]
  %v649 = vld [vmem:[%s2 + $0x70] sm:$0xff]
  %v650 = vld [vmem:[%s2 + $0x78] sm:$0xff]
  %v651 = vld [vmem:[%s2 + $0x80] sm:$0xff]
  %v652 = vld [vmem:[%s2 + $0x88] sm:$0xff]
  %v653 = vld [vmem:[%s2 + $0x90] sm:$0xff]
  %v654 = vld [vmem:[%s2 + $0x98] sm:$0xff]
  %v655 = vld [vmem:[%s2 + $0xa0] sm:$0xff]
  %v656 = vld [vmem:[%s2 + $0xa8] sm:$0xff]
  %v657 = vld [vmem:[%s2 + $0xb0] sm:$0xff]
  %v658 = vld [vmem:[%s2 + $0xb8] sm:$0xff]
  %v659 = vld [vmem:[%s2 + $0xc0] sm:$0xff]
  %v660 = vld [vmem:[%s2 + $0xc8] sm:$0xff]
  %v661 = vld [vmem:[%s2 + $0xd0] sm:$0xff]
  %v662 = vld [vmem:[%s2 + $0xd8] sm:$0xff]
  %v663 = vld [vmem:[%s2 + $0xe0] sm:$0xff]
  %v664 = vld [vmem:[%s2 + $0xe8] sm:$0xff]
  %v665 = vld [vmem:[%s2 + $0xf0] sm:$0xff]
  %v666 = vld [vmem:[%s2 + $0xf8] sm:$0xff]
  %v667 = vld [vmem:[%s2 + $0x100] sm:$0xff]
  %v668 = vld [vmem:[%s2 + $0x108] sm:$0xff]
  %v669 = vld [vmem:[%s2 + $0x110] sm:$0xff]
  %v670 = vld [vmem:[%s2 + $0x118] sm:$0xff]
  %v671 = vld [vmem:[%s2 + $0x120] sm:$0xff]
  %v672 = vld [vmem:[%s2 + $0x128] sm:$0xff]
  %v673 = vld [vmem:[%s2 + $0x130] sm:$0xff]
  %v674 = vld [vmem:[%s2 + $0x138] sm:$0xff]
  %v675 = vld [vmem:[%s2 + $0x140] sm:$0xff]
  %v676 = vld [vmem:[%s2 + $0x148] sm:$0xff]
  %v677 = vld [vmem:[%s2 + $0x150] sm:$0xff]
  %v678 = vld [vmem:[%s2 + $0x158] sm:$0xff]
  %v679 = vld [vmem:[%s2 + $0x160] sm:$0xff]
  %v680 = vld [vmem:[%s2 + $0x168] sm:$0xff]
  %v681 = vld [vmem:[%s2 + $0x170] sm:$0xff]
  %v682 = vld [vmem:[%s2 + $0x178] sm:$0xff]
  %v683 = vld [vmem:[%s2 + $0x180] sm:$0xff]
  %v684 = vld [vmem:[%s2 + $0x188] sm:$0xff]
  %v685 = vld [vmem:[%s2 + $0x190] sm:$0xff]
  %v686 = vld [vmem:[%s2 + $0x198] sm:$0xff]
  %v687 = vld [vmem:[%s2 + $0x1a0] sm:$0xff]
  %v688 = vld [vmem:[%s2 + $0x1a8] sm:$0xff]
  %v689 = vld [vmem:[%s2 + $0x1b0] sm:$0xff]
  %v690 = vld [vmem:[%s2 + $0x1b8] sm:$0xff]
  %v691 = vld [vmem:[%s2 + $0x1c0] sm:$0xff]
  %v692 = vld [vmem:[%s2 + $0x1c8] sm:$0xff]
  %v693 = vld [vmem:[%s2 + $0x1d0] sm:$0xff]
  %v694 = vld [vmem:[%s2 + $0x1d8] sm:$0xff]
  %v695 = vld [vmem:[%s2 + $0x1e0] sm:$0xff]
  %v696 = vld [vmem:[%s2 + $0x1e8] sm:$0xff]
  %v697 = vld [vmem:[%s2 + $0x1f0] sm:$0xff]
  %v698 = vld [vmem:[%s2 + $0x1f8] sm:$0xff]
  %699 = vmatprep.subr.mxu0 %v696
  %700 = vmatpush1.msra.mxu0 %v695
  %701 = vmatprep.subr.mxu0 %v692
  %702 = vmatpush1.msra.mxu0 %v691
  %703 = vmatprep.subr.mxu0 %v688
  %704 = vmatpush1.msra.mxu0 %v687
  %705 = vmatprep.subr.mxu0 %v684
  %706 = vmatpush1.msra.mxu0 %v683
  %707 = vmatprep.subr.mxu0 %v680
  %708 = vmatpush1.msra.mxu0 %v679
  %709 = vmatprep.subr.mxu0 %v676
  %710 = vmatpush1.msra.mxu0 %v675
  %711 = vmatprep.subr.mxu0 %v672
  %712 = vmatpush1.msra.mxu0 %v671
  %713 = vmatprep.subr.mxu0 %v668
  %714 = vmatpush1.msra.mxu0 %v667
  %715 = vmatprep.subr.mxu0 %v664
  %716 = vmatpush1.msra.mxu0 %v663
  %717 = vmatprep.subr.mxu0 %v660
  %718 = vmatpush1.msra.mxu0 %v659
  %719 = vmatprep.subr.mxu0 %v656
  %720 = vmatpush1.msra.mxu0 %v655
  %721 = vmatprep.subr.mxu0 %v652
  %722 = vmatpush1.msra.mxu0 %v651
  %723 = vmatprep.subr.mxu0 %v648
  %724 = vmatpush1.msra.mxu0 %v647
  %725 = vmatprep.subr.mxu0 %v644
  %726 = vmatpush1.msra.mxu0 %v643
  %727 = vmatprep.subr.mxu0 %v640
  %728 = vmatpush1.msra.mxu0 %v639
  %729 = vmatprep.subr.mxu0 %v636
  %730 = vmatpush1.msra.mxu0 %v635
  %731 = vmatprep.subr.mxu0 0.0
  %732 = vmatpush2.msra.mxu0 0.0
  %733 = vmatprep.subr.mxu0 0.0
  %734 = vmatpush2.msra.mxu0 0.0
  %735 = vmatprep.subr.mxu0 0.0
  %736 = vmatpush2.msra.mxu0 0.0
  %737 = vmatprep.subr.mxu0 0.0
  %738 = vmatpush2.msra.mxu0 0.0
  %739 = vmatprep.subr.mxu0 0.0
  %740 = vmatpush2.msra.mxu0 0.0
  %741 = vmatprep.subr.mxu0 0.0
  %742 = vmatpush2.msra.mxu0 0.0
  %743 = vmatprep.subr.mxu0 0.0
  %744 = vmatpush2.msra.mxu0 0.0
  %745 = vmatprep.subr.mxu0 0.0
  %746 = vmatpush2.msra.mxu0 0.0
  %747 = vmatprep.subr.mxu0 0.0
  %748 = vmatpush2.msra.mxu0 0.0
  %749 = vmatprep.subr.mxu0 0.0
  %750 = vmatpush2.msra.mxu0 0.0
  %751 = vmatprep.subr.mxu0 0.0
  %752 = vmatpush2.msra.mxu0 0.0
  %753 = vmatprep.subr.mxu0 0.0
  %754 = vmatpush2.msra.mxu0 0.0
  %755 = vmatprep.subr.mxu0 0.0
  %756 = vmatpush2.msra.mxu0 0.0
  %757 = vmatprep.subr.mxu0 0.0
  %758 = vmatpush2.msra.mxu0 0.0
  %759 = vmatprep.subr.mxu0 0.0
  %760 = vmatpush2.msra.mxu0 0.0
  %761 = vmatprep.subr.mxu0 0.0
  %762 = vmatpush2.msra.mxu0 0.0
  %763 = vmatprep.mubr.f32.mxu0 0.0
  %764 = vmatmul.mubr.f32.gmra.mxu0 %v634
  %v765 = vpop.f32.mrf.mxu0
  %v766 = vadd.f32 0.0, %v765
  %v767 = vpop.f32.mrf.mxu0
  %v768 = vadd.f32 0.0, %v767
  %769 = vdwg.mxu0
  %770 = vmatprep.subr.mxu0 %v698
  %771 = vmatpush1.msra.mxu0 %v697
  %772 = vmatprep.subr.mxu0 %v694
  %773 = vmatpush1.msra.mxu0 %v693
  %774 = vmatprep.subr.mxu0 %v690
  %775 = vmatpush1.msra.mxu0 %v689
  %776 = vmatprep.subr.mxu0 %v686
  %777 = vmatpush1.msra.mxu0 %v685
  %778 = vmatprep.subr.mxu0 %v682
  %779 = vmatpush1.msra.mxu0 %v681
  %780 = vmatprep.subr.mxu0 %v678
  %781 = vmatpush1.msra.mxu0 %v677
  %782 = vmatprep.subr.mxu0 %v674
  %783 = vmatpush1.msra.mxu0 %v673
  %784 = vmatprep.subr.mxu0 %v670
  %785 = vmatpush1.msra.mxu0 %v669
  %786 = vmatprep.subr.mxu0 %v666
  %787 = vmatpush1.msra.mxu0 %v665
  %788 = vmatprep.subr.mxu0 %v662
  %789 = vmatpush1.msra.mxu0 %v661
  %790 = vmatprep.subr.mxu0 %v658
  %791 = vmatpush1.msra.mxu0 %v657
  %792 = vmatprep.subr.mxu0 %v654
  %793 = vmatpush1.msra.mxu0 %v653
  %794 = vmatprep.subr.mxu0 %v650
  %795 = vmatpush1.msra.mxu0 %v649
  %796 = vmatprep.subr.mxu0 %v646
  %797 = vmatpush1.msra.mxu0 %v645
  %798 = vmatprep.subr.mxu0 %v642
  %799 = vmatpush1.msra.mxu0 %v641
  %800 = vmatprep.subr.mxu0 %v638
  %801 = vmatpush1.msra.mxu0 %v637
  %802 = vmatprep.subr.mxu0 0.0
  %803 = vmatpush2.msra.mxu0 0.0
  %804 = vmatprep.subr.mxu0 0.0
  %805 = vmatpush2.msra.mxu0 0.0
  %806 = vmatprep.subr.mxu0 0.0
  %807 = vmatpush2.msra.mxu0 0.0
  %808 = vmatprep.subr.mxu0 0.0
  %809 = vmatpush2.msra.mxu0 0.0
  %810 = vmatprep.subr.mxu0 0.0
  %811 = vmatpush2.msra.mxu0 0.0
  %812 = vmatprep.subr.mxu0 0.0
  %813 = vmatpush2.msra.mxu0 0.0
  %814 = vmatprep.subr.mxu0 0.0
  %815 = vmatpush2.msra.mxu0 0.0
  %816 = vmatprep.subr.mxu0 0.0
  %817 = vmatpush2.msra.mxu0 0.0
  %818 = vmatprep.subr.mxu0 0.0
  %819 = vmatpush2.msra.mxu0 0.0
  %820 = vmatprep.subr.mxu0 0.0
  %821 = vmatpush2.msra.mxu0 0.0
  %822 = vmatprep.subr.mxu0 0.0
  %823 = vmatpush2.msra.mxu0 0.0
  %824 = vmatprep.subr.mxu0 0.0
  %825 = vmatpush2.msra.mxu0 0.0
  %826 = vmatprep.subr.mxu0 0.0
  %827 = vmatpush2.msra.mxu0 0.0
  %828 = vmatprep.subr.mxu0 0.0
  %829 = vmatpush2.msra.mxu0 0.0
  %830 = vmatprep.subr.mxu0 0.0
  %831 = vmatpush2.msra.mxu0 0.0
  %832 = vmatprep.subr.mxu0 0.0
  %833 = vmatpush2.msra.mxu0 0.0
  %834 = vmatprep.mubr.f32.mxu0 0.0
  %835 = vmatmul.mubr.f32.gmra.mxu0 %v634
  %v836 = vpop.f32.mrf.mxu0
  %v837 = vadd.f32 0.0, %v836
  %v838 = vpop.f32.mrf.mxu0
  %v839 = vadd.f32 0.0, %v838
  %840 = vdwg.mxu0
  %v841 = vadd.f32 %v630, %v766
  %v842 = vadd.f32 %v631, %v768
  %v843 = vadd.f32 %v632, %v837
  %v844 = vadd.f32 %v633, %v839
  %v845 = vxor.u32 %v841, 2147483648
  %v846 = vmul.f32 %v845, 1.442695
  %v847 = vpow.pop %v846
  %v848 = vadd.f32 %v847, 1.0
  %v849 = vrcp.pop %v848
  %v850 = vmul.f32 1.0, %v849
  %v851 = vxor.u32 %v842, 2147483648
  %v852 = vmul.f32 %v851, 1.442695
  %v853 = vpow.pop %v852
  %v854 = vadd.f32 %v853, 1.0
  %v855 = vrcp.pop %v854
  %v856 = vmul.f32 1.0, %v855
  %v857 = vtanh.pop %v843
  %v858 = vxor.u32 %v844, 2147483648
  %v859 = vmul.f32 %v858, 1.442695
  %v860 = vpow.pop %v859
  %v861 = vadd.f32 %v860, 1.0
  %v862 = vrcp.pop %v861
  %v863 = vmul.f32 1.0, %v862
  %v864 = vld [vmem:[#allocation5] sm:$0xff]
  %v865 = vmul.f32 %v856, %v864
  %v866 = vmul.f32 %v850, %v857
  %v867 = vadd.f32 %v865, %v866
  %v868 = vtanh.pop %v867
  %v869 = vmul.f32 %v863, %v868
  %870 = vst [vmem:[#allocation5] sm:$0xff] %v867
  %871 = vst [vmem:[#allocation4] sm:$0xff] %v869
  %s872 = scalar_lea.vmem [#allocation3], 8
  %873 = vst [vmem:[%s872] sm:$0xff] %v869
  %s874 = smul.u32 2, 4
  %s875 = smul.addr %s874, 8
  %s876 = scalar_lea.vmem [#allocation2], %s875
  %v877 = vld [vmem:[%s876] sm:$0xff]
  %v878 = vld [vmem:[%s876 + $0x8] sm:$0xff]
  %v879 = vld [vmem:[%s876 + $0x10] sm:$0xff]
  %v880 = vld [vmem:[%s876 + $0x18] sm:$0xff]
  %v881 = vld [vmem:[#allocation4] sm:$0xff]
  %v882 = vld [vmem:[%s2] sm:$0xff]
  %v883 = vld [vmem:[%s2 + $0x8] sm:$0xff]
  %v884 = vld [vmem:[%s2 + $0x10] sm:$0xff]
  %v885 = vld [vmem:[%s2 + $0x18] sm:$0xff]
  %v886 = vld [vmem:[%s2 + $0x20] sm:$0xff]
  %v887 = vld [vmem:[%s2 + $0x28] sm:$0xff]
  %v888 = vld [vmem:[%s2 + $0x30] sm:$0xff]
  %v889 = vld [vmem:[%s2 + $0x38] sm:$0xff]
  %v890 = vld [vmem:[%s2 + $0x40] sm:$0xff]
  %v891 = vld [vmem:[%s2 + $0x48] sm:$0xff]
  %v892 = vld [vmem:[%s2 + $0x50] sm:$0xff]
  %v893 = vld [vmem:[%s2 + $0x58] sm:$0xff]
  %v894 = vld [vmem:[%s2 + $0x60] sm:$0xff]
  %v895 = vld [vmem:[%s2 + $0x68] sm:$0xff]
  %v896 = vld [vmem:[%s2 + $0x70] sm:$0xff]
  %v897 = vld [vmem:[%s2 + $0x78] sm:$0xff]
  %v898 = vld [vmem:[%s2 + $0x80] sm:$0xff]
  %v899 = vld [vmem:[%s2 + $0x88] sm:$0xff]
  %v900 = vld [vmem:[%s2 + $0x90] sm:$0xff]
  %v901 = vld [vmem:[%s2 + $0x98] sm:$0xff]
  %v902 = vld [vmem:[%s2 + $0xa0] sm:$0xff]
  %v903 = vld [vmem:[%s2 + $0xa8] sm:$0xff]
  %v904 = vld [vmem:[%s2 + $0xb0] sm:$0xff]
  %v905 = vld [vmem:[%s2 + $0xb8] sm:$0xff]
  %v906 = vld [vmem:[%s2 + $0xc0] sm:$0xff]
  %v907 = vld [vmem:[%s2 + $0xc8] sm:$0xff]
  %v908 = vld [vmem:[%s2 + $0xd0] sm:$0xff]
  %v909 = vld [vmem:[%s2 + $0xd8] sm:$0xff]
  %v910 = vld [vmem:[%s2 + $0xe0] sm:$0xff]
  %v911 = vld [vmem:[%s2 + $0xe8] sm:$0xff]
  %v912 = vld [vmem:[%s2 + $0xf0] sm:$0xff]
  %v913 = vld [vmem:[%s2 + $0xf8] sm:$0xff]
  %v914 = vld [vmem:[%s2 + $0x100] sm:$0xff]
  %v915 = vld [vmem:[%s2 + $0x108] sm:$0xff]
  %v916 = vld [vmem:[%s2 + $0x110] sm:$0xff]
  %v917 = vld [vmem:[%s2 + $0x118] sm:$0xff]
  %v918 = vld [vmem:[%s2 + $0x120] sm:$0xff]
  %v919 = vld [vmem:[%s2 + $0x128] sm:$0xff]
  %v920 = vld [vmem:[%s2 + $0x130] sm:$0xff]
  %v921 = vld [vmem:[%s2 + $0x138] sm:$0xff]
  %v922 = vld [vmem:[%s2 + $0x140] sm:$0xff]
  %v923 = vld [vmem:[%s2 + $0x148] sm:$0xff]
  %v924 = vld [vmem:[%s2 + $0x150] sm:$0xff]
  %v925 = vld [vmem:[%s2 + $0x158] sm:$0xff]
  %v926 = vld [vmem:[%s2 + $0x160] sm:$0xff]
  %v927 = vld [vmem:[%s2 + $0x168] sm:$0xff]
  %v928 = vld [vmem:[%s2 + $0x170] sm:$0xff]
  %v929 = vld [vmem:[%s2 + $0x178] sm:$0xff]
  %v930 = vld [vmem:[%s2 + $0x180] sm:$0xff]
  %v931 = vld [vmem:[%s2 + $0x188] sm:$0xff]
  %v932 = vld [vmem:[%s2 + $0x190] sm:$0xff]
  %v933 = vld [vmem:[%s2 + $0x198] sm:$0xff]
  %v934 = vld [vmem:[%s2 + $0x1a0] sm:$0xff]
  %v935 = vld [vmem:[%s2 + $0x1a8] sm:$0xff]
  %v936 = vld [vmem:[%s2 + $0x1b0] sm:$0xff]
  %v937 = vld [vmem:[%s2 + $0x1b8] sm:$0xff]
  %v938 = vld [vmem:[%s2 + $0x1c0] sm:$0xff]
  %v939 = vld [vmem:[%s2 + $0x1c8] sm:$0xff]
  %v940 = vld [vmem:[%s2 + $0x1d0] sm:$0xff]
  %v941 = vld [vmem:[%s2 + $0x1d8] sm:$0xff]
  %v942 = vld [vmem:[%s2 + $0x1e0] sm:$0xff]
  %v943 = vld [vmem:[%s2 + $0x1e8] sm:$0xff]
  %v944 = vld [vmem:[%s2 + $0x1f0] sm:$0xff]
  %v945 = vld [vmem:[%s2 + $0x1f8] sm:$0xff]
  %946 = vmatprep.subr.mxu0 %v943
  %947 = vmatpush1.msra.mxu0 %v942
  %948 = vmatprep.subr.mxu0 %v939
  %949 = vmatpush1.msra.mxu0 %v938
  %950 = vmatprep.subr.mxu0 %v935
  %951 = vmatpush1.msra.mxu0 %v934
  %952 = vmatprep.subr.mxu0 %v931
  %953 = vmatpush1.msra.mxu0 %v930
  %954 = vmatprep.subr.mxu0 %v927
  %955 = vmatpush1.msra.mxu0 %v926
  %956 = vmatprep.subr.mxu0 %v923
  %957 = vmatpush1.msra.mxu0 %v922
  %958 = vmatprep.subr.mxu0 %v919
  %959 = vmatpush1.msra.mxu0 %v918
  %960 = vmatprep.subr.mxu0 %v915
  %961 = vmatpush1.msra.mxu0 %v914
  %962 = vmatprep.subr.mxu0 %v911
  %963 = vmatpush1.msra.mxu0 %v910
  %964 = vmatprep.subr.mxu0 %v907
  %965 = vmatpush1.msra.mxu0 %v906
  %966 = vmatprep.subr.mxu0 %v903
  %967 = vmatpush1.msra.mxu0 %v902
  %968 = vmatprep.subr.mxu0 %v899
  %969 = vmatpush1.msra.mxu0 %v898
  %970 = vmatprep.subr.mxu0 %v895
  %971 = vmatpush1.msra.mxu0 %v894
  %972 = vmatprep.subr.mxu0 %v891
  %973 = vmatpush1.msra.mxu0 %v890
  %974 = vmatprep.subr.mxu0 %v887
  %975 = vmatpush1.msra.mxu0 %v886
  %976 = vmatprep.subr.mxu0 %v883
  %977 = vmatpush1.msra.mxu0 %v882
  %978 = vmatprep.subr.mxu0 0.0
  %979 = vmatpush2.msra.mxu0 0.0
  %980 = vmatprep.subr.mxu0 0.0
  %981 = vmatpush2.msra.mxu0 0.0
  %982 = vmatprep.subr.mxu0 0.0
  %983 = vmatpush2.msra.mxu0 0.0
  %984 = vmatprep.subr.mxu0 0.0
  %985 = vmatpush2.msra.mxu0 0.0
  %986 = vmatprep.subr.mxu0 0.0
  %987 = vmatpush2.msra.mxu0 0.0
  %988 = vmatprep.subr.mxu0 0.0
  %989 = vmatpush2.msra.mxu0 0.0
  %990 = vmatprep.subr.mxu0 0.0
  %991 = vmatpush2.msra.mxu0 0.0
  %992 = vmatprep.subr.mxu0 0.0
  %993 = vmatpush2.msra.mxu0 0.0
  %994 = vmatprep.subr.mxu0 0.0
  %995 = vmatpush2.msra.mxu0 0.0
  %996 = vmatprep.subr.mxu0 0.0
  %997 = vmatpush2.msra.mxu0 0.0
  %998 = vmatprep.subr.mxu0 0.0
  %999 = vmatpush2.msra.mxu0 0.0
  %1000 = vmatprep.subr.mxu0 0.0
  %1001 = vmatpush2.msra.mxu0 0.0
  %1002 = vmatprep.subr.mxu0 0.0
  %1003 = vmatpush2.msra.mxu0 0.0
  %1004 = vmatprep.subr.mxu0 0.0
  %1005 = vmatpush2.msra.mxu0 0.0
  %1006 = vmatprep.subr.mxu0 0.0
  %1007 = vmatpush2.msra.mxu0 0.0
  %1008 = vmatprep.subr.mxu0 0.0
  %1009 = vmatpush2.msra.mxu0 0.0
  %1010 = vmatprep.mubr.f32.mxu0 0.0
  %1011 = vmatmul.mubr.f32.gmra.mxu0 %v881
  %v1012 = vpop.f32.mrf.mxu0
  %v1013 = vadd.f32 0.0, %v1012
  %v1014 = vpop.f32.mrf.mxu0
  %v1015 = vadd.f32 0.0, %v1014
  %1016 = vdwg.mxu0
  %1017 = vmatprep.subr.mxu0 %v945
  %1018 = vmatpush1.msra.mxu0 %v944
  %1019 = vmatprep.subr.mxu0 %v941
  %1020 = vmatpush1.msra.mxu0 %v940
  %1021 = vmatprep.subr.mxu0 %v937
  %1022 = vmatpush1.msra.mxu0 %v936
  %1023 = vmatprep.subr.mxu0 %v933
  %1024 = vmatpush1.msra.mxu0 %v932
  %1025 = vmatprep.subr.mxu0 %v929
  %1026 = vmatpush1.msra.mxu0 %v928
  %1027 = vmatprep.subr.mxu0 %v925
  %1028 = vmatpush1.msra.mxu0 %v924
  %1029 = vmatprep.subr.mxu0 %v921
  %1030 = vmatpush1.msra.mxu0 %v920
  %1031 = vmatprep.subr.mxu0 %v917
  %1032 = vmatpush1.msra.mxu0 %v916
  %1033 = vmatprep.subr.mxu0 %v913
  %1034 = vmatpush1.msra.mxu0 %v912
  %1035 = vmatprep.subr.mxu0 %v909
  %1036 = vmatpush1.msra.mxu0 %v908
  %1037 = vmatprep.subr.mxu0 %v905
  %1038 = vmatpush1.msra.mxu0 %v904
  %1039 = vmatprep.subr.mxu0 %v901
  %1040 = vmatpush1.msra.mxu0 %v900
  %1041 = vmatprep.subr.mxu0 %v897
  %1042 = vmatpush1.msra.mxu0 %v896
  %1043 = vmatprep.subr.mxu0 %v893
  %1044 = vmatpush1.msra.mxu0 %v892
  %1045 = vmatprep.subr.mxu0 %v889
  %1046 = vmatpush1.msra.mxu0 %v888
  %1047 = vmatprep.subr.mxu0 %v885
  %1048 = vmatpush1.msra.mxu0 %v884
  %1049 = vmatprep.subr.mxu0 0.0
  %1050 = vmatpush2.msra.mxu0 0.0
  %1051 = vmatprep.subr.mxu0 0.0
  %1052 = vmatpush2.msra.mxu0 0.0
  %1053 = vmatprep.subr.mxu0 0.0
  %1054 = vmatpush2.msra.mxu0 0.0
  %1055 = vmatprep.subr.mxu0 0.0
  %1056 = vmatpush2.msra.mxu0 0.0
  %1057 = vmatprep.subr.mxu0 0.0
  %1058 = vmatpush2.msra.mxu0 0.0
  %1059 = vmatprep.subr.mxu0 0.0
  %1060 = vmatpush2.msra.mxu0 0.0
  %1061 = vmatprep.subr.mxu0 0.0
  %1062 = vmatpush2.msra.mxu0 0.0
  %1063 = vmatprep.subr.mxu0 0.0
  %1064 = vmatpush2.msra.mxu0 0.0
  %1065 = vmatprep.subr.mxu0 0.0
  %1066 = vmatpush2.msra.mxu0 0.0
  %1067 = vmatprep.subr.mxu0 0.0
  %1068 = vmatpush2.msra.mxu0 0.0
  %1069 = vmatprep.subr.mxu0 0.0
  %1070 = vmatpush2.msra.mxu0 0.0
  %1071 = vmatprep.subr.mxu0 0.0
  %1072 = vmatpush2.msra.mxu0 0.0
  %1073 = vmatprep.subr.mxu0 0.0
  %1074 = vmatpush2.msra.mxu0 0.0
  %1075 = vmatprep.subr.mxu0 0.0
  %1076 = vmatpush2.msra.mxu0 0.0
  %1077 = vmatprep.subr.mxu0 0.0
  %1078 = vmatpush2.msra.mxu0 0.0
  %1079 = vmatprep.subr.mxu0 0.0
  %1080 = vmatpush2.msra.mxu0 0.0
  %1081 = vmatprep.mubr.f32.mxu0 0.0
  %1082 = vmatmul.mubr.f32.gmra.mxu0 %v881
  %v1083 = vpop.f32.mrf.mxu0
  %v1084 = vadd.f32 0.0, %v1083
  %v1085 = vpop.f32.mrf.mxu0
  %v1086 = vadd.f32 0.0, %v1085
  %1087 = vdwg.mxu0
  %v1088 = vadd.f32 %v877, %v1013
  %v1089 = vadd.f32 %v878, %v1015
  %v1090 = vadd.f32 %v879, %v1084
  %v1091 = vadd.f32 %v880, %v1086
  %v1092 = vxor.u32 %v1088, 2147483648
  %v1093 = vmul.f32 %v1092, 1.442695
  %v1094 = vpow.pop %v1093
  %v1095 = vadd.f32 %v1094, 1.0
  %v1096 = vrcp.pop %v1095
  %v1097 = vmul.f32 1.0, %v1096
  %v1098 = vxor.u32 %v1089, 2147483648
  %v1099 = vmul.f32 %v1098, 1.442695
  %v1100 = vpow.pop %v1099
  %v1101 = vadd.f32 %v1100, 1.0
  %v1102 = vrcp.pop %v1101
  %v1103 = vmul.f32 1.0, %v1102
  %v1104 = vtanh.pop %v1090
  %v1105 = vxor.u32 %v1091, 2147483648
  %v1106 = vmul.f32 %v1105, 1.442695
  %v1107 = vpow.pop %v1106
  %v1108 = vadd.f32 %v1107, 1.0
  %v1109 = vrcp.pop %v1108
  %v1110 = vmul.f32 1.0, %v1109
  %v1111 = vld [vmem:[#allocation5] sm:$0xff]
  %v1112 = vmul.f32 %v1103, %v1111
  %v1113 = vmul.f32 %v1097, %v1104
  %v1114 = vadd.f32 %v1112, %v1113
  %v1115 = vtanh.pop %v1114
  %v1116 = vmul.f32 %v1110, %v1115
  %1117 = vst [vmem:[#allocation5] sm:$0xff] %v1114
  %1118 = vst [vmem:[#allocation4] sm:$0xff] %v1116
  %s1119 = scalar_lea.vmem [#allocation3], 16
  %1120 = vst [vmem:[%s1119] sm:$0xff] %v1116
  %s1121 = smul.u32 3, 4
  %s1122 = smul.addr %s1121, 8
  %s1123 = scalar_lea.vmem [#allocation2], %s1122
  %v1124 = vld [vmem:[%s1123] sm:$0xff]
  %v1125 = vld [vmem:[%s1123 + $0x8] sm:$0xff]
  %v1126 = vld [vmem:[%s1123 + $0x10] sm:$0xff]
  %v1127 = vld [vmem:[%s1123 + $0x18] sm:$0xff]
  %v1128 = vld [vmem:[#allocation4] sm:$0xff]
  %v1129 = vld [vmem:[%s2] sm:$0xff]
  %v1130 = vld [vmem:[%s2 + $0x8] sm:$0xff]
  %v1131 = vld [vmem:[%s2 + $0x10] sm:$0xff]
  %v1132 = vld [vmem:[%s2 + $0x18] sm:$0xff]
  %v1133 = vld [vmem:[%s2 + $0x20] sm:$0xff]
  %v1134 = vld [vmem:[%s2 + $0x28] sm:$0xff]
  %v1135 = vld [vmem:[%s2 + $0x30] sm:$0xff]
  %v1136 = vld [vmem:[%s2 + $0x38] sm:$0xff]
  %v1137 = vld [vmem:[%s2 + $0x40] sm:$0xff]
  %v1138 = vld [vmem:[%s2 + $0x48] sm:$0xff]
  %v1139 = vld [vmem:[%s2 + $0x50] sm:$0xff]
  %v1140 = vld [vmem:[%s2 + $0x58] sm:$0xff]
  %v1141 = vld [vmem:[%s2 + $0x60] sm:$0xff]
  %v1142 = vld [vmem:[%s2 + $0x68] sm:$0xff]
  %v1143 = vld [vmem:[%s2 + $0x70] sm:$0xff]
  %v1144 = vld [vmem:[%s2 + $0x78] sm:$0xff]
  %v1145 = vld [vmem:[%s2 + $0x80] sm:$0xff]
  %v1146 = vld [vmem:[%s2 + $0x88] sm:$0xff]
  %v1147 = vld [vmem:[%s2 + $0x90] sm:$0xff]
  %v1148 = vld [vmem:[%s2 + $0x98] sm:$0xff]
  %v1149 = vld [vmem:[%s2 + $0xa0] sm:$0xff]
  %v1150 = vld [vmem:[%s2 + $0xa8] sm:$0xff]
  %v1151 = vld [vmem:[%s2 + $0xb0] sm:$0xff]
  %v1152 = vld [vmem:[%s2 + $0xb8] sm:$0xff]
  %v1153 = vld [vmem:[%s2 + $0xc0] sm:$0xff]
  %v1154 = vld [vmem:[%s2 + $0xc8] sm:$0xff]
  %v1155 = vld [vmem:[%s2 + $0xd0] sm:$0xff]
  %v1156 = vld [vmem:[%s2 + $0xd8] sm:$0xff]
  %v1157 = vld [vmem:[%s2 + $0xe0] sm:$0xff]
  %v1158 = vld [vmem:[%s2 + $0xe8] sm:$0xff]
  %v1159 = vld [vmem:[%s2 + $0xf0] sm:$0xff]
  %v1160 = vld [vmem:[%s2 + $0xf8] sm:$0xff]
  %v1161 = vld [vmem:[%s2 + $0x100] sm:$0xff]
  %v1162 = vld [vmem:[%s2 + $0x108] sm:$0xff]
  %v1163 = vld [vmem:[%s2 + $0x110] sm:$0xff]
  %v1164 = vld [vmem:[%s2 + $0x118] sm:$0xff]
  %v1165 = vld [vmem:[%s2 + $0x120] sm:$0xff]
  %v1166 = vld [vmem:[%s2 + $0x128] sm:$0xff]
  %v1167 = vld [vmem:[%s2 + $0x130] sm:$0xff]
  %v1168 = vld [vmem:[%s2 + $0x138] sm:$0xff]
  %v1169 = vld [vmem:[%s2 + $0x140] sm:$0xff]
  %v1170 = vld [vmem:[%s2 + $0x148] sm:$0xff]
  %v1171 = vld [vmem:[%s2 + $0x150] sm:$0xff]
  %v1172 = vld [vmem:[%s2 + $0x158] sm:$0xff]
  %v1173 = vld [vmem:[%s2 + $0x160] sm:$0xff]
  %v1174 = vld [vmem:[%s2 + $0x168] sm:$0xff]
  %v1175 = vld [vmem:[%s2 + $0x170] sm:$0xff]
  %v1176 = vld [vmem:[%s2 + $0x178] sm:$0xff]
  %v1177 = vld [vmem:[%s2 + $0x180] sm:$0xff]
  %v1178 = vld [vmem:[%s2 + $0x188] sm:$0xff]
  %v1179 = vld [vmem:[%s2 + $0x190] sm:$0xff]
  %v1180 = vld [vmem:[%s2 + $0x198] sm:$0xff]
  %v1181 = vld [vmem:[%s2 + $0x1a0] sm:$0xff]
  %v1182 = vld [vmem:[%s2 + $0x1a8] sm:$0xff]
  %v1183 = vld [vmem:[%s2 + $0x1b0] sm:$0xff]
  %v1184 = vld [vmem:[%s2 + $0x1b8] sm:$0xff]
  %v1185 = vld [vmem:[%s2 + $0x1c0] sm:$0xff]
  %v1186 = vld [vmem:[%s2 + $0x1c8] sm:$0xff]
  %v1187 = vld [vmem:[%s2 + $0x1d0] sm:$0xff]
  %v1188 = vld [vmem:[%s2 + $0x1d8] sm:$0xff]
  %v1189 = vld [vmem:[%s2 + $0x1e0] sm:$0xff]
  %v1190 = vld [vmem:[%s2 + $0x1e8] sm:$0xff]
  %v1191 = vld [vmem:[%s2 + $0x1f0] sm:$0xff]
  %v1192 = vld [vmem:[%s2 + $0x1f8] sm:$0xff]
  %1193 = vmatprep.subr.mxu0 %v1190
  %1194 = vmatpush1.msra.mxu0 %v1189
  %1195 = vmatprep.subr.mxu0 %v1186
  %1196 = vmatpush1.msra.mxu0 %v1185
  %1197 = vmatprep.subr.mxu0 %v1182
  %1198 = vmatpush1.msra.mxu0 %v1181
  %1199 = vmatprep.subr.mxu0 %v1178
  %1200 = vmatpush1.msra.mxu0 %v1177
  %1201 = vmatprep.subr.mxu0 %v1174
  %1202 = vmatpush1.msra.mxu0 %v1173
  %1203 = vmatprep.subr.mxu0 %v1170
  %1204 = vmatpush1.msra.mxu0 %v1169
  %1205 = vmatprep.subr.mxu0 %v1166
  %1206 = vmatpush1.msra.mxu0 %v1165
  %1207 = vmatprep.subr.mxu0 %v1162
  %1208 = vmatpush1.msra.mxu0 %v1161
  %1209 = vmatprep.subr.mxu0 %v1158
  %1210 = vmatpush1.msra.mxu0 %v1157
  %1211 = vmatprep.subr.mxu0 %v1154
  %1212 = vmatpush1.msra.mxu0 %v1153
  %1213 = vmatprep.subr.mxu0 %v1150
  %1214 = vmatpush1.msra.mxu0 %v1149
  %1215 = vmatprep.subr.mxu0 %v1146
  %1216 = vmatpush1.msra.mxu0 %v1145
  %1217 = vmatprep.subr.mxu0 %v1142
  %1218 = vmatpush1.msra.mxu0 %v1141
  %1219 = vmatprep.subr.mxu0 %v1138
  %1220 = vmatpush1.msra.mxu0 %v1137
  %1221 = vmatprep.subr.mxu0 %v1134
  %1222 = vmatpush1.msra.mxu0 %v1133
  %1223 = vmatprep.subr.mxu0 %v1130
  %1224 = vmatpush1.msra.mxu0 %v1129
  %1225 = vmatprep.subr.mxu0 0.0
  %1226 = vmatpush2.msra.mxu0 0.0
  %1227 = vmatprep.subr.mxu0 0.0
  %1228 = vmatpush2.msra.mxu0 0.0
  %1229 = vmatprep.subr.mxu0 0.0
  %1230 = vmatpush2.msra.mxu0 0.0
  %1231 = vmatprep.subr.mxu0 0.0
  %1232 = vmatpush2.msra.mxu0 0.0
  %1233 = vmatprep.subr.mxu0 0.0
  %1234 = vmatpush2.msra.mxu0 0.0
  %1235 = vmatprep.subr.mxu0 0.0
  %1236 = vmatpush2.msra.mxu0 0.0
  %1237 = vmatprep.subr.mxu0 0.0
  %1238 = vmatpush2.msra.mxu0 0.0
  %1239 = vmatprep.subr.mxu0 0.0
  %1240 = vmatpush2.msra.mxu0 0.0
  %1241 = vmatprep.subr.mxu0 0.0
  %1242 = vmatpush2.msra.mxu0 0.0
  %1243 = vmatprep.subr.mxu0 0.0
  %1244 = vmatpush2.msra.mxu0 0.0
  %1245 = vmatprep.subr.mxu0 0.0
  %1246 = vmatpush2.msra.mxu0 0.0
  %1247 = vmatprep.subr.mxu0 0.0
  %1248 = vmatpush2.msra.mxu0 0.0
  %1249 = vmatprep.subr.mxu0 0.0
  %1250 = vmatpush2.msra.mxu0 0.0
  %1251 = vmatprep.subr.mxu0 0.0
  %1252 = vmatpush2.msra.mxu0 0.0
  %1253 = vmatprep.subr.mxu0 0.0
  %1254 = vmatpush2.msra.mxu0 0.0
  %1255 = vmatprep.subr.mxu0 0.0
  %1256 = vmatpush2.msra.mxu0 0.0
  %1257 = vmatprep.mubr.f32.mxu0 0.0
  %1258 = vmatmul.mubr.f32.gmra.mxu0 %v1128
  %v1259 = vpop.f32.mrf.mxu0
  %v1260 = vadd.f32 0.0, %v1259
  %v1261 = vpop.f32.mrf.mxu0
  %v1262 = vadd.f32 0.0, %v1261
  %1263 = vdwg.mxu0
  %1264 = vmatprep.subr.mxu0 %v1192
  %1265 = vmatpush1.msra.mxu0 %v1191
  %1266 = vmatprep.subr.mxu0 %v1188
  %1267 = vmatpush1.msra.mxu0 %v1187
  %1268 = vmatprep.subr.mxu0 %v1184
  %1269 = vmatpush1.msra.mxu0 %v1183
  %1270 = vmatprep.subr.mxu0 %v1180
  %1271 = vmatpush1.msra.mxu0 %v1179
  %1272 = vmatprep.subr.mxu0 %v1176
  %1273 = vmatpush1.msra.mxu0 %v1175
  %1274 = vmatprep.subr.mxu0 %v1172
  %1275 = vmatpush1.msra.mxu0 %v1171
  %1276 = vmatprep.subr.mxu0 %v1168
  %1277 = vmatpush1.msra.mxu0 %v1167
  %1278 = vmatprep.subr.mxu0 %v1164
  %1279 = vmatpush1.msra.mxu0 %v1163
  %1280 = vmatprep.subr.mxu0 %v1160
  %1281 = vmatpush1.msra.mxu0 %v1159
  %1282 = vmatprep.subr.mxu0 %v1156
  %1283 = vmatpush1.msra.mxu0 %v1155
  %1284 = vmatprep.subr.mxu0 %v1152
  %1285 = vmatpush1.msra.mxu0 %v1151
  %1286 = vmatprep.subr.mxu0 %v1148
  %1287 = vmatpush1.msra.mxu0 %v1147
  %1288 = vmatprep.subr.mxu0 %v1144
  %1289 = vmatpush1.msra.mxu0 %v1143
  %1290 = vmatprep.subr.mxu0 %v1140
  %1291 = vmatpush1.msra.mxu0 %v1139
  %1292 = vmatprep.subr.mxu0 %v1136
  %1293 = vmatpush1.msra.mxu0 %v1135
  %1294 = vmatprep.subr.mxu0 %v1132
  %1295 = vmatpush1.msra.mxu0 %v1131
  %1296 = vmatprep.subr.mxu0 0.0
  %1297 = vmatpush2.msra.mxu0 0.0
  %1298 = vmatprep.subr.mxu0 0.0
  %1299 = vmatpush2.msra.mxu0 0.0
  %1300 = vmatprep.subr.mxu0 0.0
  %1301 = vmatpush2.msra.mxu0 0.0
  %1302 = vmatprep.subr.mxu0 0.0
  %1303 = vmatpush2.msra.mxu0 0.0
  %1304 = vmatprep.subr.mxu0 0.0
  %1305 = vmatpush2.msra.mxu0 0.0
  %1306 = vmatprep.subr.mxu0 0.0
  %1307 = vmatpush2.msra.mxu0 0.0
  %1308 = vmatprep.subr.mxu0 0.0
  %1309 = vmatpush2.msra.mxu0 0.0
  %1310 = vmatprep.subr.mxu0 0.0
  %1311 = vmatpush2.msra.mxu0 0.0
  %1312 = vmatprep.subr.mxu0 0.0
  %1313 = vmatpush2.msra.mxu0 0.0
  %1314 = vmatprep.subr.mxu0 0.0
  %1315 = vmatpush2.msra.mxu0 0.0
  %1316 = vmatprep.subr.mxu0 0.0
  %1317 = vmatpush2.msra.mxu0 0.0
  %1318 = vmatprep.subr.mxu0 0.0
  %1319 = vmatpush2.msra.mxu0 0.0
  %1320 = vmatprep.subr.mxu0 0.0
  %1321 = vmatpush2.msra.mxu0 0.0
  %1322 = vmatprep.subr.mxu0 0.0
  %1323 = vmatpush2.msra.mxu0 0.0
  %1324 = vmatprep.subr.mxu0 0.0
  %1325 = vmatpush2.msra.mxu0 0.0
  %1326 = vmatprep.subr.mxu0 0.0
  %1327 = vmatpush2.msra.mxu0 0.0
  %1328 = vmatprep.mubr.f32.mxu0 0.0
  %1329 = vmatmul.mubr.f32.gmra.mxu0 %v1128
  %v1330 = vpop.f32.mrf.mxu0
  %v1331 = vadd.f32 0.0, %v1330
  %v1332 = vpop.f32.mrf.mxu0
  %v1333 = vadd.f32 0.0, %v1332
  %1334 = vdwg.mxu0
  %v1335 = vadd.f32 %v1124, %v1260
  %v1336 = vadd.f32 %v1125, %v1262
  %v1337 = vadd.f32 %v1126, %v1331
  %v1338 = vadd.f32 %v1127, %v1333
  %v1339 = vxor.u32 %v1335, 2147483648
  %v1340 = vmul.f32 %v1339, 1.442695
  %v1341 = vpow.pop %v1340
  %v1342 = vadd.f32 %v1341, 1.0
  %v1343 = vrcp.pop %v1342
  %v1344 = vmul.f32 1.0, %v1343
  %v1345 = vxor.u32 %v1336, 2147483648
  %v1346 = vmul.f32 %v1345, 1.442695
  %v1347 = vpow.pop %v1346
  %v1348 = vadd.f32 %v1347, 1.0
  %v1349 = vrcp.pop %v1348
  %v1350 = vmul.f32 1.0, %v1349
  %v1351 = vtanh.pop %v1337
  %v1352 = vxor.u32 %v1338, 2147483648
  %v1353 = vmul.f32 %v1352, 1.442695
  %v1354 = vpow.pop %v1353
  %v1355 = vadd.f32 %v1354, 1.0
  %v1356 = vrcp.pop %v1355
  %v1357 = vmul.f32 1.0, %v1356
  %v1358 = vld [vmem:[#allocation5] sm:$0xff]
  %v1359 = vmul.f32 %v1350, %v1358
  %v1360 = vmul.f32 %v1344, %v1351
  %v1361 = vadd.f32 %v1359, %v1360
  %v1362 = vtanh.pop %v1361
  %v1363 = vmul.f32 %v1357, %v1362
  %1364 = vst [vmem:[#allocation5] sm:$0xff] %v1361
  %1365 = vst [vmem:[#allocation4] sm:$0xff] %v1363
  %s1366 = scalar_lea.vmem [#allocation3], 24
  %1367 = vst [vmem:[%s1366] sm:$0xff] %v1363
  %s1368 = smul.u32 4, 4
  %s1369 = smul.addr %s1368, 8
  %s1370 = scalar_lea.vmem [#allocation2], %s1369
  %v1371 = vld [vmem:[%s1370] sm:$0xff]
  %v1372 = vld [vmem:[%s1370 + $0x8] sm:$0xff]
  %v1373 = vld [vmem:[%s1370 + $0x10] sm:$0xff]
  %v1374 = vld [vmem:[%s1370 + $0x18] sm:$0xff]
  %v1375 = vld [vmem:[#allocation4] sm:$0xff]
  %v1376 = vld [vmem:[%s2] sm:$0xff]
  %v1377 = vld [vmem:[%s2 + $0x8] sm:$0xff]
  %v1378 = vld [vmem:[%s2 + $0x10] sm:$0xff]
  %v1379 = vld [vmem:[%s2 + $0x18] sm:$0xff]
  %v1380 = vld [vmem:[%s2 + $0x20] sm:$0xff]
  %v1381 = vld [vmem:[%s2 + $0x28] sm:$0xff]
  %v1382 = vld [vmem:[%s2 + $0x30] sm:$0xff]
  %v1383 = vld [vmem:[%s2 + $0x38] sm:$0xff]
  %v1384 = vld [vmem:[%s2 + $0x40] sm:$0xff]
  %v1385 = vld [vmem:[%s2 + $0x48] sm:$0xff]
  %v1386 = vld [vmem:[%s2 + $0x50] sm:$0xff]
  %v1387 = vld [vmem:[%s2 + $0x58] sm:$0xff]
  %v1388 = vld [vmem:[%s2 + $0x60] sm:$0xff]
  %v1389 = vld [vmem:[%s2 + $0x68] sm:$0xff]
  %v1390 = vld [vmem:[%s2 + $0x70] sm:$0xff]
  %v1391 = vld [vmem:[%s2 + $0x78] sm:$0xff]
  %v1392 = vld [vmem:[%s2 + $0x80] sm:$0xff]
  %v1393 = vld [vmem:[%s2 + $0x88] sm:$0xff]
  %v1394 = vld [vmem:[%s2 + $0x90] sm:$0xff]
  %v1395 = vld [vmem:[%s2 + $0x98] sm:$0xff]
  %v1396 = vld [vmem:[%s2 + $0xa0] sm:$0xff]
  %v1397 = vld [vmem:[%s2 + $0xa8] sm:$0xff]
  %v1398 = vld [vmem:[%s2 + $0xb0] sm:$0xff]
  %v1399 = vld [vmem:[%s2 + $0xb8] sm:$0xff]
  %v1400 = vld [vmem:[%s2 + $0xc0] sm:$0xff]
  %v1401 = vld [vmem:[%s2 + $0xc8] sm:$0xff]
  %v1402 = vld [vmem:[%s2 + $0xd0] sm:$0xff]
  %v1403 = vld [vmem:[%s2 + $0xd8] sm:$0xff]
  %v1404 = vld [vmem:[%s2 + $0xe0] sm:$0xff]
  %v1405 = vld [vmem:[%s2 + $0xe8] sm:$0xff]
  %v1406 = vld [vmem:[%s2 + $0xf0] sm:$0xff]
  %v1407 = vld [vmem:[%s2 + $0xf8] sm:$0xff]
  %v1408 = vld [vmem:[%s2 + $0x100] sm:$0xff]
  %v1409 = vld [vmem:[%s2 + $0x108] sm:$0xff]
  %v1410 = vld [vmem:[%s2 + $0x110] sm:$0xff]
  %v1411 = vld [vmem:[%s2 + $0x118] sm:$0xff]
  %v1412 = vld [vmem:[%s2 + $0x120] sm:$0xff]
  %v1413 = vld [vmem:[%s2 + $0x128] sm:$0xff]
  %v1414 = vld [vmem:[%s2 + $0x130] sm:$0xff]
  %v1415 = vld [vmem:[%s2 + $0x138] sm:$0xff]
  %v1416 = vld [vmem:[%s2 + $0x140] sm:$0xff]
  %v1417 = vld [vmem:[%s2 + $0x148] sm:$0xff]
  %v1418 = vld [vmem:[%s2 + $0x150] sm:$0xff]
  %v1419 = vld [vmem:[%s2 + $0x158] sm:$0xff]
  %v1420 = vld [vmem:[%s2 + $0x160] sm:$0xff]
  %v1421 = vld [vmem:[%s2 + $0x168] sm:$0xff]
  %v1422 = vld [vmem:[%s2 + $0x170] sm:$0xff]
  %v1423 = vld [vmem:[%s2 + $0x178] sm:$0xff]
  %v1424 = vld [vmem:[%s2 + $0x180] sm:$0xff]
  %v1425 = vld [vmem:[%s2 + $0x188] sm:$0xff]
  %v1426 = vld [vmem:[%s2 + $0x190] sm:$0xff]
  %v1427 = vld [vmem:[%s2 + $0x198] sm:$0xff]
  %v1428 = vld [vmem:[%s2 + $0x1a0] sm:$0xff]
  %v1429 = vld [vmem:[%s2 + $0x1a8] sm:$0xff]
  %v1430 = vld [vmem:[%s2 + $0x1b0] sm:$0xff]
  %v1431 = vld [vmem:[%s2 + $0x1b8] sm:$0xff]
  %v1432 = vld [vmem:[%s2 + $0x1c0] sm:$0xff]
  %v1433 = vld [vmem:[%s2 + $0x1c8] sm:$0xff]
  %v1434 = vld [vmem:[%s2 + $0x1d0] sm:$0xff]
  %v1435 = vld [vmem:[%s2 + $0x1d8] sm:$0xff]
  %v1436 = vld [vmem:[%s2 + $0x1e0] sm:$0xff]
  %v1437 = vld [vmem:[%s2 + $0x1e8] sm:$0xff]
  %v1438 = vld [vmem:[%s2 + $0x1f0] sm:$0xff]
  %v1439 = vld [vmem:[%s2 + $0x1f8] sm:$0xff]
  %1440 = vmatprep.subr.mxu0 %v1437
  %1441 = vmatpush1.msra.mxu0 %v1436
  %1442 = vmatprep.subr.mxu0 %v1433
  %1443 = vmatpush1.msra.mxu0 %v1432
  %1444 = vmatprep.subr.mxu0 %v1429
  %1445 = vmatpush1.msra.mxu0 %v1428
  %1446 = vmatprep.subr.mxu0 %v1425
  %1447 = vmatpush1.msra.mxu0 %v1424
  %1448 = vmatprep.subr.mxu0 %v1421
  %1449 = vmatpush1.msra.mxu0 %v1420
  %1450 = vmatprep.subr.mxu0 %v1417
  %1451 = vmatpush1.msra.mxu0 %v1416
  %1452 = vmatprep.subr.mxu0 %v1413
  %1453 = vmatpush1.msra.mxu0 %v1412
  %1454 = vmatprep.subr.mxu0 %v1409
  %1455 = vmatpush1.msra.mxu0 %v1408
  %1456 = vmatprep.subr.mxu0 %v1405
  %1457 = vmatpush1.msra.mxu0 %v1404
  %1458 = vmatprep.subr.mxu0 %v1401
  %1459 = vmatpush1.msra.mxu0 %v1400
  %1460 = vmatprep.subr.mxu0 %v1397
  %1461 = vmatpush1.msra.mxu0 %v1396
  %1462 = vmatprep.subr.mxu0 %v1393
  %1463 = vmatpush1.msra.mxu0 %v1392
  %1464 = vmatprep.subr.mxu0 %v1389
  %1465 = vmatpush1.msra.mxu0 %v1388
  %1466 = vmatprep.subr.mxu0 %v1385
  %1467 = vmatpush1.msra.mxu0 %v1384
  %1468 = vmatprep.subr.mxu0 %v1381
  %1469 = vmatpush1.msra.mxu0 %v1380
  %1470 = vmatprep.subr.mxu0 %v1377
  %1471 = vmatpush1.msra.mxu0 %v1376
  %1472 = vmatprep.subr.mxu0 0.0
  %1473 = vmatpush2.msra.mxu0 0.0
  %1474 = vmatprep.subr.mxu0 0.0
  %1475 = vmatpush2.msra.mxu0 0.0
  %1476 = vmatprep.subr.mxu0 0.0
  %1477 = vmatpush2.msra.mxu0 0.0
  %1478 = vmatprep.subr.mxu0 0.0
  %1479 = vmatpush2.msra.mxu0 0.0
  %1480 = vmatprep.subr.mxu0 0.0
  %1481 = vmatpush2.msra.mxu0 0.0
  %1482 = vmatprep.subr.mxu0 0.0
  %1483 = vmatpush2.msra.mxu0 0.0
  %1484 = vmatprep.subr.mxu0 0.0
  %1485 = vmatpush2.msra.mxu0 0.0
  %1486 = vmatprep.subr.mxu0 0.0
  %1487 = vmatpush2.msra.mxu0 0.0
  %1488 = vmatprep.subr.mxu0 0.0
  %1489 = vmatpush2.msra.mxu0 0.0
  %1490 = vmatprep.subr.mxu0 0.0
  %1491 = vmatpush2.msra.mxu0 0.0
  %1492 = vmatprep.subr.mxu0 0.0
  %1493 = vmatpush2.msra.mxu0 0.0
  %1494 = vmatprep.subr.mxu0 0.0
  %1495 = vmatpush2.msra.mxu0 0.0
  %1496 = vmatprep.subr.mxu0 0.0
  %1497 = vmatpush2.msra.mxu0 0.0
  %1498 = vmatprep.subr.mxu0 0.0
  %1499 = vmatpush2.msra.mxu0 0.0
  %1500 = vmatprep.subr.mxu0 0.0
  %1501 = vmatpush2.msra.mxu0 0.0
  %1502 = vmatprep.subr.mxu0 0.0
  %1503 = vmatpush2.msra.mxu0 0.0
  %1504 = vmatprep.mubr.f32.mxu0 0.0
  %1505 = vmatmul.mubr.f32.gmra.mxu0 %v1375
  %v1506 = vpop.f32.mrf.mxu0
  %v1507 = vadd.f32 0.0, %v1506
  %v1508 = vpop.f32.mrf.mxu0
  %v1509 = vadd.f32 0.0, %v1508
  %1510 = vdwg.mxu0
  %1511 = vmatprep.subr.mxu0 %v1439
  %1512 = vmatpush1.msra.mxu0 %v1438
  %1513 = vmatprep.subr.mxu0 %v1435
  %1514 = vmatpush1.msra.mxu0 %v1434
  %1515 = vmatprep.subr.mxu0 %v1431
  %1516 = vmatpush1.msra.mxu0 %v1430
  %1517 = vmatprep.subr.mxu0 %v1427
  %1518 = vmatpush1.msra.mxu0 %v1426
  %1519 = vmatprep.subr.mxu0 %v1423
  %1520 = vmatpush1.msra.mxu0 %v1422
  %1521 = vmatprep.subr.mxu0 %v1419
  %1522 = vmatpush1.msra.mxu0 %v1418
  %1523 = vmatprep.subr.mxu0 %v1415
  %1524 = vmatpush1.msra.mxu0 %v1414
  %1525 = vmatprep.subr.mxu0 %v1411
  %1526 = vmatpush1.msra.mxu0 %v1410
  %1527 = vmatprep.subr.mxu0 %v1407
  %1528 = vmatpush1.msra.mxu0 %v1406
  %1529 = vmatprep.subr.mxu0 %v1403
  %1530 = vmatpush1.msra.mxu0 %v1402
  %1531 = vmatprep.subr.mxu0 %v1399
  %1532 = vmatpush1.msra.mxu0 %v1398
  %1533 = vmatprep.subr.mxu0 %v1395
  %1534 = vmatpush1.msra.mxu0 %v1394
  %1535 = vmatprep.subr.mxu0 %v1391
  %1536 = vmatpush1.msra.mxu0 %v1390
  %1537 = vmatprep.subr.mxu0 %v1387
  %1538 = vmatpush1.msra.mxu0 %v1386
  %1539 = vmatprep.subr.mxu0 %v1383
  %1540 = vmatpush1.msra.mxu0 %v1382
  %1541 = vmatprep.subr.mxu0 %v1379
  %1542 = vmatpush1.msra.mxu0 %v1378
  %1543 = vmatprep.subr.mxu0 0.0
  %1544 = vmatpush2.msra.mxu0 0.0
  %1545 = vmatprep.subr.mxu0 0.0
  %1546 = vmatpush2.msra.mxu0 0.0
  %1547 = vmatprep.subr.mxu0 0.0
  %1548 = vmatpush2.msra.mxu0 0.0
  %1549 = vmatprep.subr.mxu0 0.0
  %1550 = vmatpush2.msra.mxu0 0.0
  %1551 = vmatprep.subr.mxu0 0.0
  %1552 = vmatpush2.msra.mxu0 0.0
  %1553 = vmatprep.subr.mxu0 0.0
  %1554 = vmatpush2.msra.mxu0 0.0
  %1555 = vmatprep.subr.mxu0 0.0
  %1556 = vmatpush2.msra.mxu0 0.0
  %1557 = vmatprep.subr.mxu0 0.0
  %1558 = vmatpush2.msra.mxu0 0.0
  %1559 = vmatprep.subr.mxu0 0.0
  %1560 = vmatpush2.msra.mxu0 0.0
  %1561 = vmatprep.subr.mxu0 0.0
  %1562 = vmatpush2.msra.mxu0 0.0
  %1563 = vmatprep.subr.mxu0 0.0
  %1564 = vmatpush2.msra.mxu0 0.0
  %1565 = vmatprep.subr.mxu0 0.0
  %1566 = vmatpush2.msra.mxu0 0.0
  %1567 = vmatprep.subr.mxu0 0.0
  %1568 = vmatpush2.msra.mxu0 0.0
  %1569 = vmatprep.subr.mxu0 0.0
  %1570 = vmatpush2.msra.mxu0 0.0
  %1571 = vmatprep.subr.mxu0 0.0
  %1572 = vmatpush2.msra.mxu0 0.0
  %1573 = vmatprep.subr.mxu0 0.0
  %1574 = vmatpush2.msra.mxu0 0.0
  %1575 = vmatprep.mubr.f32.mxu0 0.0
  %1576 = vmatmul.mubr.f32.gmra.mxu0 %v1375
  %v1577 = vpop.f32.mrf.mxu0
  %v1578 = vadd.f32 0.0, %v1577
  %v1579 = vpop.f32.mrf.mxu0
  %v1580 = vadd.f32 0.0, %v1579
  %1581 = vdwg.mxu0
  %v1582 = vadd.f32 %v1371, %v1507
  %v1583 = vadd.f32 %v1372, %v1509
  %v1584 = vadd.f32 %v1373, %v1578
  %v1585 = vadd.f32 %v1374, %v1580
  %v1586 = vxor.u32 %v1582, 2147483648
  %v1587 = vmul.f32 %v1586, 1.442695
  %v1588 = vpow.pop %v1587
  %v1589 = vadd.f32 %v1588, 1.0
  %v1590 = vrcp.pop %v1589
  %v1591 = vmul.f32 1.0, %v1590
  %v1592 = vxor.u32 %v1583, 2147483648
  %v1593 = vmul.f32 %v1592, 1.442695
  %v1594 = vpow.pop %v1593
  %v1595 = vadd.f32 %v1594, 1.0
  %v1596 = vrcp.pop %v1595
  %v1597 = vmul.f32 1.0, %v1596
  %v1598 = vtanh.pop %v1584
  %v1599 = vxor.u32 %v1585, 2147483648
  %v1600 = vmul.f32 %v1599, 1.442695
  %v1601 = vpow.pop %v1600
  %v1602 = vadd.f32 %v1601, 1.0
  %v1603 = vrcp.pop %v1602
  %v1604 = vmul.f32 1.0, %v1603
  %v1605 = vld [vmem:[#allocation5] sm:$0xff]
  %v1606 = vmul.f32 %v1597, %v1605
  %v1607 = vmul.f32 %v1591, %v1598
  %v1608 = vadd.f32 %v1606, %v1607
  %v1609 = vtanh.pop %v1608
  %v1610 = vmul.f32 %v1604, %v1609
  %1611 = vst [vmem:[#allocation5] sm:$0xff] %v1608
  %1612 = vst [vmem:[#allocation4] sm:$0xff] %v1610
  %s1613 = scalar_lea.vmem [#allocation3], 32
  %1614 = vst [vmem:[%s1613] sm:$0xff] %v1610
  %s1615 = smul.u32 5, 4
  %s1616 = smul.addr %s1615, 8
  %s1617 = scalar_lea.vmem [#allocation2], %s1616
  %v1618 = vld [vmem:[%s1617] sm:$0xff]
  %v1619 = vld [vmem:[%s1617 + $0x8] sm:$0xff]
  %v1620 = vld [vmem:[%s1617 + $0x10] sm:$0xff]
  %v1621 = vld [vmem:[%s1617 + $0x18] sm:$0xff]
  %v1622 = vld [vmem:[#allocation4] sm:$0xff]
  %v1623 = vld [vmem:[%s2] sm:$0xff]
  %v1624 = vld [vmem:[%s2 + $0x8] sm:$0xff]
  %v1625 = vld [vmem:[%s2 + $0x10] sm:$0xff]
  %v1626 = vld [vmem:[%s2 + $0x18] sm:$0xff]
  %v1627 = vld [vmem:[%s2 + $0x20] sm:$0xff]
  %v1628 = vld [vmem:[%s2 + $0x28] sm:$0xff]
  %v1629 = vld [vmem:[%s2 + $0x30] sm:$0xff]
  %v1630 = vld [vmem:[%s2 + $0x38] sm:$0xff]
  %v1631 = vld [vmem:[%s2 + $0x40] sm:$0xff]
  %v1632 = vld [vmem:[%s2 + $0x48] sm:$0xff]
  %v1633 = vld [vmem:[%s2 + $0x50] sm:$0xff]
  %v1634 = vld [vmem:[%s2 + $0x58] sm:$0xff]
  %v1635 = vld [vmem:[%s2 + $0x60] sm:$0xff]
  %v1636 = vld [vmem:[%s2 + $0x68] sm:$0xff]
  %v1637 = vld [vmem:[%s2 + $0x70] sm:$0xff]
  %v1638 = vld [vmem:[%s2 + $0x78] sm:$0xff]
  %v1639 = vld [vmem:[%s2 + $0x80] sm:$0xff]
  %v1640 = vld [vmem:[%s2 + $0x88] sm:$0xff]
  %v1641 = vld [vmem:[%s2 + $0x90] sm:$0xff]
  %v1642 = vld [vmem:[%s2 + $0x98] sm:$0xff]
  %v1643 = vld [vmem:[%s2 + $0xa0] sm:$0xff]
  %v1644 = vld [vmem:[%s2 + $0xa8] sm:$0xff]
  %v1645 = vld [vmem:[%s2 + $0xb0] sm:$0xff]
  %v1646 = vld [vmem:[%s2 + $0xb8] sm:$0xff]
  %v1647 = vld [vmem:[%s2 + $0xc0] sm:$0xff]
  %v1648 = vld [vmem:[%s2 + $0xc8] sm:$0xff]
  %v1649 = vld [vmem:[%s2 + $0xd0] sm:$0xff]
  %v1650 = vld [vmem:[%s2 + $0xd8] sm:$0xff]
  %v1651 = vld [vmem:[%s2 + $0xe0] sm:$0xff]
  %v1652 = vld [vmem:[%s2 + $0xe8] sm:$0xff]
  %v1653 = vld [vmem:[%s2 + $0xf0] sm:$0xff]
  %v1654 = vld [vmem:[%s2 + $0xf8] sm:$0xff]
  %v1655 = vld [vmem:[%s2 + $0x100] sm:$0xff]
  %v1656 = vld [vmem:[%s2 + $0x108] sm:$0xff]
  %v1657 = vld [vmem:[%s2 + $0x110] sm:$0xff]
  %v1658 = vld [vmem:[%s2 + $0x118] sm:$0xff]
  %v1659 = vld [vmem:[%s2 + $0x120] sm:$0xff]
  %v1660 = vld [vmem:[%s2 + $0x128] sm:$0xff]
  %v1661 = vld [vmem:[%s2 + $0x130] sm:$0xff]
  %v1662 = vld [vmem:[%s2 + $0x138] sm:$0xff]
  %v1663 = vld [vmem:[%s2 + $0x140] sm:$0xff]
  %v1664 = vld [vmem:[%s2 + $0x148] sm:$0xff]
  %v1665 = vld [vmem:[%s2 + $0x150] sm:$0xff]
  %v1666 = vld [vmem:[%s2 + $0x158] sm:$0xff]
  %v1667 = vld [vmem:[%s2 + $0x160] sm:$0xff]
  %v1668 = vld [vmem:[%s2 + $0x168] sm:$0xff]
  %v1669 = vld [vmem:[%s2 + $0x170] sm:$0xff]
  %v1670 = vld [vmem:[%s2 + $0x178] sm:$0xff]
  %v1671 = vld [vmem:[%s2 + $0x180] sm:$0xff]
  %v1672 = vld [vmem:[%s2 + $0x188] sm:$0xff]
  %v1673 = vld [vmem:[%s2 + $0x190] sm:$0xff]
  %v1674 = vld [vmem:[%s2 + $0x198] sm:$0xff]
  %v1675 = vld [vmem:[%s2 + $0x1a0] sm:$0xff]
  %v1676 = vld [vmem:[%s2 + $0x1a8] sm:$0xff]
  %v1677 = vld [vmem:[%s2 + $0x1b0] sm:$0xff]
  %v1678 = vld [vmem:[%s2 + $0x1b8] sm:$0xff]
  %v1679 = vld [vmem:[%s2 + $0x1c0] sm:$0xff]
  %v1680 = vld [vmem:[%s2 + $0x1c8] sm:$0xff]
  %v1681 = vld [vmem:[%s2 + $0x1d0] sm:$0xff]
  %v1682 = vld [vmem:[%s2 + $0x1d8] sm:$0xff]
  %v1683 = vld [vmem:[%s2 + $0x1e0] sm:$0xff]
  %v1684 = vld [vmem:[%s2 + $0x1e8] sm:$0xff]
  %v1685 = vld [vmem:[%s2 + $0x1f0] sm:$0xff]
  %v1686 = vld [vmem:[%s2 + $0x1f8] sm:$0xff]
  %1687 = vmatprep.subr.mxu0 %v1684
  %1688 = vmatpush1.msra.mxu0 %v1683
  %1689 = vmatprep.subr.mxu0 %v1680
  %1690 = vmatpush1.msra.mxu0 %v1679
  %1691 = vmatprep.subr.mxu0 %v1676
  %1692 = vmatpush1.msra.mxu0 %v1675
  %1693 = vmatprep.subr.mxu0 %v1672
  %1694 = vmatpush1.msra.mxu0 %v1671
  %1695 = vmatprep.subr.mxu0 %v1668
  %1696 = vmatpush1.msra.mxu0 %v1667
  %1697 = vmatprep.subr.mxu0 %v1664
  %1698 = vmatpush1.msra.mxu0 %v1663
  %1699 = vmatprep.subr.mxu0 %v1660
  %1700 = vmatpush1.msra.mxu0 %v1659
  %1701 = vmatprep.subr.mxu0 %v1656
  %1702 = vmatpush1.msra.mxu0 %v1655
  %1703 = vmatprep.subr.mxu0 %v1652
  %1704 = vmatpush1.msra.mxu0 %v1651
  %1705 = vmatprep.subr.mxu0 %v1648
  %1706 = vmatpush1.msra.mxu0 %v1647
  %1707 = vmatprep.subr.mxu0 %v1644
  %1708 = vmatpush1.msra.mxu0 %v1643
  %1709 = vmatprep.subr.mxu0 %v1640
  %1710 = vmatpush1.msra.mxu0 %v1639
  %1711 = vmatprep.subr.mxu0 %v1636
  %1712 = vmatpush1.msra.mxu0 %v1635
  %1713 = vmatprep.subr.mxu0 %v1632
  %1714 = vmatpush1.msra.mxu0 %v1631
  %1715 = vmatprep.subr.mxu0 %v1628
  %1716 = vmatpush1.msra.mxu0 %v1627
  %1717 = vmatprep.subr.mxu0 %v1624
  %1718 = vmatpush1.msra.mxu0 %v1623
  %1719 = vmatprep.subr.mxu0 0.0
  %1720 = vmatpush2.msra.mxu0 0.0
  %1721 = vmatprep.subr.mxu0 0.0
  %1722 = vmatpush2.msra.mxu0 0.0
  %1723 = vmatprep.subr.mxu0 0.0
  %1724 = vmatpush2.msra.mxu0 0.0
  %1725 = vmatprep.subr.mxu0 0.0
  %1726 = vmatpush2.msra.mxu0 0.0
  %1727 = vmatprep.subr.mxu0 0.0
  %1728 = vmatpush2.msra.mxu0 0.0
  %1729 = vmatprep.subr.mxu0 0.0
  %1730 = vmatpush2.msra.mxu0 0.0
  %1731 = vmatprep.subr.mxu0 0.0
  %1732 = vmatpush2.msra.mxu0 0.0
  %1733 = vmatprep.subr.mxu0 0.0
  %1734 = vmatpush2.msra.mxu0 0.0
  %1735 = vmatprep.subr.mxu0 0.0
  %1736 = vmatpush2.msra.mxu0 0.0
  %1737 = vmatprep.subr.mxu0 0.0
  %1738 = vmatpush2.msra.mxu0 0.0
  %1739 = vmatprep.subr.mxu0 0.0
  %1740 = vmatpush2.msra.mxu0 0.0
  %1741 = vmatprep.subr.mxu0 0.0
  %1742 = vmatpush2.msra.mxu0 0.0
  %1743 = vmatprep.subr.mxu0 0.0
  %1744 = vmatpush2.msra.mxu0 0.0
  %1745 = vmatprep.subr.mxu0 0.0
  %1746 = vmatpush2.msra.mxu0 0.0
  %1747 = vmatprep.subr.mxu0 0.0
  %1748 = vmatpush2.msra.mxu0 0.0
  %1749 = vmatprep.subr.mxu0 0.0
  %1750 = vmatpush2.msra.mxu0 0.0
  %1751 = vmatprep.mubr.f32.mxu0 0.0
  %1752 = vmatmul.mubr.f32.gmra.mxu0 %v1622
  %v1753 = vpop.f32.mrf.mxu0
  %v1754 = vadd.f32 0.0, %v1753
  %v1755 = vpop.f32.mrf.mxu0
  %v1756 = vadd.f32 0.0, %v1755
  %1757 = vdwg.mxu0
  %1758 = vmatprep.subr.mxu0 %v1686
  %1759 = vmatpush1.msra.mxu0 %v1685
  %1760 = vmatprep.subr.mxu0 %v1682
  %1761 = vmatpush1.msra.mxu0 %v1681
  %1762 = vmatprep.subr.mxu0 %v1678
  %1763 = vmatpush1.msra.mxu0 %v1677
  %1764 = vmatprep.subr.mxu0 %v1674
  %1765 = vmatpush1.msra.mxu0 %v1673
  %1766 = vmatprep.subr.mxu0 %v1670
  %1767 = vmatpush1.msra.mxu0 %v1669
  %1768 = vmatprep.subr.mxu0 %v1666
  %1769 = vmatpush1.msra.mxu0 %v1665
  %1770 = vmatprep.subr.mxu0 %v1662
  %1771 = vmatpush1.msra.mxu0 %v1661
  %1772 = vmatprep.subr.mxu0 %v1658
  %1773 = vmatpush1.msra.mxu0 %v1657
  %1774 = vmatprep.subr.mxu0 %v1654
  %1775 = vmatpush1.msra.mxu0 %v1653
  %1776 = vmatprep.subr.mxu0 %v1650
  %1777 = vmatpush1.msra.mxu0 %v1649
  %1778 = vmatprep.subr.mxu0 %v1646
  %1779 = vmatpush1.msra.mxu0 %v1645
  %1780 = vmatprep.subr.mxu0 %v1642
  %1781 = vmatpush1.msra.mxu0 %v1641
  %1782 = vmatprep.subr.mxu0 %v1638
  %1783 = vmatpush1.msra.mxu0 %v1637
  %1784 = vmatprep.subr.mxu0 %v1634
  %1785 = vmatpush1.msra.mxu0 %v1633
  %1786 = vmatprep.subr.mxu0 %v1630
  %1787 = vmatpush1.msra.mxu0 %v1629
  %1788 = vmatprep.subr.mxu0 %v1626
  %1789 = vmatpush1.msra.mxu0 %v1625
  %1790 = vmatprep.subr.mxu0 0.0
  %1791 = vmatpush2.msra.mxu0 0.0
  %1792 = vmatprep.subr.mxu0 0.0
  %1793 = vmatpush2.msra.mxu0 0.0
  %1794 = vmatprep.subr.mxu0 0.0
  %1795 = vmatpush2.msra.mxu0 0.0
  %1796 = vmatprep.subr.mxu0 0.0
  %1797 = vmatpush2.msra.mxu0 0.0
  %1798 = vmatprep.subr.mxu0 0.0
  %1799 = vmatpush2.msra.mxu0 0.0
  %1800 = vmatprep.subr.mxu0 0.0
  %1801 = vmatpush2.msra.mxu0 0.0
  %1802 = vmatprep.subr.mxu0 0.0
  %1803 = vmatpush2.msra.mxu0 0.0
  %1804 = vmatprep.subr.mxu0 0.0
  %1805 = vmatpush2.msra.mxu0 0.0
  %1806 = vmatprep.subr.mxu0 0.0
  %1807 = vmatpush2.msra.mxu0 0.0
  %1808 = vmatprep.subr.mxu0 0.0
  %1809 = vmatpush2.msra.mxu0 0.0
  %1810 = vmatprep.subr.mxu0 0.0
  %1811 = vmatpush2.msra.mxu0 0.0
  %1812 = vmatprep.subr.mxu0 0.0
  %1813 = vmatpush2.msra.mxu0 0.0
  %1814 = vmatprep.subr.mxu0 0.0
  %1815 = vmatpush2.msra.mxu0 0.0
  %1816 = vmatprep.subr.mxu0 0.0
  %1817 = vmatpush2.msra.mxu0 0.0
  %1818 = vmatprep.subr.mxu0 0.0
  %1819 = vmatpush2.msra.mxu0 0.0
  %1820 = vmatprep.subr.mxu0 0.0
  %1821 = vmatpush2.msra.mxu0 0.0
  %1822 = vmatprep.mubr.f32.mxu0 0.0
  %1823 = vmatmul.mubr.f32.gmra.mxu0 %v1622
  %v1824 = vpop.f32.mrf.mxu0
  %v1825 = vadd.f32 0.0, %v1824
  %v1826 = vpop.f32.mrf.mxu0
  %v1827 = vadd.f32 0.0, %v1826
  %1828 = vdwg.mxu0
  %v1829 = vadd.f32 %v1618, %v1754
  %v1830 = vadd.f32 %v1619, %v1756
  %v1831 = vadd.f32 %v1620, %v1825
  %v1832 = vadd.f32 %v1621, %v1827
  %v1833 = vxor.u32 %v1829, 2147483648
  %v1834 = vmul.f32 %v1833, 1.442695
  %v1835 = vpow.pop %v1834
  %v1836 = vadd.f32 %v1835, 1.0
  %v1837 = vrcp.pop %v1836
  %v1838 = vmul.f32 1.0, %v1837
  %v1839 = vxor.u32 %v1830, 2147483648
  %v1840 = vmul.f32 %v1839, 1.442695
  %v1841 = vpow.pop %v1840
  %v1842 = vadd.f32 %v1841, 1.0
  %v1843 = vrcp.pop %v1842
  %v1844 = vmul.f32 1.0, %v1843
  %v1845 = vtanh.pop %v1831
  %v1846 = vxor.u32 %v1832, 2147483648
  %v1847 = vmul.f32 %v1846, 1.442695
  %v1848 = vpow.pop %v1847
  %v1849 = vadd.f32 %v1848, 1.0
  %v1850 = vrcp.pop %v1849
  %v1851 = vmul.f32 1.0, %v1850
  %v1852 = vld [vmem:[#allocation5] sm:$0xff]
  %v1853 = vmul.f32 %v1844, %v1852
  %v1854 = vmul.f32 %v1838, %v1845
  %v1855 = vadd.f32 %v1853, %v1854
  %v1856 = vtanh.pop %v1855
  %v1857 = vmul.f32 %v1851, %v1856
  %1858 = vst [vmem:[#allocation5] sm:$0xff] %v1855
  %1859 = vst [vmem:[#allocation4] sm:$0xff] %v1857
  %s1860 = scalar_lea.vmem [#allocation3], 40
  %1861 = vst [vmem:[%s1860] sm:$0xff] %v1857
  %s1862 = smul.u32 6, 4
  %s1863 = smul.addr %s1862, 8
  %s1864 = scalar_lea.vmem [#allocation2], %s1863
  %v1865 = vld [vmem:[%s1864] sm:$0xff]
  %v1866 = vld [vmem:[%s1864 + $0x8] sm:$0xff]
  %v1867 = vld [vmem:[%s1864 + $0x10] sm:$0xff]
  %v1868 = vld [vmem:[%s1864 + $0x18] sm:$0xff]
  %v1869 = vld [vmem:[#allocation4] sm:$0xff]
  %v1870 = vld [vmem:[%s2] sm:$0xff]
  %v1871 = vld [vmem:[%s2 + $0x8] sm:$0xff]
  %v1872 = vld [vmem:[%s2 + $0x10] sm:$0xff]
  %v1873 = vld [vmem:[%s2 + $0x18] sm:$0xff]
  %v1874 = vld [vmem:[%s2 + $0x20] sm:$0xff]
  %v1875 = vld [vmem:[%s2 + $0x28] sm:$0xff]
  %v1876 = vld [vmem:[%s2 + $0x30] sm:$0xff]
  %v1877 = vld [vmem:[%s2 + $0x38] sm:$0xff]
  %v1878 = vld [vmem:[%s2 + $0x40] sm:$0xff]
  %v1879 = vld [vmem:[%s2 + $0x48] sm:$0xff]
  %v1880 = vld [vmem:[%s2 + $0x50] sm:$0xff]
  %v1881 = vld [vmem:[%s2 + $0x58] sm:$0xff]
  %v1882 = vld [vmem:[%s2 + $0x60] sm:$0xff]
  %v1883 = vld [vmem:[%s2 + $0x68] sm:$0xff]
  %v1884 = vld [vmem:[%s2 + $0x70] sm:$0xff]
  %v1885 = vld [vmem:[%s2 + $0x78] sm:$0xff]
  %v1886 = vld [vmem:[%s2 + $0x80] sm:$0xff]
  %v1887 = vld [vmem:[%s2 + $0x88] sm:$0xff]
  %v1888 = vld [vmem:[%s2 + $0x90] sm:$0xff]
  %v1889 = vld [vmem:[%s2 + $0x98] sm:$0xff]
  %v1890 = vld [vmem:[%s2 + $0xa0] sm:$0xff]
  %v1891 = vld [vmem:[%s2 + $0xa8] sm:$0xff]
  %v1892 = vld [vmem:[%s2 + $0xb0] sm:$0xff]
  %v1893 = vld [vmem:[%s2 + $0xb8] sm:$0xff]
  %v1894 = vld [vmem:[%s2 + $0xc0] sm:$0xff]
  %v1895 = vld [vmem:[%s2 + $0xc8] sm:$0xff]
  %v1896 = vld [vmem:[%s2 + $0xd0] sm:$0xff]
  %v1897 = vld [vmem:[%s2 + $0xd8] sm:$0xff]
  %v1898 = vld [vmem:[%s2 + $0xe0] sm:$0xff]
  %v1899 = vld [vmem:[%s2 + $0xe8] sm:$0xff]
  %v1900 = vld [vmem:[%s2 + $0xf0] sm:$0xff]
  %v1901 = vld [vmem:[%s2 + $0xf8] sm:$0xff]
  %v1902 = vld [vmem:[%s2 + $0x100] sm:$0xff]
  %v1903 = vld [vmem:[%s2 + $0x108] sm:$0xff]
  %v1904 = vld [vmem:[%s2 + $0x110] sm:$0xff]
  %v1905 = vld [vmem:[%s2 + $0x118] sm:$0xff]
  %v1906 = vld [vmem:[%s2 + $0x120] sm:$0xff]
  %v1907 = vld [vmem:[%s2 + $0x128] sm:$0xff]
  %v1908 = vld [vmem:[%s2 + $0x130] sm:$0xff]
  %v1909 = vld [vmem:[%s2 + $0x138] sm:$0xff]
  %v1910 = vld [vmem:[%s2 + $0x140] sm:$0xff]
  %v1911 = vld [vmem:[%s2 + $0x148] sm:$0xff]
  %v1912 = vld [vmem:[%s2 + $0x150] sm:$0xff]
  %v1913 = vld [vmem:[%s2 + $0x158] sm:$0xff]
  %v1914 = vld [vmem:[%s2 + $0x160] sm:$0xff]
  %v1915 = vld [vmem:[%s2 + $0x168] sm:$0xff]
  %v1916 = vld [vmem:[%s2 + $0x170] sm:$0xff]
  %v1917 = vld [vmem:[%s2 + $0x178] sm:$0xff]
  %v1918 = vld [vmem:[%s2 + $0x180] sm:$0xff]
  %v1919 = vld [vmem:[%s2 + $0x188] sm:$0xff]
  %v1920 = vld [vmem:[%s2 + $0x190] sm:$0xff]
  %v1921 = vld [vmem:[%s2 + $0x198] sm:$0xff]
  %v1922 = vld [vmem:[%s2 + $0x1a0] sm:$0xff]
  %v1923 = vld [vmem:[%s2 + $0x1a8] sm:$0xff]
  %v1924 = vld [vmem:[%s2 + $0x1b0] sm:$0xff]
  %v1925 = vld [vmem:[%s2 + $0x1b8] sm:$0xff]
  %v1926 = vld [vmem:[%s2 + $0x1c0] sm:$0xff]
  %v1927 = vld [vmem:[%s2 + $0x1c8] sm:$0xff]
  %v1928 = vld [vmem:[%s2 + $0x1d0] sm:$0xff]
  %v1929 = vld [vmem:[%s2 + $0x1d8] sm:$0xff]
  %v1930 = vld [vmem:[%s2 + $0x1e0] sm:$0xff]
  %v1931 = vld [vmem:[%s2 + $0x1e8] sm:$0xff]
  %v1932 = vld [vmem:[%s2 + $0x1f0] sm:$0xff]
  %v1933 = vld [vmem:[%s2 + $0x1f8] sm:$0xff]
  %1934 = vmatprep.subr.mxu0 %v1931
  %1935 = vmatpush1.msra.mxu0 %v1930
  %1936 = vmatprep.subr.mxu0 %v1927
  %1937 = vmatpush1.msra.mxu0 %v1926
  %1938 = vmatprep.subr.mxu0 %v1923
  %1939 = vmatpush1.msra.mxu0 %v1922
  %1940 = vmatprep.subr.mxu0 %v1919
  %1941 = vmatpush1.msra.mxu0 %v1918
  %1942 = vmatprep.subr.mxu0 %v1915
  %1943 = vmatpush1.msra.mxu0 %v1914
  %1944 = vmatprep.subr.mxu0 %v1911
  %1945 = vmatpush1.msra.mxu0 %v1910
  %1946 = vmatprep.subr.mxu0 %v1907
  %1947 = vmatpush1.msra.mxu0 %v1906
  %1948 = vmatprep.subr.mxu0 %v1903
  %1949 = vmatpush1.msra.mxu0 %v1902
  %1950 = vmatprep.subr.mxu0 %v1899
  %1951 = vmatpush1.msra.mxu0 %v1898
  %1952 = vmatprep.subr.mxu0 %v1895
  %1953 = vmatpush1.msra.mxu0 %v1894
  %1954 = vmatprep.subr.mxu0 %v1891
  %1955 = vmatpush1.msra.mxu0 %v1890
  %1956 = vmatprep.subr.mxu0 %v1887
  %1957 = vmatpush1.msra.mxu0 %v1886
  %1958 = vmatprep.subr.mxu0 %v1883
  %1959 = vmatpush1.msra.mxu0 %v1882
  %1960 = vmatprep.subr.mxu0 %v1879
  %1961 = vmatpush1.msra.mxu0 %v1878
  %1962 = vmatprep.subr.mxu0 %v1875
  %1963 = vmatpush1.msra.mxu0 %v1874
  %1964 = vmatprep.subr.mxu0 %v1871
  %1965 = vmatpush1.msra.mxu0 %v1870
  %1966 = vmatprep.subr.mxu0 0.0
  %1967 = vmatpush2.msra.mxu0 0.0
  %1968 = vmatprep.subr.mxu0 0.0
  %1969 = vmatpush2.msra.mxu0 0.0
  %1970 = vmatprep.subr.mxu0 0.0
  %1971 = vmatpush2.msra.mxu0 0.0
  %1972 = vmatprep.subr.mxu0 0.0
  %1973 = vmatpush2.msra.mxu0 0.0
  %1974 = vmatprep.subr.mxu0 0.0
  %1975 = vmatpush2.msra.mxu0 0.0
  %1976 = vmatprep.subr.mxu0 0.0
  %1977 = vmatpush2.msra.mxu0 0.0
  %1978 = vmatprep.subr.mxu0 0.0
  %1979 = vmatpush2.msra.mxu0 0.0
  %1980 = vmatprep.subr.mxu0 0.0
  %1981 = vmatpush2.msra.mxu0 0.0
  %1982 = vmatprep.subr.mxu0 0.0
  %1983 = vmatpush2.msra.mxu0 0.0
  %1984 = vmatprep.subr.mxu0 0.0
  %1985 = vmatpush2.msra.mxu0 0.0
  %1986 = vmatprep.subr.mxu0 0.0
  %1987 = vmatpush2.msra.mxu0 0.0
  %1988 = vmatprep.subr.mxu0 0.0
  %1989 = vmatpush2.msra.mxu0 0.0
  %1990 = vmatprep.subr.mxu0 0.0
  %1991 = vmatpush2.msra.mxu0 0.0
  %1992 = vmatprep.subr.mxu0 0.0
  %1993 = vmatpush2.msra.mxu0 0.0
  %1994 = vmatprep.subr.mxu0 0.0
  %1995 = vmatpush2.msra.mxu0 0.0
  %1996 = vmatprep.subr.mxu0 0.0
  %1997 = vmatpush2.msra.mxu0 0.0
  %1998 = vmatprep.mubr.f32.mxu0 0.0
  %1999 = vmatmul.mubr.f32.gmra.mxu0 %v1869
  %v2000 = vpop.f32.mrf.mxu0
  %v2001 = vadd.f32 0.0, %v2000
  %v2002 = vpop.f32.mrf.mxu0
  %v2003 = vadd.f32 0.0, %v2002
  %2004 = vdwg.mxu0
  %2005 = vmatprep.subr.mxu0 %v1933
  %2006 = vmatpush1.msra.mxu0 %v1932
  %2007 = vmatprep.subr.mxu0 %v1929
  %2008 = vmatpush1.msra.mxu0 %v1928
  %2009 = vmatprep.subr.mxu0 %v1925
  %2010 = vmatpush1.msra.mxu0 %v1924
  %2011 = vmatprep.subr.mxu0 %v1921
  %2012 = vmatpush1.msra.mxu0 %v1920
  %2013 = vmatprep.subr.mxu0 %v1917
  %2014 = vmatpush1.msra.mxu0 %v1916
  %2015 = vmatprep.subr.mxu0 %v1913
  %2016 = vmatpush1.msra.mxu0 %v1912
  %2017 = vmatprep.subr.mxu0 %v1909
  %2018 = vmatpush1.msra.mxu0 %v1908
  %2019 = vmatprep.subr.mxu0 %v1905
  %2020 = vmatpush1.msra.mxu0 %v1904
  %2021 = vmatprep.subr.mxu0 %v1901
  %2022 = vmatpush1.msra.mxu0 %v1900
  %2023 = vmatprep.subr.mxu0 %v1897
  %2024 = vmatpush1.msra.mxu0 %v1896
  %2025 = vmatprep.subr.mxu0 %v1893
  %2026 = vmatpush1.msra.mxu0 %v1892
  %2027 = vmatprep.subr.mxu0 %v1889
  %2028 = vmatpush1.msra.mxu0 %v1888
  %2029 = vmatprep.subr.mxu0 %v1885
  %2030 = vmatpush1.msra.mxu0 %v1884
  %2031 = vmatprep.subr.mxu0 %v1881
  %2032 = vmatpush1.msra.mxu0 %v1880
  %2033 = vmatprep.subr.mxu0 %v1877
  %2034 = vmatpush1.msra.mxu0 %v1876
  %2035 = vmatprep.subr.mxu0 %v1873
  %2036 = vmatpush1.msra.mxu0 %v1872
  %2037 = vmatprep.subr.mxu0 0.0
  %2038 = vmatpush2.msra.mxu0 0.0
  %2039 = vmatprep.subr.mxu0 0.0
  %2040 = vmatpush2.msra.mxu0 0.0
  %2041 = vmatprep.subr.mxu0 0.0
  %2042 = vmatpush2.msra.mxu0 0.0
  %2043 = vmatprep.subr.mxu0 0.0
  %2044 = vmatpush2.msra.mxu0 0.0
  %2045 = vmatprep.subr.mxu0 0.0
  %2046 = vmatpush2.msra.mxu0 0.0
  %2047 = vmatprep.subr.mxu0 0.0
  %2048 = vmatpush2.msra.mxu0 0.0
  %2049 = vmatprep.subr.mxu0 0.0
  %2050 = vmatpush2.msra.mxu0 0.0
  %2051 = vmatprep.subr.mxu0 0.0
  %2052 = vmatpush2.msra.mxu0 0.0
  %2053 = vmatprep.subr.mxu0 0.0
  %2054 = vmatpush2.msra.mxu0 0.0
  %2055 = vmatprep.subr.mxu0 0.0
  %2056 = vmatpush2.msra.mxu0 0.0
  %2057 = vmatprep.subr.mxu0 0.0
  %2058 = vmatpush2.msra.mxu0 0.0
  %2059 = vmatprep.subr.mxu0 0.0
  %2060 = vmatpush2.msra.mxu0 0.0
  %2061 = vmatprep.subr.mxu0 0.0
  %2062 = vmatpush2.msra.mxu0 0.0
  %2063 = vmatprep.subr.mxu0 0.0
  %2064 = vmatpush2.msra.mxu0 0.0
  %2065 = vmatprep.subr.mxu0 0.0
  %2066 = vmatpush2.msra.mxu0 0.0
  %2067 = vmatprep.subr.mxu0 0.0
  %2068 = vmatpush2.msra.mxu0 0.0
  %2069 = vmatprep.mubr.f32.mxu0 0.0
  %2070 = vmatmul.mubr.f32.gmra.mxu0 %v1869
  %v2071 = vpop.f32.mrf.mxu0
  %v2072 = vadd.f32 0.0, %v2071
  %v2073 = vpop.f32.mrf.mxu0
  %v2074 = vadd.f32 0.0, %v2073
  %2075 = vdwg.mxu0
  %v2076 = vadd.f32 %v1865, %v2001
  %v2077 = vadd.f32 %v1866, %v2003
  %v2078 = vadd.f32 %v1867, %v2072
  %v2079 = vadd.f32 %v1868, %v2074
  %v2080 = vxor.u32 %v2076, 2147483648
  %v2081 = vmul.f32 %v2080, 1.442695
  %v2082 = vpow.pop %v2081
  %v2083 = vadd.f32 %v2082, 1.0
  %v2084 = vrcp.pop %v2083
  %v2085 = vmul.f32 1.0, %v2084
  %v2086 = vxor.u32 %v2077, 2147483648
  %v2087 = vmul.f32 %v2086, 1.442695
  %v2088 = vpow.pop %v2087
  %v2089 = vadd.f32 %v2088, 1.0
  %v2090 = vrcp.pop %v2089
  %v2091 = vmul.f32 1.0, %v2090
  %v2092 = vtanh.pop %v2078
  %v2093 = vxor.u32 %v2079, 2147483648
  %v2094 = vmul.f32 %v2093, 1.442695
  %v2095 = vpow.pop %v2094
  %v2096 = vadd.f32 %v2095, 1.0
  %v2097 = vrcp.pop %v2096
  %v2098 = vmul.f32 1.0, %v2097
  %v2099 = vld [vmem:[#allocation5] sm:$0xff]
  %v2100 = vmul.f32 %v2091, %v2099
  %v2101 = vmul.f32 %v2085, %v2092
  %v2102 = vadd.f32 %v2100, %v2101
  %v2103 = vtanh.pop %v2102
  %v2104 = vmul.f32 %v2098, %v2103
  %2105 = vst [vmem:[#allocation5] sm:$0xff] %v2102
  %2106 = vst [vmem:[#allocation4] sm:$0xff] %v2104
  %s2107 = scalar_lea.vmem [#allocation3], 48
  %2108 = vst [vmem:[%s2107] sm:$0xff] %v2104
  %s2109 = smul.u32 7, 4
  %s2110 = smul.addr %s2109, 8
  %s2111 = scalar_lea.vmem [#allocation2], %s2110
  %v2112 = vld [vmem:[%s2111] sm:$0xff]
  %v2113 = vld [vmem:[%s2111 + $0x8] sm:$0xff]
  %v2114 = vld [vmem:[%s2111 + $0x10] sm:$0xff]
  %v2115 = vld [vmem:[%s2111 + $0x18] sm:$0xff]
  %v2116 = vld [vmem:[#allocation4] sm:$0xff]
  %v2117 = vld [vmem:[%s2] sm:$0xff]
  %v2118 = vld [vmem:[%s2 + $0x8] sm:$0xff]
  %v2119 = vld [vmem:[%s2 + $0x10] sm:$0xff]
  %v2120 = vld [vmem:[%s2 + $0x18] sm:$0xff]
  %v2121 = vld [vmem:[%s2 + $0x20] sm:$0xff]
  %v2122 = vld [vmem:[%s2 + $0x28] sm:$0xff]
  %v2123 = vld [vmem:[%s2 + $0x30] sm:$0xff]
  %v2124 = vld [vmem:[%s2 + $0x38] sm:$0xff]
  %v2125 = vld [vmem:[%s2 + $0x40] sm:$0xff]
  %v2126 = vld [vmem:[%s2 + $0x48] sm:$0xff]
  %v2127 = vld [vmem:[%s2 + $0x50] sm:$0xff]
  %v2128 = vld [vmem:[%s2 + $0x58] sm:$0xff]
  %v2129 = vld [vmem:[%s2 + $0x60] sm:$0xff]
  %v2130 = vld [vmem:[%s2 + $0x68] sm:$0xff]
  %v2131 = vld [vmem:[%s2 + $0x70] sm:$0xff]
  %v2132 = vld [vmem:[%s2 + $0x78] sm:$0xff]
  %v2133 = vld [vmem:[%s2 + $0x80] sm:$0xff]
  %v2134 = vld [vmem:[%s2 + $0x88] sm:$0xff]
  %v2135 = vld [vmem:[%s2 + $0x90] sm:$0xff]
  %v2136 = vld [vmem:[%s2 + $0x98] sm:$0xff]
  %v2137 = vld [vmem:[%s2 + $0xa0] sm:$0xff]
  %v2138 = vld [vmem:[%s2 + $0xa8] sm:$0xff]
  %v2139 = vld [vmem:[%s2 + $0xb0] sm:$0xff]
  %v2140 = vld [vmem:[%s2 + $0xb8] sm:$0xff]
  %v2141 = vld [vmem:[%s2 + $0xc0] sm:$0xff]
  %v2142 = vld [vmem:[%s2 + $0xc8] sm:$0xff]
  %v2143 = vld [vmem:[%s2 + $0xd0] sm:$0xff]
  %v2144 = vld [vmem:[%s2 + $0xd8] sm:$0xff]
  %v2145 = vld [vmem:[%s2 + $0xe0] sm:$0xff]
  %v2146 = vld [vmem:[%s2 + $0xe8] sm:$0xff]
  %v2147 = vld [vmem:[%s2 + $0xf0] sm:$0xff]
  %v2148 = vld [vmem:[%s2 + $0xf8] sm:$0xff]
  %v2149 = vld [vmem:[%s2 + $0x100] sm:$0xff]
  %v2150 = vld [vmem:[%s2 + $0x108] sm:$0xff]
  %v2151 = vld [vmem:[%s2 + $0x110] sm:$0xff]
  %v2152 = vld [vmem:[%s2 + $0x118] sm:$0xff]
  %v2153 = vld [vmem:[%s2 + $0x120] sm:$0xff]
  %v2154 = vld [vmem:[%s2 + $0x128] sm:$0xff]
  %v2155 = vld [vmem:[%s2 + $0x130] sm:$0xff]
  %v2156 = vld [vmem:[%s2 + $0x138] sm:$0xff]
  %v2157 = vld [vmem:[%s2 + $0x140] sm:$0xff]
  %v2158 = vld [vmem:[%s2 + $0x148] sm:$0xff]
  %v2159 = vld [vmem:[%s2 + $0x150] sm:$0xff]
  %v2160 = vld [vmem:[%s2 + $0x158] sm:$0xff]
  %v2161 = vld [vmem:[%s2 + $0x160] sm:$0xff]
  %v2162 = vld [vmem:[%s2 + $0x168] sm:$0xff]
  %v2163 = vld [vmem:[%s2 + $0x170] sm:$0xff]
  %v2164 = vld [vmem:[%s2 + $0x178] sm:$0xff]
  %v2165 = vld [vmem:[%s2 + $0x180] sm:$0xff]
  %v2166 = vld [vmem:[%s2 + $0x188] sm:$0xff]
  %v2167 = vld [vmem:[%s2 + $0x190] sm:$0xff]
  %v2168 = vld [vmem:[%s2 + $0x198] sm:$0xff]
  %v2169 = vld [vmem:[%s2 + $0x1a0] sm:$0xff]
  %v2170 = vld [vmem:[%s2 + $0x1a8] sm:$0xff]
  %v2171 = vld [vmem:[%s2 + $0x1b0] sm:$0xff]
  %v2172 = vld [vmem:[%s2 + $0x1b8] sm:$0xff]
  %v2173 = vld [vmem:[%s2 + $0x1c0] sm:$0xff]
  %v2174 = vld [vmem:[%s2 + $0x1c8] sm:$0xff]
  %v2175 = vld [vmem:[%s2 + $0x1d0] sm:$0xff]
  %v2176 = vld [vmem:[%s2 + $0x1d8] sm:$0xff]
  %v2177 = vld [vmem:[%s2 + $0x1e0] sm:$0xff]
  %v2178 = vld [vmem:[%s2 + $0x1e8] sm:$0xff]
  %v2179 = vld [vmem:[%s2 + $0x1f0] sm:$0xff]
  %v2180 = vld [vmem:[%s2 + $0x1f8] sm:$0xff]
  %2181 = vmatprep.subr.mxu0 %v2178
  %2182 = vmatpush1.msra.mxu0 %v2177
  %2183 = vmatprep.subr.mxu0 %v2174
  %2184 = vmatpush1.msra.mxu0 %v2173
  %2185 = vmatprep.subr.mxu0 %v2170
  %2186 = vmatpush1.msra.mxu0 %v2169
  %2187 = vmatprep.subr.mxu0 %v2166
  %2188 = vmatpush1.msra.mxu0 %v2165
  %2189 = vmatprep.subr.mxu0 %v2162
  %2190 = vmatpush1.msra.mxu0 %v2161
  %2191 = vmatprep.subr.mxu0 %v2158
  %2192 = vmatpush1.msra.mxu0 %v2157
  %2193 = vmatprep.subr.mxu0 %v2154
  %2194 = vmatpush1.msra.mxu0 %v2153
  %2195 = vmatprep.subr.mxu0 %v2150
  %2196 = vmatpush1.msra.mxu0 %v2149
  %2197 = vmatprep.subr.mxu0 %v2146
  %2198 = vmatpush1.msra.mxu0 %v2145
  %2199 = vmatprep.subr.mxu0 %v2142
  %2200 = vmatpush1.msra.mxu0 %v2141
  %2201 = vmatprep.subr.mxu0 %v2138
  %2202 = vmatpush1.msra.mxu0 %v2137
  %2203 = vmatprep.subr.mxu0 %v2134
  %2204 = vmatpush1.msra.mxu0 %v2133
  %2205 = vmatprep.subr.mxu0 %v2130
  %2206 = vmatpush1.msra.mxu0 %v2129
  %2207 = vmatprep.subr.mxu0 %v2126
  %2208 = vmatpush1.msra.mxu0 %v2125
  %2209 = vmatprep.subr.mxu0 %v2122
  %2210 = vmatpush1.msra.mxu0 %v2121
  %2211 = vmatprep.subr.mxu0 %v2118
  %2212 = vmatpush1.msra.mxu0 %v2117
  %2213 = vmatprep.subr.mxu0 0.0
  %2214 = vmatpush2.msra.mxu0 0.0
  %2215 = vmatprep.subr.mxu0 0.0
  %2216 = vmatpush2.msra.mxu0 0.0
  %2217 = vmatprep.subr.mxu0 0.0
  %2218 = vmatpush2.msra.mxu0 0.0
  %2219 = vmatprep.subr.mxu0 0.0
  %2220 = vmatpush2.msra.mxu0 0.0
  %2221 = vmatprep.subr.mxu0 0.0
  %2222 = vmatpush2.msra.mxu0 0.0
  %2223 = vmatprep.subr.mxu0 0.0
  %2224 = vmatpush2.msra.mxu0 0.0
  %2225 = vmatprep.subr.mxu0 0.0
  %2226 = vmatpush2.msra.mxu0 0.0
  %2227 = vmatprep.subr.mxu0 0.0
  %2228 = vmatpush2.msra.mxu0 0.0
  %2229 = vmatprep.subr.mxu0 0.0
  %2230 = vmatpush2.msra.mxu0 0.0
  %2231 = vmatprep.subr.mxu0 0.0
  %2232 = vmatpush2.msra.mxu0 0.0
  %2233 = vmatprep.subr.mxu0 0.0
  %2234 = vmatpush2.msra.mxu0 0.0
  %2235 = vmatprep.subr.mxu0 0.0
  %2236 = vmatpush2.msra.mxu0 0.0
  %2237 = vmatprep.subr.mxu0 0.0
  %2238 = vmatpush2.msra.mxu0 0.0
  %2239 = vmatprep.subr.mxu0 0.0
  %2240 = vmatpush2.msra.mxu0 0.0
  %2241 = vmatprep.subr.mxu0 0.0
  %2242 = vmatpush2.msra.mxu0 0.0
  %2243 = vmatprep.subr.mxu0 0.0
  %2244 = vmatpush2.msra.mxu0 0.0
  %2245 = vmatprep.mubr.f32.mxu0 0.0
  %2246 = vmatmul.mubr.f32.gmra.mxu0 %v2116
  %v2247 = vpop.f32.mrf.mxu0
  %v2248 = vadd.f32 0.0, %v2247
  %v2249 = vpop.f32.mrf.mxu0
  %v2250 = vadd.f32 0.0, %v2249
  %2251 = vdwg.mxu0
  %2252 = vmatprep.subr.mxu0 %v2180
  %2253 = vmatpush1.msra.mxu0 %v2179
  %2254 = vmatprep.subr.mxu0 %v2176
  %2255 = vmatpush1.msra.mxu0 %v2175
  %2256 = vmatprep.subr.mxu0 %v2172
  %2257 = vmatpush1.msra.mxu0 %v2171
  %2258 = vmatprep.subr.mxu0 %v2168
  %2259 = vmatpush1.msra.mxu0 %v2167
  %2260 = vmatprep.subr.mxu0 %v2164
  %2261 = vmatpush1.msra.mxu0 %v2163
  %2262 = vmatprep.subr.mxu0 %v2160
  %2263 = vmatpush1.msra.mxu0 %v2159
  %2264 = vmatprep.subr.mxu0 %v2156
  %2265 = vmatpush1.msra.mxu0 %v2155
  %2266 = vmatprep.subr.mxu0 %v2152
  %2267 = vmatpush1.msra.mxu0 %v2151
  %2268 = vmatprep.subr.mxu0 %v2148
  %2269 = vmatpush1.msra.mxu0 %v2147
  %2270 = vmatprep.subr.mxu0 %v2144
  %2271 = vmatpush1.msra.mxu0 %v2143
  %2272 = vmatprep.subr.mxu0 %v2140
  %2273 = vmatpush1.msra.mxu0 %v2139
  %2274 = vmatprep.subr.mxu0 %v2136
  %2275 = vmatpush1.msra.mxu0 %v2135
  %2276 = vmatprep.subr.mxu0 %v2132
  %2277 = vmatpush1.msra.mxu0 %v2131
  %2278 = vmatprep.subr.mxu0 %v2128
  %2279 = vmatpush1.msra.mxu0 %v2127
  %2280 = vmatprep.subr.mxu0 %v2124
  %2281 = vmatpush1.msra.mxu0 %v2123
  %2282 = vmatprep.subr.mxu0 %v2120
  %2283 = vmatpush1.msra.mxu0 %v2119
  %2284 = vmatprep.subr.mxu0 0.0
  %2285 = vmatpush2.msra.mxu0 0.0
  %2286 = vmatprep.subr.mxu0 0.0
  %2287 = vmatpush2.msra.mxu0 0.0
  %2288 = vmatprep.subr.mxu0 0.0
  %2289 = vmatpush2.msra.mxu0 0.0
  %2290 = vmatprep.subr.mxu0 0.0
  %2291 = vmatpush2.msra.mxu0 0.0
  %2292 = vmatprep.subr.mxu0 0.0
  %2293 = vmatpush2.msra.mxu0 0.0
  %2294 = vmatprep.subr.mxu0 0.0
  %2295 = vmatpush2.msra.mxu0 0.0
  %2296 = vmatprep.subr.mxu0 0.0
  %2297 = vmatpush2.msra.mxu0 0.0
  %2298 = vmatprep.subr.mxu0 0.0
  %2299 = vmatpush2.msra.mxu0 0.0
  %2300 = vmatprep.subr.mxu0 0.0
  %2301 = vmatpush2.msra.mxu0 0.0
  %2302 = vmatprep.subr.mxu0 0.0
  %2303 = vmatpush2.msra.mxu0 0.0
  %2304 = vmatprep.subr.mxu0 0.0
  %2305 = vmatpush2.msra.mxu0 0.0
  %2306 = vmatprep.subr.mxu0 0.0
  %2307 = vmatpush2.msra.mxu0 0.0
  %2308 = vmatprep.subr.mxu0 0.0
  %2309 = vmatpush2.msra.mxu0 0.0
  %2310 = vmatprep.subr.mxu0 0.0
  %2311 = vmatpush2.msra.mxu0 0.0
  %2312 = vmatprep.subr.mxu0 0.0
  %2313 = vmatpush2.msra.mxu0 0.0
  %2314 = vmatprep.subr.mxu0 0.0
  %2315 = vmatpush2.msra.mxu0 0.0
  %2316 = vmatprep.mubr.f32.mxu0 0.0
  %2317 = vmatmul.mubr.f32.gmra.mxu0 %v2116
  %v2318 = vpop.f32.mrf.mxu0
  %v2319 = vadd.f32 0.0, %v2318
  %v2320 = vpop.f32.mrf.mxu0
  %v2321 = vadd.f32 0.0, %v2320
  %2322 = vdwg.mxu0
  %v2323 = vadd.f32 %v2112, %v2248
  %v2324 = vadd.f32 %v2113, %v2250
  %v2325 = vadd.f32 %v2114, %v2319
  %v2326 = vadd.f32 %v2115, %v2321
  %v2327 = vxor.u32 %v2323, 2147483648
  %v2328 = vmul.f32 %v2327, 1.442695
  %v2329 = vpow.pop %v2328
  %v2330 = vadd.f32 %v2329, 1.0
  %v2331 = vrcp.pop %v2330
  %v2332 = vmul.f32 1.0, %v2331
  %v2333 = vxor.u32 %v2324, 2147483648
  %v2334 = vmul.f32 %v2333, 1.442695
  %v2335 = vpow.pop %v2334
  %v2336 = vadd.f32 %v2335, 1.0
  %v2337 = vrcp.pop %v2336
  %v2338 = vmul.f32 1.0, %v2337
  %v2339 = vtanh.pop %v2325
  %v2340 = vxor.u32 %v2326, 2147483648
  %v2341 = vmul.f32 %v2340, 1.442695
  %v2342 = vpow.pop %v2341
  %v2343 = vadd.f32 %v2342, 1.0
  %v2344 = vrcp.pop %v2343
  %v2345 = vmul.f32 1.0, %v2344
  %v2346 = vld [vmem:[#allocation5] sm:$0xff]
  %v2347 = vmul.f32 %v2338, %v2346
  %v2348 = vmul.f32 %v2332, %v2339
  %v2349 = vadd.f32 %v2347, %v2348
  %v2350 = vtanh.pop %v2349
  %v2351 = vmul.f32 %v2345, %v2350
  %2352 = vst [vmem:[#allocation5] sm:$0xff] %v2349
  %2353 = vst [vmem:[#allocation4] sm:$0xff] %v2351
  %s2354 = scalar_lea.vmem [#allocation3], 56
  %2355 = vst [vmem:[%s2354] sm:$0xff] %v2351
  %v2356 = vld [vmem:[#allocation4] sm:$0xff]
  %2357 = vst [vmem:[%s9] sm:$0xff] %v2356
  %v2358 = vld [vmem:[#allocation5] sm:$0xff]
  %2359 = vst [vmem:[%s10] sm:$0xff] %v2358
  %v2360 = vld [vmem:[#allocation3] sm:$0xff]
  %v2361 = vld [vmem:[#allocation3 + $0x8] sm:$0xff]
  %v2362 = vld [vmem:[#allocation3 + $0x10] sm:$0xff]
  %v2363 = vld [vmem:[#allocation3 + $0x18] sm:$0xff]
  %v2364 = vld [vmem:[#allocation3 + $0x20] sm:$0xff]
  %v2365 = vld [vmem:[#allocation3 + $0x28] sm:$0xff]
  %v2366 = vld [vmem:[#allocation3 + $0x30] sm:$0xff]
  %v2367 = vld [vmem:[#allocation3 + $0x38] sm:$0xff]
  %v2368 = vld [vmem:[%s4] sm:$0xff]
  %v2369 = vld [vmem:[%s4 + $0x8] sm:$0xff]
  %v2370 = vld [vmem:[%s4 + $0x10] sm:$0xff]
  %v2371 = vld [vmem:[%s4 + $0x18] sm:$0xff]
  %v2372 = vld [vmem:[%s4 + $0x20] sm:$0xff]
  %v2373 = vld [vmem:[%s4 + $0x28] sm:$0xff]
  %v2374 = vld [vmem:[%s4 + $0x30] sm:$0xff]
  %v2375 = vld [vmem:[%s4 + $0x38] sm:$0xff]
  %v2376 = vld [vmem:[%s4 + $0x40] sm:$0xff]
  %v2377 = vld [vmem:[%s4 + $0x48] sm:$0xff]
  %v2378 = vld [vmem:[%s4 + $0x50] sm:$0xff]
  %v2379 = vld [vmem:[%s4 + $0x58] sm:$0xff]
  %v2380 = vld [vmem:[%s4 + $0x60] sm:$0xff]
  %v2381 = vld [vmem:[%s4 + $0x68] sm:$0xff]
  %v2382 = vld [vmem:[%s4 + $0x70] sm:$0xff]
  %v2383 = vld [vmem:[%s4 + $0x78] sm:$0xff]
  %v2384 = vld [vmem:[%s5] sm:$0x1]
  %v2386 = vlaneseq
  %v2387 = vshrl.u32 %v2386, 7
  %v2388 = vsub.s32 0, %v2387
  %v2389 = vrot.slane %v2384, %v2388
  %2391 = vmatprep.subr.mxu0 0.0
  %2392 = vmatpush1.msra.mxu0 %v2383
  %2393 = vmatprep.subr.mxu0 0.0
  %2394 = vmatpush1.msra.mxu0 %v2382
  %2395 = vmatprep.subr.mxu0 0.0
  %2396 = vmatpush1.msra.mxu0 %v2381
  %2397 = vmatprep.subr.mxu0 0.0
  %2398 = vmatpush1.msra.mxu0 %v2380
  %2399 = vmatprep.subr.mxu0 0.0
  %2400 = vmatpush1.msra.mxu0 %v2379
  %2401 = vmatprep.subr.mxu0 0.0
  %2402 = vmatpush1.msra.mxu0 %v2378
  %2403 = vmatprep.subr.mxu0 0.0
  %2404 = vmatpush1.msra.mxu0 %v2377
  %2405 = vmatprep.subr.mxu0 0.0
  %2406 = vmatpush1.msra.mxu0 %v2376
  %2407 = vmatprep.subr.mxu0 0.0
  %2408 = vmatpush1.msra.mxu0 %v2375
  %2409 = vmatprep.subr.mxu0 0.0
  %2410 = vmatpush1.msra.mxu0 %v2374
  %2411 = vmatprep.subr.mxu0 0.0
  %2412 = vmatpush1.msra.mxu0 %v2373
  %2413 = vmatprep.subr.mxu0 0.0
  %2414 = vmatpush1.msra.mxu0 %v2372
  %2415 = vmatprep.subr.mxu0 0.0
  %2416 = vmatpush1.msra.mxu0 %v2371
  %2417 = vmatprep.subr.mxu0 0.0
  %2418 = vmatpush1.msra.mxu0 %v2370
  %2419 = vmatprep.subr.mxu0 0.0
  %2420 = vmatpush1.msra.mxu0 %v2369
  %2421 = vmatprep.subr.mxu0 0.0
  %2422 = vmatpush1.msra.mxu0 %v2368
  %2423 = vmatprep.subr.mxu0 0.0
  %2424 = vmatpush2.msra.mxu0 0.0
  %2425 = vmatprep.subr.mxu0 0.0
  %2426 = vmatpush2.msra.mxu0 0.0
  %2427 = vmatprep.subr.mxu0 0.0
  %2428 = vmatpush2.msra.mxu0 0.0
  %2429 = vmatprep.subr.mxu0 0.0
  %2430 = vmatpush2.msra.mxu0 0.0
  %2431 = vmatprep.subr.mxu0 0.0
  %2432 = vmatpush2.msra.mxu0 0.0
  %2433 = vmatprep.subr.mxu0 0.0
  %2434 = vmatpush2.msra.mxu0 0.0
  %2435 = vmatprep.subr.mxu0 0.0
  %2436 = vmatpush2.msra.mxu0 0.0
  %2437 = vmatprep.subr.mxu0 0.0
  %2438 = vmatpush2.msra.mxu0 0.0
  %2439 = vmatprep.subr.mxu0 0.0
  %2440 = vmatpush2.msra.mxu0 0.0
  %2441 = vmatprep.subr.mxu0 0.0
  %2442 = vmatpush2.msra.mxu0 0.0
  %2443 = vmatprep.subr.mxu0 0.0
  %2444 = vmatpush2.msra.mxu0 0.0
  %2445 = vmatprep.subr.mxu0 0.0
  %2446 = vmatpush2.msra.mxu0 0.0
  %2447 = vmatprep.subr.mxu0 0.0
  %2448 = vmatpush2.msra.mxu0 0.0
  %2449 = vmatprep.subr.mxu0 0.0
  %2450 = vmatpush2.msra.mxu0 0.0
  %2451 = vmatprep.subr.mxu0 0.0
  %2452 = vmatpush2.msra.mxu0 0.0
  %2453 = vmatprep.subr.mxu0 0.0
  %2454 = vmatpush2.msra.mxu0 0.0
  %2455 = vmatprep.mubr.f32.mxu0 0.0
  %2456 = vmatmul.mubr.f32.gmra.mxu0 %v2360
  %v2457 = vpop.f32.mrf.mxu0
  %v2458 = vadd.f32 %v2389, %v2457
  %v2459 = vpop.f32.mrf.mxu0
  %2460 = vmatprep.mubr.f32.mxu0 0.0
  %2461 = vmatmul.mubr.f32.gmra.mxu0 %v2361
  %v2462 = vpop.f32.mrf.mxu0
  %v2463 = vadd.f32 %v2389, %v2462
  %v2464 = vpop.f32.mrf.mxu0
  %2465 = vmatprep.mubr.f32.mxu0 0.0
  %2466 = vmatmul.mubr.f32.gmra.mxu0 %v2362
  %v2467 = vpop.f32.mrf.mxu0
  %v2468 = vadd.f32 %v2389, %v2467
  %v2469 = vpop.f32.mrf.mxu0
  %2470 = vmatprep.mubr.f32.mxu0 0.0
  %2471 = vmatmul.mubr.f32.gmra.mxu0 %v2363
  %v2472 = vpop.f32.mrf.mxu0
  %v2473 = vadd.f32 %v2389, %v2472
  %v2474 = vpop.f32.mrf.mxu0
  %2475 = vmatprep.mubr.f32.mxu0 0.0
  %2476 = vmatmul.mubr.f32.gmra.mxu0 %v2364
  %v2477 = vpop.f32.mrf.mxu0
  %v2478 = vadd.f32 %v2389, %v2477
  %v2479 = vpop.f32.mrf.mxu0
  %2480 = vmatprep.mubr.f32.mxu0 0.0
  %2481 = vmatmul.mubr.f32.gmra.mxu0 %v2365
  %v2482 = vpop.f32.mrf.mxu0
  %v2483 = vadd.f32 %v2389, %v2482
  %v2484 = vpop.f32.mrf.mxu0
  %2485 = vmatprep.mubr.f32.mxu0 0.0
  %2486 = vmatmul.mubr.f32.gmra.mxu0 %v2366
  %v2487 = vpop.f32.mrf.mxu0
  %v2488 = vadd.f32 %v2389, %v2487
  %v2489 = vpop.f32.mrf.mxu0
  %2490 = vmatprep.mubr.f32.mxu0 0.0
  %2491 = vmatmul.mubr.f32.gmra.mxu0 %v2367
  %v2492 = vpop.f32.mrf.mxu0
  %v2493 = vadd.f32 %v2389, %v2492
  %v2494 = vpop.f32.mrf.mxu0
  %2495 = vdwg.mxu0
  %2496 = vst [vmem:[%s8] sm:$0xff] %v2458
  %2497 = vst [vmem:[%s8 + $0x8] sm:$0xff] %v2463
  %2498 = vst [vmem:[%s8 + $0x10] sm:$0xff] %v2468
  %2499 = vst [vmem:[%s8 + $0x18] sm:$0xff] %v2473
  %2500 = vst [vmem:[%s8 + $0x20] sm:$0xff] %v2478
  %2501 = vst [vmem:[%s8 + $0x28] sm:$0xff] %v2483
  %2502 = vst [vmem:[%s8 + $0x30] sm:$0xff] %v2488
  %2503 = vst [vmem:[%s8 + $0x38] sm:$0xff] %v2493
  // Predicated region
  $region34: #{lstm_decoder_forward.1} parent=0 // pred_check
    _
  $region35: #{lstm_decoder_forward.1} parent=0 // pred_check_branch
    %2505 = sbr.rel (0) target = $region37
  $region36: #{lstm_decoder_forward.1} parent=0 // pred_region
    _
  $region37: #{lstm_decoder_forward.1} parent=0 // pred_fallthru
    _
  // Predicated region
  $region38: #{lstm_decoder_forward.1} parent=0 // pred_check
    _
  $region39: #{lstm_decoder_forward.1} parent=0 // pred_check_branch
    %2507 = sbr.rel (0) target = $region41
  $region40: #{lstm_decoder_forward.1} parent=0 // pred_region
    _
  $region41: #{lstm_decoder_forward.1} parent=0 // pred_fallthru
    _
  // Predicated region
  $region42: #{lstm_decoder_forward.1} parent=0 // pred_check
    _
  $region43: #{lstm_decoder_forward.1} parent=0 // pred_check_branch
    %2509 = sbr.rel (0) target = $region45
  $region44: #{lstm_decoder_forward.1} parent=0 // pred_region
    _
  $region45: #{lstm_decoder_forward.1} parent=0 // pred_fallthru
    _
  // Predicated region
  $region46: #{lstm_decoder_forward.1} parent=0 // pred_check
    _
  $region47: #{lstm_decoder_forward.1} parent=0 // pred_check_branch
    %2511 = sbr.rel (0) target = $region49
  $region48: #{lstm_decoder_forward.1} parent=0 // pred_region
    _
  $region49: #{lstm_decoder_forward.1} parent=0 // pred_fallthru
    _
  // Predicated region
  $region50: #{lstm_decoder_forward.1} parent=0 // pred_check
    _
  $region51: #{lstm_decoder_forward.1} parent=0 // pred_check_branch
    %2513 = sbr.rel (0) target = $region53
  $region52: #{lstm_decoder_forward.1} parent=0 // pred_region
    _
  $region53: #{lstm_decoder_forward.1} parent=0 // pred_fallthru
    _
  // Predicated region
  $region54: #{lstm_decoder_forward.1} parent=0 // pred_check
    _
  $region55: #{lstm_decoder_forward.1} parent=0 // pred_check_branch
    %2515 = sbr.rel (0) target = $region57
  $region56: #{lstm_decoder_forward.1} parent=0 // pred_region
    _
  $region57: #{lstm_decoder_forward.1} parent=0 // pred_fallthru
    _

</llo_original>
